<compile_context>
chip_gen: v6e
topology: v6e:2x2x1
jax: 0.10.0
libtpu: 0.0.40
codegen_flags: <defaults>
</compile_context>

<pallas_src>
import functools
import math

import jax
import jax.numpy as jnp
from jax.experimental import pallas as pl
from jax.experimental.pallas import tpu as pltpu


def _round_up(x, m):
    return (x + m - 1) // m * m


def _pick_tile(m, target):
    """Largest divisor of m that is a multiple of 8 and <= target (else m)."""
    t = min(target, m)
    t -= t % 8
    while t >= 8:
        if m % t == 0:
            return t
        t -= 8
    return m


def _vmem_limit_bytes():
    """Generation-aware VMEM budget: ~half the physical VMEM.

    v5e/v6e (128 MiB physical) -> 64 MiB, v7x (64 MiB physical) -> 32 MiB.
    """
    try:
        cap = int(getattr(pltpu.get_tpu_info(), "vmem_capacity_bytes", 64 << 20))
    except Exception:
        cap = 64 << 20
    return int(min(max(cap // 2, 32 << 20), 64 << 20))


# --------------------------------------------------------------------------- #
# Tiled matmul + bias (pre_net ConvTranspose1d layers)
# --------------------------------------------------------------------------- #

def _matmul_bias_kernel(x_ref, w_ref, b_ref, o_ref):
    # bf16 operands on the MXU, f32 accumulation; bias added in f32.
    o_ref[...] = (
        jnp.dot(x_ref[...].astype(jnp.bfloat16), w_ref[...],
                preferred_element_type=jnp.float32)
        + b_ref[...]
    )


def matmul_bias(x, w_bf16, b, *, tile_m=256):
    """y = x @ w + b, tiled & pipelined over the M (= batch*time) axis."""
    m, k = x.shape
    n = w_bf16.shape[1]
    tm = _pick_tile(m, tile_m)
    return pl.pallas_call(
        _matmul_bias_kernel,
        grid=(m // tm,),
        in_specs=[
            pl.BlockSpec((tm, k), lambda i: (i, 0)),
            pl.BlockSpec((k, n), lambda i: (0, 0)),   # weight, VMEM resident
            pl.BlockSpec((1, n), lambda i: (0, 0)),
        ],
        out_specs=pl.BlockSpec((tm, n), lambda i: (i, 0)),
        out_shape=jax.ShapeDtypeStruct((m, n), jnp.float32),
        compiler_params=pltpu.CompilerParams(
            dimension_semantics=("parallel",),
            vmem_limit_bytes=_vmem_limit_bytes(),
        ),
    )(x, w_bf16, b.reshape(1, n))


# --------------------------------------------------------------------------- #
# Fused WN stack (+ masking + out_proj) in a single pallas_call
# --------------------------------------------------------------------------- #

def _wn_fused_kernel(
    x_init_ref, mask_ref, g_ref,
    w_in_ref, b_in_ref, cond_w_ref, cond_b_ref,
    w_rs_ref, b_rs_ref, w_out_ref, b_out_ref,
    y_ref,
    x_buf, skip_acc,
    *, n_layers, kernel_size, seq_len, tile_t, lpad, hidden):
    l = pl.program_id(1)          # WN layer (sequential chain)
    t = pl.program_id(2)          # time tile (sequential: conv halos cross tiles)

    K, T, TM, H = kernel_size, seq_len, tile_t, hidden
    pad = (K - 1) // 2
    TP = T + 2 * lpad             # padded rows per ping-pong slot
    row0 = t * TM                 # first time frame covered by this tile

    # One-time per-batch staging (layer 0, tile 0): copy the (already masked)
    # pre_net activations into ping-pong slot 1 (read by layer 0) and zero the
    # conv halo rows of both slots.  After this, x never leaves VMEM again.
    @pl.when((l == 0) & (t == 0))
    def _stage():
        zhalo = jnp.zeros((lpad, H), jnp.float32)
        for slot in (0, 1):
            base = slot * TP
            x_buf[pl.ds(base, lpad), :] = zhalo
            x_buf[pl.ds(base + lpad + T, lpad), :] = zhalo
        x_buf[pl.ds(TP + lpad, T), :] = x_init_ref[0]

    # Ping-pong slots: layer l reads slot 1-(l&1), writes slot (l&1).
    rbase = (1 - (l & 1)) * TP
    wbase = (l & 1) * TP

    # One sublane-aligned extended load around the tile; the K tap views are
    # static in-register shifts (relayout overlaps MXU work, no unaligned
    # VMEM loads).
    ext_start = pl.multiple_of(rbase + row0, 8)
    x_ext = x_buf[pl.ds(ext_start, TM + 2 * lpad), :]
    x_c = x_ext[lpad:lpad + TM, :]                 # running x (already masked)
    x_ext_b = x_ext.astype(jnp.bfloat16)

    # Fused in_conv (K taps, dilation 1) + per-layer cond 1x1 conv.  Each dot
    # produces the full [TM, 2H] (=256-lane) pre-activation: tanh half in
    # columns [:H], sigmoid half in [H:].
    pre = (jnp.dot(g_ref[0], cond_w_ref[0], preferred_element_type=jnp.float32)
           + cond_b_ref[0] + b_in_ref[0])
    for j in range(K):
        lo = lpad - pad + j
        pre = pre + jnp.dot(x_ext_b[lo:lo + TM, :], w_in_ref[0, j],
                            preferred_element_type=jnp.float32)

    # Gated activation (f32 EUP transcendentals; 128-column slices are
    # vreg-granular and free).
    acts = jnp.tanh(pre[:, :H]) * jax.nn.sigmoid(pre[:, H:])
    # TODO(synk): dropout on the gated activations is omitted (p_dropout == 0).
    acts_b = acts.astype(jnp.bfloat16)

    # Fused res+skip 1x1 conv -> [TM, 2H]: res = [:, :H], skip = [:, H:].
    rs = (jnp.dot(acts_b, w_rs_ref[0], preferred_element_type=jnp.float32)
          + b_rs_ref[0])
    m_c = mask_ref[0]                              # (TM, 1)

    # Residual-path update (all but the last layer), masked.
    @pl.when(l < n_layers - 1)
    def _residual():
        wrow = pl.multiple_of(wbase + lpad + row0, 8)
        x_buf[pl.ds(wrow, TM), :] = (x_c + rs[:, :H]) * m_c

    # Skip accumulation across layers lives in VMEM scratch (no HBM traffic).
    skip = rs[:, H:]
    srow = pl.multiple_of(row0, 8)
    if n_layers > 1:
        @pl.when(l == 0)
        def _skip_init():
            skip_acc[pl.ds(srow, TM), :] = skip

        @pl.when((l > 0) & (l < n_layers - 1))
        def _skip_accum():
            skip_acc[pl.ds(srow, TM), :] = skip_acc[pl.ds(srow, TM), :] + skip

    # Last layer: finish the skip sum, mask once (mask is 0/1, so the WN and
    # decoder masks collapse), fuse the out_proj 1x1 conv (lane-padded output).
    @pl.when(l == n_layers - 1)
    def _finalize():
        if n_layers > 1:
            total = skip_acc[pl.ds(srow, TM), :] + skip
        else:
            total = skip
        total = total * m_c
        y_ref[0] = (jnp.dot(total.astype(jnp.bfloat16), w_out_ref[...],
                            preferred_element_type=jnp.float32)
                    + b_out_ref[...])


def wn_decoder_fused(x_masked, mask, g_bf16, kp, *, cfg):
    """x_masked: [B,T,H] f32 (pre_net * mask); mask: [B,T,1] f32; g: [B,T,G] bf16."""
    B, T, H = x_masked.shape
    G = g_bf16.shape[-1]
    L, K = cfg["n_layers"], cfg["kernel_size"]
    NP = kp["w_out"].shape[1]
    H2 = 2 * H

    TM = _pick_tile(T, 512)        # 256-512 rows/step amortise per-step overhead
    NT = T // TM
    pad = (K - 1) // 2
    lpad = max(8, _round_up(pad, 8))
    TP = T + 2 * lpad

    kern = functools.partial(
        _wn_fused_kernel, n_layers=L, kernel_size=K, seq_len=T, tile_t=TM,
        lpad=lpad, hidden=H)

    last = L - 1

    def out_map(b, l, t):
        # Only advance the time block on the last layer -> no redundant
        # writebacks of untouched output blocks for l < L-1.
        return (b, jnp.where(l == last, t, 0), 0)

    # NOTE: per-layer fused weights are ~330 KB bf16; with the default
    # double-buffering the next layer's fetch overlaps >= one full grid step
    # of MXU work, so deeper pipeline_mode buffering is not needed here.
    # TODO(synk): for B == 1 on v7x, split the time axis across the two
    # TensorCores (seam halo handled like the existing tile halos).
    return pl.pallas_call(
        kern,
        grid=(B, L, NT),
        in_specs=[
            pl.BlockSpec((1, T, H), lambda b, l, t: (b, 0, 0)),       # masked pre_net act (per batch)
            pl.BlockSpec((1, TM, 1), lambda b, l, t: (b, t, 0)),      # mask tile
            pl.BlockSpec((1, TM, G), lambda b, l, t: (b, t, 0)),      # g tile (bf16)
            pl.BlockSpec((1, K, H, H2), lambda b, l, t: (l, 0, 0, 0)),  # fused in_conv W
            pl.BlockSpec((1, 1, H2), lambda b, l, t: (l, 0, 0)),      # in_conv bias
            pl.BlockSpec((1, G, H2), lambda b, l, t: (l, 0, 0)),      # per-layer cond W
            pl.BlockSpec((1, 1, H2), lambda b, l, t: (l, 0, 0)),      # cond bias
            pl.BlockSpec((1, H, H2), lambda b, l, t: (l, 0, 0)),      # fused res+skip W
            pl.BlockSpec((1, 1, H2), lambda b, l, t: (l, 0, 0)),      # res+skip bias
            pl.BlockSpec((H, NP), lambda b, l, t: (0, 0)),            # out_proj W (resident)
            pl.BlockSpec((1, NP), lambda b, l, t: (0, 0)),            # out_proj b
        ],
        out_specs=pl.BlockSpec((1, TM, NP), out_map),
        out_shape=jax.ShapeDtypeStruct((B, T, NP), jnp.float32),
        scratch_shapes=[
            # No batch dimension: a core finishes all (l, t) of a batch before
            # the next one, and each TensorCore has its own scratch.
            pltpu.VMEM((2 * TP, H), jnp.float32),   # ping-pong running x (padded)
            pltpu.VMEM((T, H), jnp.float32),        # skip accumulator
            # TODO(synk): x_buf could be bf16 to halve this on v7x (validate
            # residual-accumulation drift over n_layers first).
        ],
        compiler_params=pltpu.CompilerParams(
            dimension_semantics=("parallel", "arbitrary", "arbitrary"),
            vmem_limit_bytes=_vmem_limit_bytes(),
        ),
    )(x_masked, mask, g_bf16,
      kp["w_in"], kp["b_in"], kp["cond_w"], kp["cond_b"],
      kp["w_rs"], kp["b_rs"], kp["w_out"], kp["b_out"])


# --------------------------------------------------------------------------- #
# Parameters: torch-layout init + one-time conversion to kernel layouts
# --------------------------------------------------------------------------- #

def init_torch_params(key, cfg):
    C_lat, H = cfg["latent_channels"], cfg["hidden_channels"]
    C_out, G = cfg["out_channels"], cfg["gin_channels"]
    K, L, strides = cfg["kernel_size"], cfg["n_layers"], cfg["strides"]
    keys = iter(jax.random.split(key, 4 * L + 2 * len(strides) + 8))

    def rnd(shape, scale=0.1):
        return (scale * jax.random.normal(next(keys), shape)).astype(jnp.float32)

    p = {"pre_net": []}
    cin = C_lat
    for s in strides:
        p["pre_net"].append(dict(weight=rnd((cin, H, s)), bias=rnd((H,), 0.01)))
        cin = H
    p["cond_layer"] = dict(weight=rnd((2 * H * L, G, 1)), bias=rnd((2 * H * L,), 0.01))
    p["in_layers"] = [dict(weight=rnd((2 * H, H, K)), bias=rnd((2 * H,), 0.01))
                      for _ in range(L)]
    p["res_skip_layers"] = []
    for i in range(L):
        co = 2 * H if i < L - 1 else H
        p["res_skip_layers"].append(dict(weight=rnd((co, H, 1)), bias=rnd((co,), 0.01)))
    p["out_proj"] = dict(weight=rnd((C_out, H, 1)), bias=rnd((C_out,), 0.01))
    return p


def prepare_kernel_params(tp, cfg):
    """Pre-transpose / regroup / bf16-cast weights once, outside the forward."""
    H, L, K = cfg["hidden_channels"], cfg["n_layers"], cfg["kernel_size"]
    C_out, strides = cfg["out_channels"], cfg["strides"]
    kp = {}

    # pre_net: ConvTranspose1d(kernel==stride) == one matmul [C_in, s*C_out]
    pre = []
    for layer, s in zip(tp["pre_net"], strides):
        w = layer["weight"]                                   # [C_in, C_out, s]
        cin, cout, _ = w.shape
        w2 = jnp.transpose(w, (0, 2, 1)).reshape(cin, s * cout)
        b2 = jnp.tile(layer["bias"], s)
        pre.append((w2.astype(jnp.bfloat16), b2.astype(jnp.float32)))
    kp["pre_net"] = pre

    # WN in_layers: fused tanh/sigmoid halves, tap-major [L, K, H_in, 2H_out]
    kp["w_in"] = jnp.stack(
        [jnp.transpose(l["weight"], (2, 1, 0)) for l in tp["in_layers"]]
    ).astype(jnp.bfloat16)
    kp["b_in"] = jnp.stack(
        [l["bias"] for l in tp["in_layers"]])[:, None, :].astype(jnp.float32)

    # cond 1x1 conv regrouped per layer: [L, gin, 2H]
    wc = tp["cond_layer"]["weight"][:, :, 0]                  # [2HL, gin]
    kp["cond_w"] = jnp.transpose(wc.reshape(L, 2 * H, -1), (0, 2, 1)).astype(jnp.bfloat16)
    kp["cond_b"] = tp["cond_layer"]["bias"].reshape(L, 1, 2 * H).astype(jnp.float32)

    # WN res+skip 1x1 fused: [L, H_in, 2H_out] (res cols [:H], skip cols [H:]);
    # the last layer only has a skip branch -> zero-pad its res half.
    wrs, brs = [], []
    for i, layer in enumerate(tp["res_skip_layers"]):
        w = jnp.transpose(layer["weight"][:, :, 0])           # [H, C_out_l]
        b = layer["bias"]
        if w.shape[1] == H:                                   # last layer (skip only)
            w = jnp.concatenate([jnp.zeros((H, H), w.dtype), w], axis=1)
            b = jnp.concatenate([jnp.zeros((H,), b.dtype), b])
        wrs.append(w)
        brs.append(b)
    kp["w_rs"] = jnp.stack(wrs).astype(jnp.bfloat16)
    kp["b_rs"] = jnp.stack(brs)[:, None, :].astype(jnp.float32)

    # out_proj 1x1 conv, zero-padded to a lane-dense (multiple of 128) width
    np_out = _round_up(C_out, 128)
    wo = jnp.transpose(tp["out_proj"]["weight"][:, :, 0])     # [H, C_out]
    kp["w_out"] = jnp.pad(wo, ((0, 0), (0, np_out - C_out))).astype(jnp.bfloat16)
    kp["b_out"] = jnp.pad(tp["out_proj"]["bias"],
                          (0, np_out - C_out)).reshape(1, np_out).astype(jnp.float32)
    return kp


# --------------------------------------------------------------------------- #
# FVAEDecoder forward
# --------------------------------------------------------------------------- #

def fvae_decoder_forward(kernel_params, z_bct, x_mask_b1t, g_bct, *, cfg):
    """z: [B, latent, T_in]; x_mask: [B, 1, T]; g: [B, gin, T] -> [B, C_out, T]."""
    B = z_bct.shape[0]
    C_out = cfg["out_channels"]
    strides = cfg["strides"]

    # NCW -> channels-last (layout plumbing, once per call); g pre-cast to bf16
    # so the fused cond dot streams half the bytes.
    x = jnp.transpose(z_bct, (0, 2, 1)).astype(jnp.float32)          # [B, T_in, C_lat]
    g = jnp.transpose(g_bct, (0, 2, 1)).astype(jnp.bfloat16)         # [B, T, gin]
    mask = jnp.transpose(x_mask_b1t, (0, 2, 1)).astype(jnp.float32)  # [B, T, 1]

    # pre_net: each ConvTranspose1d(kernel==stride) is one tiled matmul + reshape
    for (w2, b2), s in zip(kernel_params["pre_net"], strides):
        b_, t_, c_ = x.shape
        y = matmul_bias(x.reshape(b_ * t_, c_), w2, b2)
        x = y.reshape(b_, t_ * s, -1)
    T = x.shape[1]
    assert T == mask.shape[1] == g.shape[1] and T % 8 == 0

    # pre_net output * mask (tiny XLA elementwise; kept out of the kernel so the
    # WN staging copy is a plain copy and the mask stays a per-tile (TM,1) block)
    x = x * mask

    # fused WN stack (+ per-layer cond) + masking + out_proj
    y = wn_decoder_fused(x, mask, g, kernel_params, cfg=cfg)
    y = y[:, :, :C_out]                          # drop out_proj lane padding
    return jnp.transpose(y, (0, 2, 1))           # back to [B, C_out, T]


# --------------------------------------------------------------------------- #
# Pure-JAX (f32) reference mirroring the PyTorch module, for validation
# --------------------------------------------------------------------------- #

def reference_forward(tp, z, x_mask, g, cfg):
    H, L, K = cfg["hidden_channels"], cfg["n_layers"], cfg["kernel_size"]
    pad = (K - 1) // 2
    B = z.shape[0]
    x = jnp.transpose(z, (0, 2, 1)).astype(jnp.float32)
    for layer, s in zip(tp["pre_net"], cfg["strides"]):
        w, b = layer["weight"], layer["bias"]                 # [Cin,Cout,s],[Cout]
        y = jnp.einsum("btc,cok->btko", x, w)
        x = y.reshape(B, -1, w.shape[1]) + b
    mask = jnp.transpose(x_mask, (0, 2, 1))
    gt = jnp.transpose(g, (0, 2, 1)).astype(jnp.float32)
    T = x.shape[1]
    x = x * mask
    cond = (jnp.einsum("btg,cg->btc", gt, tp["cond_layer"]["weight"][:, :, 0])
            + tp["cond_layer"]["bias"])
    output = jnp.zeros_like(x)
    for i in range(L):
        w_in = tp["in_layers"][i]["weight"]                   # [2H, H, K]
        b_in = tp["in_layers"][i]["bias"]
        xp = jnp.pad(x, ((0, 0), (pad, pad), (0, 0)))
        x_in = sum(jnp.einsum("bth,ch->btc", xp[:, k:k + T, :], w_in[:, :, k])
                   for k in range(K)) + b_in
        act = x_in + cond[:, :, i * 2 * H:(i + 1) * 2 * H]
        acts = jnp.tanh(act[..., :H]) * jax.nn.sigmoid(act[..., H:])
        rs = (jnp.einsum("bth,ch->btc", acts,
                         tp["res_skip_layers"][i]["weight"][:, :, 0])
              + tp["res_skip_layers"][i]["bias"])
        if i < L - 1:
            x = (x + rs[..., :H]) * mask
            output = output + rs[..., H:]
        else:
            output = output + rs
    output = output * mask * mask                # WN mask + decoder mask
    y = (jnp.einsum("bth,ch->btc", output, tp["out_proj"]["weight"][:, :, 0])
         + tp["out_proj"]["bias"])
    return jnp.transpose(y, (0, 2, 1))


# --------------------------------------------------------------------------- #

if __name__ == "__main__":
    cfg = dict(
        latent_channels=16,
        hidden_channels=128,   # lane-dense hidden width (128-lane vregs / MXU)
        out_channels=80,
        kernel_size=3,
        n_layers=4,
        gin_channels=128,
        strides=(4,),
    )
    B, T_in = 2, 64
    T = T_in * math.prod(cfg["strides"])         # 256 output frames

    key = jax.random.PRNGKey(0)
    k_par, kz, kg = jax.random.split(key, 3)
    torch_params = init_torch_params(k_par, cfg)
    kparams = prepare_kernel_params(torch_params, cfg)

    z = jax.random.normal(kz, (B, cfg["latent_channels"], T_in), jnp.float32)
    g = jax.random.normal(kg, (B, cfg["gin_channels"], T), jnp.float32)
    x_mask = jnp.ones((B, 1, T), jnp.float32).at[1, 0, 200:].set(0.0)

    fwd = jax.jit(functools.partial(fvae_decoder_forward, cfg=cfg))
    y = fwd(kparams, z, x_mask, g)
    jax.block_until_ready(y)

    assert y.shape == (B, cfg["out_channels"], T)
    assert bool(jnp.all(jnp.isfinite(y)))

    # loose tolerance: kernel uses bf16 MXU operands vs the f32 reference
    y_ref = reference_forward(torch_params, z, x_mask, g, cfg)
    err = float(jnp.max(jnp.abs(y - y_ref)))
    assert err < 1e-1, f"max abs err vs reference: {err}"

    print("KERNEL_OK")
</pallas_src>

<mosaic_0001>
module attributes {stable_mosaic.version = 11 : i64} {
  func.func @_matmul_bias_kernel(%arg0: i32, %arg1: memref<128x16xf32, #tpu.memory_space<vmem>>, %arg2: memref<16x512xbf16, #tpu.memory_space<vmem>>, %arg3: memref<1x512xf32, #tpu.memory_space<vmem>>, %arg4: memref<128x512xf32, #tpu.memory_space<vmem>>) attributes {dimension_semantics = [#tpu.dimension_semantics<parallel>], iteration_bounds = array<i64: 1>, scalar_prefetch = 0 : i64, scratch_operands = 0 : i64, tpu.core_type = #tpu.core_type<tc>, window_params = [{transform_indices = @transform_0, window_bounds = array<i64: 128, 16>}, {pipeline_mode = #tpu.pipeline_mode<synchronous>, transform_indices = @transform_1, window_bounds = array<i64: 16, 512>}, {pipeline_mode = #tpu.pipeline_mode<synchronous>, transform_indices = @transform_2, window_bounds = array<i64: 1, 512>}, {transform_indices = @transform_3, window_bounds = array<i64: 128, 512>}]} {
    %c0 = arith.constant 0 : index
    %c0_0 = arith.constant 0 : index
    %0 = vector.load %arg1[%c0, %c0_0] : memref<128x16xf32, #tpu.memory_space<vmem>>, vector<128x16xf32>
    %1 = arith.truncf %0 : vector<128x16xf32> to vector<128x16xbf16>
    %c0_1 = arith.constant 0 : index
    %c0_2 = arith.constant 0 : index
    %2 = vector.load %arg2[%c0_1, %c0_2] : memref<16x512xbf16, #tpu.memory_space<vmem>>, vector<16x512xbf16>
    %cst = arith.constant dense<0.000000e+00> : vector<128x512xf32>
    %3 = tpu.matmul %1, %2, %cst {dimension_numbers = #tpu.dot_dimension_numbers<[1], [0], [0], [1], [0, 0, 1, 1], [], []>} : vector<128x16xbf16>, vector<16x512xbf16>, vector<128x512xf32> -> vector<128x512xf32>
    %c0_3 = arith.constant 0 : index
    %c0_4 = arith.constant 0 : index
    %4 = vector.load %arg3[%c0_3, %c0_4] : memref<1x512xf32, #tpu.memory_space<vmem>>, vector<1x512xf32>
    %5 = vector.broadcast %4 : vector<1x512xf32> to vector<128x512xf32>
    %6 = arith.addf %3, %5 : vector<128x512xf32>
    %c0_5 = arith.constant 0 : index
    %c0_6 = arith.constant 0 : index
    %7 = vector.load %arg4[%c0_5, %c0_6] : memref<128x512xf32, #tpu.memory_space<vmem>>, vector<128x512xf32>
    tpu.vector_store %arg4[%c0_5, %c0_6], %6 {strides = array<i32>} : memref<128x512xf32, #tpu.memory_space<vmem>>, vector<128x512xf32>,
    return
  }
  func.func @transform_0(%arg0: i32) -> (i32, i32) {
    %c0_i32 = arith.constant 0 : i32
    %c0_i32_0 = arith.constant 0 : i32
    return %arg0, %c0_i32 : i32, i32
  }
  func.func @transform_1(%arg0: i32) -> (i32, i32) {
    %c0_i32 = arith.constant 0 : i32
    %c0_i32_0 = arith.constant 0 : i32
    %c0_i32_1 = arith.constant 0 : i32
    return %c0_i32, %c0_i32_0 : i32, i32
  }
  func.func @transform_2(%arg0: i32) -> (i32, i32) {
    %c0_i32 = arith.constant 0 : i32
    %c0_i32_0 = arith.constant 0 : i32
    %c0_i32_1 = arith.constant 0 : i32
    return %c0_i32, %c0_i32_0 : i32, i32
  }
  func.func @transform_3(%arg0: i32) -> (i32, i32) {
    %c0_i32 = arith.constant 0 : i32
    %c0_i32_0 = arith.constant 0 : i32
    return %arg0, %c0_i32 : i32, i32
  }
}

module attributes {stable_mosaic.version = 11 : i64} {
  func.func @_wn_fused_kernel(%arg0: i32, %arg1: i32, %arg2: i32, %arg3: memref<1x256x128xf32, #tpu.memory_space<vmem>>, %arg4: memref<1x256x1xf32, #tpu.memory_space<vmem>>, %arg5: memref<1x256x128xbf16, #tpu.memory_space<vmem>>, %arg6: memref<1x3x128x256xbf16, #tpu.memory_space<vmem>>, %arg7: memref<1x1x256xf32, #tpu.memory_space<vmem>>, %arg8: memref<1x128x256xbf16, #tpu.memory_space<vmem>>, %arg9: memref<1x1x256xf32, #tpu.memory_space<vmem>>, %arg10: memref<1x128x256xbf16, #tpu.memory_space<vmem>>, %arg11: memref<1x1x256xf32, #tpu.memory_space<vmem>>, %arg12: memref<128x128xbf16, #tpu.memory_space<vmem>>, %arg13: memref<1x128xf32, #tpu.memory_space<vmem>>, %arg14: memref<1x256x128xf32, #tpu.memory_space<vmem>>, %arg15: memref<544x128xf32, #tpu.memory_space<vmem>>, %arg16: memref<256x128xf32, #tpu.memory_space<vmem>>) attributes {dimension_semantics = [#tpu.dimension_semantics<parallel>, #tpu.dimension_semantics<arbitrary>, #tpu.dimension_semantics<arbitrary>], iteration_bounds = array<i64: 2, 4, 1>, scalar_prefetch = 0 : i64, scratch_operands = 2 : i64, tpu.core_type = #tpu.core_type<tc>, window_params = [{transform_indices = @transform_0, window_bounds = array<i64: 1, 256, 128>}, {transform_indices = @transform_1, window_bounds = array<i64: 1, 256, 1>}, {transform_indices = @transform_2, window_bounds = array<i64: 1, 256, 128>}, {transform_indices = @transform_3, window_bounds = array<i64: 1, 3, 128, 256>}, {transform_indices = @transform_4, window_bounds = array<i64: 1, 1, 256>}, {transform_indices = @transform_5, window_bounds = array<i64: 1, 128, 256>}, {transform_indices = @transform_6, window_bounds = array<i64: 1, 1, 256>}, {transform_indices = @transform_7, window_bounds = array<i64: 1, 128, 256>}, {transform_indices = @transform_8, window_bounds = array<i64: 1, 1, 256>}, {pipeline_mode = #tpu.pipeline_mode<synchronous>, transform_indices = @transform_9, window_bounds = array<i64: 128, 128>}, {pipeline_mode = #tpu.pipeline_mode<synchronous>, transform_indices = @transform_10, window_bounds = array<i64: 1, 128>}, {transform_indices = @transform_11, window_bounds = array<i64: 1, 256, 128>}]} {
    %c256_i32 = arith.constant 256 : i32
    %0 = arith.muli %arg2, %c256_i32 : i32
    %c0_i32 = arith.constant 0 : i32
    %1 = arith.cmpi eq, %arg1, %c0_i32 : i32
    %c0_i32_0 = arith.constant 0 : i32
    %2 = arith.cmpi eq, %arg2, %c0_i32_0 : i32
    %3 = arith.andi %1, %2 : i1
    %4 = arith.extui %3 : i1 to i32
    %c0_i32_1 = arith.constant 0 : i32
    %5 = arith.cmpi ne, %4, %c0_i32_1 : i32
    scf.if %5 {
      %cst_49 = arith.constant 0.000000e+00 : f32
      %80 = vector.broadcast %cst_49 : f32 to vector<8x128xf32>
      %c0_50 = arith.constant 0 : index
      %c0_51 = arith.constant 0 : index
      %81 = vector.load %arg15[%c0_50, %c0_51] : memref<544x128xf32, #tpu.memory_space<vmem>>, vector<8x128xf32>
      tpu.vector_store %arg15[%c0_50, %c0_51], %80 {strides = array<i32>} : memref<544x128xf32, #tpu.memory_space<vmem>>, vector<8x128xf32>,
      %c264 = arith.constant 264 : index
      %c0_52 = arith.constant 0 : index
      %82 = vector.load %arg15[%c264, %c0_52] : memref<544x128xf32, #tpu.memory_space<vmem>>, vector<8x128xf32>
      tpu.vector_store %arg15[%c264, %c0_52], %80 {strides = array<i32>} : memref<544x128xf32, #tpu.memory_space<vmem>>, vector<8x128xf32>,
      %c272 = arith.constant 272 : index
      %c0_53 = arith.constant 0 : index
      %83 = vector.load %arg15[%c272, %c0_53] : memref<544x128xf32, #tpu.memory_space<vmem>>, vector<8x128xf32>
      tpu.vector_store %arg15[%c272, %c0_53], %80 {strides = array<i32>} : memref<544x128xf32, #tpu.memory_space<vmem>>, vector<8x128xf32>,
      %c536 = arith.constant 536 : index
      %c0_54 = arith.constant 0 : index
      %84 = vector.load %arg15[%c536, %c0_54] : memref<544x128xf32, #tpu.memory_space<vmem>>, vector<8x128xf32>
      tpu.vector_store %arg15[%c536, %c0_54], %80 {strides = array<i32>} : memref<544x128xf32, #tpu.memory_space<vmem>>, vector<8x128xf32>,
      %c0_55 = arith.constant 0 : index
      %c0_56 = arith.constant 0 : index
      %c0_57 = arith.constant 0 : index
      %85 = vector.load %arg3[%c0_55, %c0_56, %c0_57] : memref<1x256x128xf32, #tpu.memory_space<vmem>>, vector<1x256x128xf32>
      %86 = vector.shape_cast %85 : vector<1x256x128xf32> to vector<256x128xf32>
      %c280 = arith.constant 280 : index
      %c0_58 = arith.constant 0 : index
      %87 = vector.load %arg15[%c280, %c0_58] : memref<544x128xf32, #tpu.memory_space<vmem>>, vector<256x128xf32>
      tpu.vector_store %arg15[%c280, %c0_58], %86 {strides = array<i32>} : memref<544x128xf32, #tpu.memory_space<vmem>>, vector<256x128xf32>,
    } else {
    }
    %c1_i32 = arith.constant 1 : i32
    %6 = arith.andi %arg1, %c1_i32 : i32
    %c1_i32_2 = arith.constant 1 : i32
    %7 = arith.subi %c1_i32_2, %6 : i32
    %c272_i32 = arith.constant 272 : i32
    %8 = arith.muli %7, %c272_i32 : i32
    %c1_i32_3 = arith.constant 1 : i32
    %9 = arith.andi %arg1, %c1_i32_3 : i32
    %c272_i32_4 = arith.constant 272 : i32
    %10 = arith.muli %9, %c272_i32_4 : i32
    %11 = arith.addi %8, %0 : i32
    %12 = tpu.assume_multiple %11, 8 : i32
    %13 = arith.index_cast %12 : i32 to index
    %c0 = arith.constant 0 : index
    %14 = vector.load %arg15[%13, %c0] : memref<544x128xf32, #tpu.memory_space<vmem>>, vector<272x128xf32>
    %15 = vector.extract_strided_slice %14 {offsets = [8, 0], sizes = [256, 128], strides = [1, 1]} : vector<272x128xf32> to vector<256x128xf32>
    %16 = arith.truncf %14 : vector<272x128xf32> to vector<272x128xbf16>
    %c0_5 = arith.constant 0 : index
    %c0_6 = arith.constant 0 : index
    %c0_7 = arith.constant 0 : index
    %17 = vector.load %arg5[%c0_5, %c0_6, %c0_7] : memref<1x256x128xbf16, #tpu.memory_space<vmem>>, vector<1x256x128xbf16>
    %18 = vector.shape_cast %17 : vector<1x256x128xbf16> to vector<256x128xbf16>
    %c0_8 = arith.constant 0 : index
    %c0_9 = arith.constant 0 : index
    %c0_10 = arith.constant 0 : index
    %19 = vector.load %arg8[%c0_8, %c0_9, %c0_10] : memref<1x128x256xbf16, #tpu.memory_space<vmem>>, vector<1x128x256xbf16>
    %20 = vector.shape_cast %19 : vector<1x128x256xbf16> to vector<128x256xbf16>
    %cst = arith.constant dense<0.000000e+00> : vector<256x256xf32>
    %21 = tpu.matmul %18, %20, %cst {dimension_numbers = #tpu.dot_dimension_numbers<[1], [0], [0], [1], [0, 0, 1, 1], [], []>} : vector<256x128xbf16>, vector<128x256xbf16>, vector<256x256xf32> -> vector<256x256xf32>
    %c0_11 = arith.constant 0 : index
    %c0_12 = arith.constant 0 : index
    %c0_13 = arith.constant 0 : index
    %22 = vector.load %arg9[%c0_11, %c0_12, %c0_13] : memref<1x1x256xf32, #tpu.memory_space<vmem>>, vector<1x1x256xf32>
    %23 = vector.shape_cast %22 : vector<1x1x256xf32> to vector<1x256xf32>
    %24 = vector.broadcast %23 : vector<1x256xf32> to vector<256x256xf32>
    %25 = arith.addf %21, %24 : vector<256x256xf32>
    %c0_14 = arith.constant 0 : index
    %c0_15 = arith.constant 0 : index
    %c0_16 = arith.constant 0 : index
    %26 = vector.load %arg7[%c0_14, %c0_15, %c0_16] : memref<1x1x256xf32, #tpu.memory_space<vmem>>, vector<1x1x256xf32>
    %27 = vector.shape_cast %26 : vector<1x1x256xf32> to vector<1x256xf32>
    %28 = vector.broadcast %27 : vector<1x256xf32> to vector<256x256xf32>
    %29 = arith.addf %25, %28 : vector<256x256xf32>
    %30 = vector.extract_strided_slice %16 {offsets = [7, 0], sizes = [256, 128], strides = [1, 1]} : vector<272x128xbf16> to vector<256x128xbf16>
    %c0_17 = arith.constant 0 : index
    %c0_18 = arith.constant 0 : index
    %c0_19 = arith.constant 0 : index
    %c0_20 = arith.constant 0 : index
    %31 = vector.load %arg6[%c0_17, %c0_18, %c0_19, %c0_20] : memref<1x3x128x256xbf16, #tpu.memory_space<vmem>>, vector<1x1x128x256xbf16>
    %32 = vector.shape_cast %31 : vector<1x1x128x256xbf16> to vector<128x256xbf16>
    %cst_21 = arith.constant dense<0.000000e+00> : vector<256x256xf32>
    %33 = tpu.matmul %30, %32, %cst_21 {dimension_numbers = #tpu.dot_dimension_numbers<[1], [0], [0], [1], [0, 0, 1, 1], [], []>} : vector<256x128xbf16>, vector<128x256xbf16>, vector<256x256xf32> -> vector<256x256xf32>
    %34 = arith.addf %29, %33 : vector<256x256xf32>
    %35 = vector.extract_strided_slice %16 {offsets = [8, 0], sizes = [256, 128], strides = [1, 1]} : vector<272x128xbf16> to vector<256x128xbf16>
    %c0_22 = arith.constant 0 : index
    %c1 = arith.constant 1 : index
    %c0_23 = arith.constant 0 : index
    %c0_24 = arith.constant 0 : index
    %36 = vector.load %arg6[%c0_22, %c1, %c0_23, %c0_24] : memref<1x3x128x256xbf16, #tpu.memory_space<vmem>>, vector<1x1x128x256xbf16>
    %37 = vector.shape_cast %36 : vector<1x1x128x256xbf16> to vector<128x256xbf16>
    %cst_25 = arith.constant dense<0.000000e+00> : vector<256x256xf32>
    %38 = tpu.matmul %35, %37, %cst_25 {dimension_numbers = #tpu.dot_dimension_numbers<[1], [0], [0], [1], [0, 0, 1, 1], [], []>} : vector<256x128xbf16>, vector<128x256xbf16>, vector<256x256xf32> -> vector<256x256xf32>
    %39 = arith.addf %34, %38 : vector<256x256xf32>
    %40 = vector.extract_strided_slice %16 {offsets = [9, 0], sizes = [256, 128], strides = [1, 1]} : vector<272x128xbf16> to vector<256x128xbf16>
    %c0_26 = arith.constant 0 : index
    %c2 = arith.constant 2 : index
    %c0_27 = arith.constant 0 : index
    %c0_28 = arith.constant 0 : index
    %41 = vector.load %arg6[%c0_26, %c2, %c0_27, %c0_28] : memref<1x3x128x256xbf16, #tpu.memory_space<vmem>>, vector<1x1x128x256xbf16>
    %42 = vector.shape_cast %41 : vector<1x1x128x256xbf16> to vector<128x256xbf16>
    %cst_29 = arith.constant dense<0.000000e+00> : vector<256x256xf32>
    %43 = tpu.matmul %40, %42, %cst_29 {dimension_numbers = #tpu.dot_dimension_numbers<[1], [0], [0], [1], [0, 0, 1, 1], [], []>} : vector<256x128xbf16>, vector<128x256xbf16>, vector<256x256xf32> -> vector<256x256xf32>
    %44 = arith.addf %39, %43 : vector<256x256xf32>
    %45 = vector.extract_strided_slice %44 {offsets = [0, 0], sizes = [256, 128], strides = [1, 1]} : vector<256x256xf32> to vector<256x128xf32>
    %46 = math.tanh %45 : vector<256x128xf32>
    %47 = vector.extract_strided_slice %44 {offsets = [0, 128], sizes = [256, 128], strides = [1, 1]} : vector<256x256xf32> to vector<256x128xf32>
    %48 = arith.negf %47 : vector<256x128xf32>
    %49 = math.exp %48 : vector<256x128xf32>
    %cst_30 = arith.constant 1.000000e+00 : f32
    %50 = vector.broadcast %cst_30 : f32 to vector<256x128xf32>
    %51 = arith.addf %50, %49 : vector<256x128xf32>
    %52 = arith.divf %50, %51 : vector<256x128xf32>
    %53 = arith.mulf %46, %52 : vector<256x128xf32>
    %54 = arith.truncf %53 : vector<256x128xf32> to vector<256x128xbf16>
    %c0_31 = arith.constant 0 : index
    %c0_32 = arith.constant 0 : index
    %c0_33 = arith.constant 0 : index
    %55 = vector.load %arg10[%c0_31, %c0_32, %c0_33] : memref<1x128x256xbf16, #tpu.memory_space<vmem>>, vector<1x128x256xbf16>
    %56 = vector.shape_cast %55 : vector<1x128x256xbf16> to vector<128x256xbf16>
    %cst_34 = arith.constant dense<0.000000e+00> : vector<256x256xf32>
    %57 = tpu.matmul %54, %56, %cst_34 {dimension_numbers = #tpu.dot_dimension_numbers<[1], [0], [0], [1], [0, 0, 1, 1], [], []>} : vector<256x128xbf16>, vector<128x256xbf16>, vector<256x256xf32> -> vector<256x256xf32>
    %c0_35 = arith.constant 0 : index
    %c0_36 = arith.constant 0 : index
    %c0_37 = arith.constant 0 : index
    %58 = vector.load %arg11[%c0_35, %c0_36, %c0_37] : memref<1x1x256xf32, #tpu.memory_space<vmem>>, vector<1x1x256xf32>
    %59 = vector.shape_cast %58 : vector<1x1x256xf32> to vector<1x256xf32>
    %60 = vector.broadcast %59 : vector<1x256xf32> to vector<256x256xf32>
    %61 = arith.addf %57, %60 : vector<256x256xf32>
    %c0_38 = arith.constant 0 : index
    %c0_39 = arith.constant 0 : index
    %c0_40 = arith.constant 0 : index
    %62 = vector.load %arg4[%c0_38, %c0_39, %c0_40] : memref<1x256x1xf32, #tpu.memory_space<vmem>>, vector<1x256x1xf32>
    %63 = vector.shape_cast %62 : vector<1x256x1xf32> to vector<256x1xf32>
    %c3_i32 = arith.constant 3 : i32
    %64 = arith.cmpi slt, %arg1, %c3_i32 : i32
    %65 = arith.extui %64 : i1 to i32
    %c0_i32_41 = arith.constant 0 : i32
    %66 = arith.cmpi ne, %65, %c0_i32_41 : i32
    scf.if %66 {
      %c8_i32 = arith.constant 8 : i32
      %80 = arith.addi %10, %c8_i32 : i32
      %81 = arith.addi %80, %0 : i32
      %82 = tpu.assume_multiple %81, 8 : i32
      %83 = vector.extract_strided_slice %61 {offsets = [0, 0], sizes = [256, 128], strides = [1, 1]} : vector<256x256xf32> to vector<256x128xf32>
      %84 = arith.addf %15, %83 : vector<256x128xf32>
      %85 = vector.broadcast %63 : vector<256x1xf32> to vector<256x128xf32>
      %86 = arith.mulf %84, %85 : vector<256x128xf32>
      %87 = arith.index_cast %82 : i32 to index
      %c0_49 = arith.constant 0 : index
      %88 = vector.load %arg15[%87, %c0_49] : memref<544x128xf32, #tpu.memory_space<vmem>>, vector<256x128xf32>
      tpu.vector_store %arg15[%87, %c0_49], %86 {strides = array<i32>} : memref<544x128xf32, #tpu.memory_space<vmem>>, vector<256x128xf32>,
    } else {
    }
    %67 = vector.extract_strided_slice %61 {offsets = [0, 128], sizes = [256, 128], strides = [1, 1]} : vector<256x256xf32> to vector<256x128xf32>
    %68 = tpu.assume_multiple %0, 8 : i32
    %c0_i32_42 = arith.constant 0 : i32
    %69 = arith.cmpi eq, %arg1, %c0_i32_42 : i32
    %70 = arith.extui %69 : i1 to i32
    %c0_i32_43 = arith.constant 0 : i32
    %71 = arith.cmpi ne, %70, %c0_i32_43 : i32
    scf.if %71 {
      %80 = arith.index_cast %68 : i32 to index
      %c0_49 = arith.constant 0 : index
      %81 = vector.load %arg16[%80, %c0_49] : memref<256x128xf32, #tpu.memory_space<vmem>>, vector<256x128xf32>
      tpu.vector_store %arg16[%80, %c0_49], %67 {strides = array<i32>} : memref<256x128xf32, #tpu.memory_space<vmem>>, vector<256x128xf32>,
    } else {
    }
    %c0_i32_44 = arith.constant 0 : i32
    %72 = arith.cmpi sgt, %arg1, %c0_i32_44 : i32
    %c3_i32_45 = arith.constant 3 : i32
    %73 = arith.cmpi slt, %arg1, %c3_i32_45 : i32
    %74 = arith.andi %72, %73 : i1
    %75 = arith.extui %74 : i1 to i32
    %c0_i32_46 = arith.constant 0 : i32
    %76 = arith.cmpi ne, %75, %c0_i32_46 : i32
    scf.if %76 {
      %80 = arith.index_cast %68 : i32 to index
      %c0_49 = arith.constant 0 : index
      %81 = vector.load %arg16[%80, %c0_49] : memref<256x128xf32, #tpu.memory_space<vmem>>, vector<256x128xf32>
      %82 = arith.addf %81, %67 : vector<256x128xf32>
      %83 = arith.index_cast %68 : i32 to index
      %c0_50 = arith.constant 0 : index
      %84 = vector.load %arg16[%83, %c0_50] : memref<256x128xf32, #tpu.memory_space<vmem>>, vector<256x128xf32>
      tpu.vector_store %arg16[%83, %c0_50], %82 {strides = array<i32>} : memref<256x128xf32, #tpu.memory_space<vmem>>, vector<256x128xf32>,
    } else {
    }
    %c3_i32_47 = arith.constant 3 : i32
    %77 = arith.cmpi eq, %arg1, %c3_i32_47 : i32
    %78 = arith.extui %77 : i1 to i32
    %c0_i32_48 = arith.constant 0 : i32
    %79 = arith.cmpi ne, %78, %c0_i32_48 : i32
    scf.if %79 {
      %80 = arith.index_cast %68 : i32 to index
      %c0_49 = arith.constant 0 : index
      %81 = vector.load %arg16[%80, %c0_49] : memref<256x128xf32, #tpu.memory_space<vmem>>, vector<256x128xf32>
      %82 = arith.addf %81, %67 : vector<256x128xf32>
      %83 = vector.broadcast %63 : vector<256x1xf32> to vector<256x128xf32>
      %84 = arith.mulf %82, %83 : vector<256x128xf32>
      %85 = arith.truncf %84 : vector<256x128xf32> to vector<256x128xbf16>
      %c0_50 = arith.constant 0 : index
      %c0_51 = arith.constant 0 : index
      %86 = vector.load %arg12[%c0_50, %c0_51] : memref<128x128xbf16, #tpu.memory_space<vmem>>, vector<128x128xbf16>
      %cst_52 = arith.constant dense<0.000000e+00> : vector<256x128xf32>
      %87 = tpu.matmul %85, %86, %cst_52 {dimension_numbers = #tpu.dot_dimension_numbers<[1], [0], [0], [1], [0, 0, 1, 1], [], []>} : vector<256x128xbf16>, vector<128x128xbf16>, vector<256x128xf32> -> vector<256x128xf32>
      %c0_53 = arith.constant 0 : index
      %c0_54 = arith.constant 0 : index
      %88 = vector.load %arg13[%c0_53, %c0_54] : memref<1x128xf32, #tpu.memory_space<vmem>>, vector<1x128xf32>
      %89 = vector.broadcast %88 : vector<1x128xf32> to vector<256x128xf32>
      %90 = arith.addf %87, %89 : vector<256x128xf32>
      %c0_55 = arith.constant 0 : index
      %c0_56 = arith.constant 0 : index
      %c0_57 = arith.constant 0 : index
      %91 = vector.load %arg14[%c0_55, %c0_56, %c0_57] : memref<1x256x128xf32, #tpu.memory_space<vmem>>, vector<1x256x128xf32>
      %92 = vector.shape_cast %91 : vector<1x256x128xf32> to vector<256x128xf32>
      %93 = vector.shape_cast %90 : vector<256x128xf32> to vector<1x256x128xf32>
      tpu.vector_store %arg14[%c0_55, %c0_56, %c0_57], %93 {strides = array<i32>} : memref<1x256x128xf32, #tpu.memory_space<vmem>>, vector<1x256x128xf32>,
    } else {
    }
    return
  }
  func.func @transform_0(%arg0: i32, %arg1: i32, %arg2: i32) -> (i32, i32, i32) {
    %c0_i32 = arith.constant 0 : i32
    %c0_i32_0 = arith.constant 0 : i32
    %c0_i32_1 = arith.constant 0 : i32
    return %arg0, %c0_i32, %c0_i32_0 : i32, i32, i32
  }
  func.func @transform_1(%arg0: i32, %arg1: i32, %arg2: i32) -> (i32, i32, i32) {
    %c0_i32 = arith.constant 0 : i32
    %c0_i32_0 = arith.constant 0 : i32
    return %arg0, %arg2, %c0_i32 : i32, i32, i32
  }
  func.func @transform_2(%arg0: i32, %arg1: i32, %arg2: i32) -> (i32, i32, i32) {
    %c0_i32 = arith.constant 0 : i32
    %c0_i32_0 = arith.constant 0 : i32
    return %arg0, %arg2, %c0_i32 : i32, i32, i32
  }
  func.func @transform_3(%arg0: i32, %arg1: i32, %arg2: i32) -> (i32, i32, i32, i32) {
    %c0_i32 = arith.constant 0 : i32
    %c0_i32_0 = arith.constant 0 : i32
    %c0_i32_1 = arith.constant 0 : i32
    %c0_i32_2 = arith.constant 0 : i32
    return %arg1, %c0_i32, %c0_i32_0, %c0_i32_1 : i32, i32, i32, i32
  }
  func.func @transform_4(%arg0: i32, %arg1: i32, %arg2: i32) -> (i32, i32, i32) {
    %c0_i32 = arith.constant 0 : i32
    %c0_i32_0 = arith.constant 0 : i32
    %c0_i32_1 = arith.constant 0 : i32
    return %arg1, %c0_i32, %c0_i32_0 : i32, i32, i32
  }
  func.func @transform_5(%arg0: i32, %arg1: i32, %arg2: i32) -> (i32, i32, i32) {
    %c0_i32 = arith.constant 0 : i32
    %c0_i32_0 = arith.constant 0 : i32
    %c0_i32_1 = arith.constant 0 : i32
    return %arg1, %c0_i32, %c0_i32_0 : i32, i32, i32
  }
  func.func @transform_6(%arg0: i32, %arg1: i32, %arg2: i32) -> (i32, i32, i32) {
    %c0_i32 = arith.constant 0 : i32
    %c0_i32_0 = arith.constant 0 : i32
    %c0_i32_1 = arith.constant 0 : i32
    return %arg1, %c0_i32, %c0_i32_0 : i32, i32, i32
  }
  func.func @transform_7(%arg0: i32, %arg1: i32, %arg2: i32) -> (i32, i32, i32) {
    %c0_i32 = arith.constant 0 : i32
    %c0_i32_0 = arith.constant 0 : i32
    %c0_i32_1 = arith.constant 0 : i32
    return %arg1, %c0_i32, %c0_i32_0 : i32, i32, i32
  }
  func.func @transform_8(%arg0: i32, %arg1: i32, %arg2: i32) -> (i32, i32, i32) {
    %c0_i32 = arith.constant 0 : i32
    %c0_i32_0 = arith.constant 0 : i32
    %c0_i32_1 = arith.constant 0 : i32
    return %arg1, %c0_i32, %c0_i32_0 : i32, i32, i32
  }
  func.func @transform_9(%arg0: i32, %arg1: i32, %arg2: i32) -> (i32, i32) {
    %c0_i32 = arith.constant 0 : i32
    %c0_i32_0 = arith.constant 0 : i32
    %c0_i32_1 = arith.constant 0 : i32
    return %c0_i32, %c0_i32_0 : i32, i32
  }
  func.func @transform_10(%arg0: i32, %arg1: i32, %arg2: i32) -> (i32, i32) {
    %c0_i32 = arith.constant 0 : i32
    %c0_i32_0 = arith.constant 0 : i32
    %c0_i32_1 = arith.constant 0 : i32
    return %c0_i32, %c0_i32_0 : i32, i32
  }
  func.func @transform_11(%arg0: i32, %arg1: i32, %arg2: i32) -> (i32, i32, i32) {
    %c3_i32 = arith.constant 3 : i32
    %0 = arith.cmpi eq, %arg1, %c3_i32 : i32
    %c0_i32 = arith.constant 0 : i32
    %1 = arith.select %0, %arg2, %c0_i32 : i32
    %c0_i32_0 = arith.constant 0 : i32
    %c0_i32_1 = arith.constant 0 : i32
    return %arg0, %1, %c0_i32_0 : i32, i32, i32
  }
}

</mosaic_0001>

<llo_original>
// kernel: fvae_decoder_forward.2
$region0: #{fvae_decoder_forward.2}
  #allocation0 [shape = 'u32[]', space=smem, size = 0x4, offset = 0x4, fixed_abs, tag = 'smem constant byte address 0x4 - core index']
  #allocation1 [shape = 'u32[144,128]{1,0:T(1,128)}', space=vmem, size = 0x12000, scoped, tag = 'internal scratch']
  %s0 = inlined_call_operand.vmem [shape: f32[128,16], index: 0, kind: input, shape index: {}]
  %s1 = inlined_call_operand.vmem [shape: bf16[16,512], index: 1, kind: input, shape index: {}]
  %s2 = inlined_call_operand.vmem [shape: f32[1,512], index: 2, kind: input, shape index: {}]
  %s3 = inlined_call_operand.vmem [shape: f32[128,512], index: 3, kind: output, shape index: {}]
  %s4 = sld [smem:[#allocation0]]
  $region22: #{fvae_decoder_forward.2} parent=0
    _
  %s6 = ssub.s32 1, %s4
  %s7 = scalar_select 0, %s6, %s4
  // Predicated region
  $region2: #{fvae_decoder_forward.2} parent=0 // pred_check
    _
  $region3: #{fvae_decoder_forward.2} parent=0 // pred_check_branch
    %9 = sbr.rel (0) target = $region5
  $region4: #{fvae_decoder_forward.2} parent=0 // pred_region
    _
  $region5: #{fvae_decoder_forward.2} parent=0 // pred_fallthru
    _
  // Predicated region
  $region6: #{fvae_decoder_forward.2} parent=0 // pred_check
    _
  $region7: #{fvae_decoder_forward.2} parent=0 // pred_check_branch
    %11 = sbr.rel (0) target = $region9
  $region8: #{fvae_decoder_forward.2} parent=0 // pred_region
    _
  $region9: #{fvae_decoder_forward.2} parent=0 // pred_fallthru
    _
  // Predicated region
  $region10: #{fvae_decoder_forward.2} parent=0 // pred_check
    _
  $region11: #{fvae_decoder_forward.2} parent=0 // pred_check_branch
    %13 = sbr.rel (0) target = $region13
  $region12: #{fvae_decoder_forward.2} parent=0 // pred_region
    _
  $region13: #{fvae_decoder_forward.2} parent=0 // pred_fallthru
    _
  %v15 = vld [vmem:[%s0] sm:$0xff]
  %v16 = vld [vmem:[%s0 + $0x8] sm:$0xff]
  %v17 = vld [vmem:[%s0 + $0x10] sm:$0xff]
  %v18 = vld [vmem:[%s0 + $0x18] sm:$0xff]
  %v19 = vld [vmem:[%s0 + $0x20] sm:$0xff]
  %v20 = vld [vmem:[%s0 + $0x28] sm:$0xff]
  %v21 = vld [vmem:[%s0 + $0x30] sm:$0xff]
  %v22 = vld [vmem:[%s0 + $0x38] sm:$0xff]
  %v23 = vld [vmem:[%s0 + $0x40] sm:$0xff]
  %v24 = vld [vmem:[%s0 + $0x48] sm:$0xff]
  %v25 = vld [vmem:[%s0 + $0x50] sm:$0xff]
  %v26 = vld [vmem:[%s0 + $0x58] sm:$0xff]
  %v27 = vld [vmem:[%s0 + $0x60] sm:$0xff]
  %v28 = vld [vmem:[%s0 + $0x68] sm:$0xff]
  %v29 = vld [vmem:[%s0 + $0x70] sm:$0xff]
  %v30 = vld [vmem:[%s0 + $0x78] sm:$0xff]
  %v31 = vpack.c.bf16 %v16, %v15
  %v32 = vpack.c.bf16 %v18, %v17
  %v33 = vpack.c.bf16 %v20, %v19
  %v34 = vpack.c.bf16 %v22, %v21
  %v35 = vpack.c.bf16 %v24, %v23
  %v36 = vpack.c.bf16 %v26, %v25
  %v37 = vpack.c.bf16 %v28, %v27
  %v38 = vpack.c.bf16 %v30, %v29
  %v39 = vld [vmem:[%s1] sm:$0xff]
  %v40 = vld [vmem:[%s1 + $0x8] sm:$0xff]
  %v41 = vld [vmem:[%s1 + $0x10] sm:$0xff]
  %v42 = vld [vmem:[%s1 + $0x18] sm:$0xff]
  %v43 = vld [vmem:[%s2] sm:$0xf]
  %v45 = vlaneseq
  %v46 = vshrl.u32 %v45, 7
  %v47 = vsub.s32 0, %v46
  %v48 = vrot.slane %v43, %v47
  %v49 = vlaneseq
  %v50 = vshrl.u32 %v49, 7
  %v51 = vsub.s32 1, %v50
  %v52 = vrot.slane %v43, %v51
  %v53 = vlaneseq
  %v54 = vshrl.u32 %v53, 7
  %v55 = vsub.s32 2, %v54
  %v56 = vrot.slane %v43, %v55
  %v57 = vlaneseq
  %v58 = vshrl.u32 %v57, 7
  %v59 = vsub.s32 3, %v58
  %v60 = vrot.slane %v43, %v59
  %v69 = vunpack.c.l.b16 %v39
  %v70 = vunpack.c.h.b16 %v39
  %v71 = vunpack.c.l.b16 %v40
  %v72 = vunpack.c.h.b16 %v40
  %v73 = vunpack.c.l.b16 %v41
  %v74 = vunpack.c.h.b16 %v41
  %v75 = vunpack.c.l.b16 %v42
  %v76 = vunpack.c.h.b16 %v42
  %v77 = vpack.c.b16 %v73, %v69
  %v78 = vpack.c.b16 %v74, %v70
  %v79 = vpack.c.b16 %v75, %v71
  %v80 = vpack.c.b16 %v76, %v72
  %vm85 = vcmask 130048
  %v87 = vsel %vm85, %v31, 0
  %v90 = vsel %vm85, %v32, 0
  %v93 = vsel %vm85, %v33, 0
  %v96 = vsel %vm85, %v34, 0
  %v99 = vsel %vm85, %v35, 0
  %v102 = vsel %vm85, %v36, 0
  %v105 = vsel %vm85, %v37, 0
  %v108 = vsel %vm85, %v38, 0
  %110 = vmatprep.subr.bf16.mxu0 0
  %111 = vmatpush1.bf16.msra.mxu0 0
  %112 = vmatprep.subr.bf16.mxu0 0
  %113 = vmatpush1.bf16.msra.mxu0 0
  %114 = vmatprep.subr.bf16.mxu0 0
  %115 = vmatpush1.bf16.msra.mxu0 0
  %116 = vmatprep.subr.bf16.mxu0 0
  %117 = vmatpush1.bf16.msra.mxu0 0
  %118 = vmatprep.subr.bf16.mxu0 0
  %119 = vmatpush1.bf16.msra.mxu0 0
  %120 = vmatprep.subr.bf16.mxu0 0
  %121 = vmatpush1.bf16.msra.mxu0 0
  %122 = vmatprep.subr.bf16.mxu0 0
  %123 = vmatpush1.bf16.msra.mxu0 0
  %124 = vmatprep.subr.bf16.mxu0 %v78
  %125 = vmatpush1.bf16.msra.mxu0 %v77
  %126 = vmatprep.subr.bf16.mxu0 0
  %127 = vmatpush2.bf16.msra.mxu0 0
  %128 = vmatprep.subr.bf16.mxu0 0
  %129 = vmatpush2.bf16.msra.mxu0 0
  %130 = vmatprep.subr.bf16.mxu0 0
  %131 = vmatpush2.bf16.msra.mxu0 0
  %132 = vmatprep.subr.bf16.mxu0 0
  %133 = vmatpush2.bf16.msra.mxu0 0
  %134 = vmatprep.subr.bf16.mxu0 0
  %135 = vmatpush2.bf16.msra.mxu0 0
  %136 = vmatprep.subr.bf16.mxu0 0
  %137 = vmatpush2.bf16.msra.mxu0 0
  %138 = vmatprep.subr.bf16.mxu0 0
  %139 = vmatpush2.bf16.msra.mxu0 0
  %140 = vmatprep.subr.bf16.mxu0 0
  %141 = vmatpush2.bf16.msra.mxu0 0
  %142 = vmatprep.mubr.bf16.mxu0 0
  %143 = vmatmul.mubr.bf16.gmra.mxu0 %v87
  %v144 = vpop.f32.mrf.mxu0
  %v145 = vadd.f32 %v48, %v144
  %v146 = vpop.f32.mrf.mxu0
  %v147 = vadd.f32 %v52, %v146
  %v148 = vpop.f32.mrf.mxu0
  %v149 = vadd.f32 %v48, %v148
  %v150 = vpop.f32.mrf.mxu0
  %v151 = vadd.f32 %v52, %v150
  %152 = vmatprep.mubr.bf16.mxu0 0
  %153 = vmatmul.mubr.bf16.gmra.mxu0 %v90
  %v154 = vpop.f32.mrf.mxu0
  %v155 = vadd.f32 %v48, %v154
  %v156 = vpop.f32.mrf.mxu0
  %v157 = vadd.f32 %v52, %v156
  %v158 = vpop.f32.mrf.mxu0
  %v159 = vadd.f32 %v48, %v158
  %v160 = vpop.f32.mrf.mxu0
  %v161 = vadd.f32 %v52, %v160
  %162 = vmatprep.mubr.bf16.mxu0 0
  %163 = vmatmul.mubr.bf16.gmra.mxu0 %v93
  %v164 = vpop.f32.mrf.mxu0
  %v165 = vadd.f32 %v48, %v164
  %v166 = vpop.f32.mrf.mxu0
  %v167 = vadd.f32 %v52, %v166
  %v168 = vpop.f32.mrf.mxu0
  %v169 = vadd.f32 %v48, %v168
  %v170 = vpop.f32.mrf.mxu0
  %v171 = vadd.f32 %v52, %v170
  %172 = vmatprep.mubr.bf16.mxu0 0
  %173 = vmatmul.mubr.bf16.gmra.mxu0 %v96
  %v174 = vpop.f32.mrf.mxu0
  %v175 = vadd.f32 %v48, %v174
  %v176 = vpop.f32.mrf.mxu0
  %v177 = vadd.f32 %v52, %v176
  %v178 = vpop.f32.mrf.mxu0
  %v179 = vadd.f32 %v48, %v178
  %v180 = vpop.f32.mrf.mxu0
  %v181 = vadd.f32 %v52, %v180
  %182 = vmatprep.mubr.bf16.mxu0 0
  %183 = vmatmul.mubr.bf16.gmra.mxu0 %v99
  %v184 = vpop.f32.mrf.mxu0
  %v185 = vadd.f32 %v48, %v184
  %v186 = vpop.f32.mrf.mxu0
  %v187 = vadd.f32 %v52, %v186
  %v188 = vpop.f32.mrf.mxu0
  %v189 = vadd.f32 %v48, %v188
  %v190 = vpop.f32.mrf.mxu0
  %v191 = vadd.f32 %v52, %v190
  %192 = vmatprep.mubr.bf16.mxu0 0
  %193 = vmatmul.mubr.bf16.gmra.mxu0 %v102
  %v194 = vpop.f32.mrf.mxu0
  %v195 = vadd.f32 %v48, %v194
  %v196 = vpop.f32.mrf.mxu0
  %v197 = vadd.f32 %v52, %v196
  %v198 = vpop.f32.mrf.mxu0
  %v199 = vadd.f32 %v48, %v198
  %v200 = vpop.f32.mrf.mxu0
  %v201 = vadd.f32 %v52, %v200
  %202 = vmatprep.mubr.bf16.mxu0 0
  %203 = vmatmul.mubr.bf16.gmra.mxu0 %v105
  %v204 = vpop.f32.mrf.mxu0
  %v205 = vadd.f32 %v48, %v204
  %v206 = vpop.f32.mrf.mxu0
  %v207 = vadd.f32 %v52, %v206
  %v208 = vpop.f32.mrf.mxu0
  %v209 = vadd.f32 %v48, %v208
  %v210 = vpop.f32.mrf.mxu0
  %v211 = vadd.f32 %v52, %v210
  %212 = vmatprep.mubr.bf16.mxu0 0
  %213 = vmatmul.mubr.bf16.gmra.mxu0 %v108
  %v214 = vpop.f32.mrf.mxu0
  %v215 = vadd.f32 %v48, %v214
  %v216 = vpop.f32.mrf.mxu0
  %v217 = vadd.f32 %v52, %v216
  %v218 = vpop.f32.mrf.mxu0
  %v219 = vadd.f32 %v48, %v218
  %v220 = vpop.f32.mrf.mxu0
  %v221 = vadd.f32 %v52, %v220
  %222 = vdwg.mxu0
  %223 = vmatprep.subr.bf16.mxu0 0
  %224 = vmatpush1.bf16.msra.mxu0 0
  %225 = vmatprep.subr.bf16.mxu0 0
  %226 = vmatpush1.bf16.msra.mxu0 0
  %227 = vmatprep.subr.bf16.mxu0 0
  %228 = vmatpush1.bf16.msra.mxu0 0
  %229 = vmatprep.subr.bf16.mxu0 0
  %230 = vmatpush1.bf16.msra.mxu0 0
  %231 = vmatprep.subr.bf16.mxu0 0
  %232 = vmatpush1.bf16.msra.mxu0 0
  %233 = vmatprep.subr.bf16.mxu0 0
  %234 = vmatpush1.bf16.msra.mxu0 0
  %235 = vmatprep.subr.bf16.mxu0 0
  %236 = vmatpush1.bf16.msra.mxu0 0
  %237 = vmatprep.subr.bf16.mxu0 %v80
  %238 = vmatpush1.bf16.msra.mxu0 %v79
  %239 = vmatprep.subr.bf16.mxu0 0
  %240 = vmatpush2.bf16.msra.mxu0 0
  %241 = vmatprep.subr.bf16.mxu0 0
  %242 = vmatpush2.bf16.msra.mxu0 0
  %243 = vmatprep.subr.bf16.mxu0 0
  %244 = vmatpush2.bf16.msra.mxu0 0
  %245 = vmatprep.subr.bf16.mxu0 0
  %246 = vmatpush2.bf16.msra.mxu0 0
  %247 = vmatprep.subr.bf16.mxu0 0
  %248 = vmatpush2.bf16.msra.mxu0 0
  %249 = vmatprep.subr.bf16.mxu0 0
  %250 = vmatpush2.bf16.msra.mxu0 0
  %251 = vmatprep.subr.bf16.mxu0 0
  %252 = vmatpush2.bf16.msra.mxu0 0
  %253 = vmatprep.subr.bf16.mxu0 0
  %254 = vmatpush2.bf16.msra.mxu0 0
  %255 = vmatprep.mubr.bf16.mxu0 0
  %256 = vmatmul.mubr.bf16.gmra.mxu0 %v87
  %v257 = vpop.f32.mrf.mxu0
  %v258 = vadd.f32 %v56, %v257
  %v259 = vpop.f32.mrf.mxu0
  %v260 = vadd.f32 %v60, %v259
  %v261 = vpop.f32.mrf.mxu0
  %v262 = vadd.f32 %v56, %v261
  %v263 = vpop.f32.mrf.mxu0
  %v264 = vadd.f32 %v60, %v263
  %265 = vmatprep.mubr.bf16.mxu0 0
  %266 = vmatmul.mubr.bf16.gmra.mxu0 %v90
  %v267 = vpop.f32.mrf.mxu0
  %v268 = vadd.f32 %v56, %v267
  %v269 = vpop.f32.mrf.mxu0
  %v270 = vadd.f32 %v60, %v269
  %v271 = vpop.f32.mrf.mxu0
  %v272 = vadd.f32 %v56, %v271
  %v273 = vpop.f32.mrf.mxu0
  %v274 = vadd.f32 %v60, %v273
  %275 = vmatprep.mubr.bf16.mxu0 0
  %276 = vmatmul.mubr.bf16.gmra.mxu0 %v93
  %v277 = vpop.f32.mrf.mxu0
  %v278 = vadd.f32 %v56, %v277
  %v279 = vpop.f32.mrf.mxu0
  %v280 = vadd.f32 %v60, %v279
  %v281 = vpop.f32.mrf.mxu0
  %v282 = vadd.f32 %v56, %v281
  %v283 = vpop.f32.mrf.mxu0
  %v284 = vadd.f32 %v60, %v283
  %285 = vmatprep.mubr.bf16.mxu0 0
  %286 = vmatmul.mubr.bf16.gmra.mxu0 %v96
  %v287 = vpop.f32.mrf.mxu0
  %v288 = vadd.f32 %v56, %v287
  %v289 = vpop.f32.mrf.mxu0
  %v290 = vadd.f32 %v60, %v289
  %v291 = vpop.f32.mrf.mxu0
  %v292 = vadd.f32 %v56, %v291
  %v293 = vpop.f32.mrf.mxu0
  %v294 = vadd.f32 %v60, %v293
  %295 = vmatprep.mubr.bf16.mxu0 0
  %296 = vmatmul.mubr.bf16.gmra.mxu0 %v99
  %v297 = vpop.f32.mrf.mxu0
  %v298 = vadd.f32 %v56, %v297
  %v299 = vpop.f32.mrf.mxu0
  %v300 = vadd.f32 %v60, %v299
  %v301 = vpop.f32.mrf.mxu0
  %v302 = vadd.f32 %v56, %v301
  %v303 = vpop.f32.mrf.mxu0
  %v304 = vadd.f32 %v60, %v303
  %305 = vmatprep.mubr.bf16.mxu0 0
  %306 = vmatmul.mubr.bf16.gmra.mxu0 %v102
  %v307 = vpop.f32.mrf.mxu0
  %v308 = vadd.f32 %v56, %v307
  %v309 = vpop.f32.mrf.mxu0
  %v310 = vadd.f32 %v60, %v309
  %v311 = vpop.f32.mrf.mxu0
  %v312 = vadd.f32 %v56, %v311
  %v313 = vpop.f32.mrf.mxu0
  %v314 = vadd.f32 %v60, %v313
  %315 = vmatprep.mubr.bf16.mxu0 0
  %316 = vmatmul.mubr.bf16.gmra.mxu0 %v105
  %v317 = vpop.f32.mrf.mxu0
  %v318 = vadd.f32 %v56, %v317
  %v319 = vpop.f32.mrf.mxu0
  %v320 = vadd.f32 %v60, %v319
  %v321 = vpop.f32.mrf.mxu0
  %v322 = vadd.f32 %v56, %v321
  %v323 = vpop.f32.mrf.mxu0
  %v324 = vadd.f32 %v60, %v323
  %325 = vmatprep.mubr.bf16.mxu0 0
  %326 = vmatmul.mubr.bf16.gmra.mxu0 %v108
  %v327 = vpop.f32.mrf.mxu0
  %v328 = vadd.f32 %v56, %v327
  %v329 = vpop.f32.mrf.mxu0
  %v330 = vadd.f32 %v60, %v329
  %v331 = vpop.f32.mrf.mxu0
  %v332 = vadd.f32 %v56, %v331
  %v333 = vpop.f32.mrf.mxu0
  %v334 = vadd.f32 %v60, %v333
  %335 = vdwg.mxu0
  %336 = vst [vmem:[%s3] sm:$0xff] %v145
  %337 = vst [vmem:[%s3 + $0x8] sm:$0xff] %v147
  %338 = vst [vmem:[%s3 + $0x10] sm:$0xff] %v258
  %339 = vst [vmem:[%s3 + $0x18] sm:$0xff] %v260
  %340 = vst [vmem:[%s3 + $0x20] sm:$0xff] %v149
  %341 = vst [vmem:[%s3 + $0x28] sm:$0xff] %v151
  %342 = vst [vmem:[%s3 + $0x30] sm:$0xff] %v262
  %343 = vst [vmem:[%s3 + $0x38] sm:$0xff] %v264
  %344 = vst [vmem:[%s3 + $0x40] sm:$0xff] %v155
  %345 = vst [vmem:[%s3 + $0x48] sm:$0xff] %v157
  %346 = vst [vmem:[%s3 + $0x50] sm:$0xff] %v268
  %347 = vst [vmem:[%s3 + $0x58] sm:$0xff] %v270
  %348 = vst [vmem:[%s3 + $0x60] sm:$0xff] %v159
  %349 = vst [vmem:[%s3 + $0x68] sm:$0xff] %v161
  %350 = vst [vmem:[%s3 + $0x70] sm:$0xff] %v272
  %351 = vst [vmem:[%s3 + $0x78] sm:$0xff] %v274
  %352 = vst [vmem:[%s3 + $0x80] sm:$0xff] %v165
  %353 = vst [vmem:[%s3 + $0x88] sm:$0xff] %v167
  %354 = vst [vmem:[%s3 + $0x90] sm:$0xff] %v278
  %355 = vst [vmem:[%s3 + $0x98] sm:$0xff] %v280
  %356 = vst [vmem:[%s3 + $0xa0] sm:$0xff] %v169
  %357 = vst [vmem:[%s3 + $0xa8] sm:$0xff] %v171
  %358 = vst [vmem:[%s3 + $0xb0] sm:$0xff] %v282
  %359 = vst [vmem:[%s3 + $0xb8] sm:$0xff] %v284
  %360 = vst [vmem:[%s3 + $0xc0] sm:$0xff] %v175
  %361 = vst [vmem:[%s3 + $0xc8] sm:$0xff] %v177
  %362 = vst [vmem:[%s3 + $0xd0] sm:$0xff] %v288
  %363 = vst [vmem:[%s3 + $0xd8] sm:$0xff] %v290
  %364 = vst [vmem:[%s3 + $0xe0] sm:$0xff] %v179
  %365 = vst [vmem:[%s3 + $0xe8] sm:$0xff] %v181
  %366 = vst [vmem:[%s3 + $0xf0] sm:$0xff] %v292
  %367 = vst [vmem:[%s3 + $0xf8] sm:$0xff] %v294
  %368 = vst [vmem:[%s3 + $0x100] sm:$0xff] %v185
  %369 = vst [vmem:[%s3 + $0x108] sm:$0xff] %v187
  %370 = vst [vmem:[%s3 + $0x110] sm:$0xff] %v298
  %371 = vst [vmem:[%s3 + $0x118] sm:$0xff] %v300
  %372 = vst [vmem:[%s3 + $0x120] sm:$0xff] %v189
  %373 = vst [vmem:[%s3 + $0x128] sm:$0xff] %v191
  %374 = vst [vmem:[%s3 + $0x130] sm:$0xff] %v302
  %375 = vst [vmem:[%s3 + $0x138] sm:$0xff] %v304
  %376 = vst [vmem:[%s3 + $0x140] sm:$0xff] %v195
  %377 = vst [vmem:[%s3 + $0x148] sm:$0xff] %v197
  %378 = vst [vmem:[%s3 + $0x150] sm:$0xff] %v308
  %379 = vst [vmem:[%s3 + $0x158] sm:$0xff] %v310
  %380 = vst [vmem:[%s3 + $0x160] sm:$0xff] %v199
  %381 = vst [vmem:[%s3 + $0x168] sm:$0xff] %v201
  %382 = vst [vmem:[%s3 + $0x170] sm:$0xff] %v312
  %383 = vst [vmem:[%s3 + $0x178] sm:$0xff] %v314
  %384 = vst [vmem:[%s3 + $0x180] sm:$0xff] %v205
  %385 = vst [vmem:[%s3 + $0x188] sm:$0xff] %v207
  %386 = vst [vmem:[%s3 + $0x190] sm:$0xff] %v318
  %387 = vst [vmem:[%s3 + $0x198] sm:$0xff] %v320
  %388 = vst [vmem:[%s3 + $0x1a0] sm:$0xff] %v209
  %389 = vst [vmem:[%s3 + $0x1a8] sm:$0xff] %v211
  %390 = vst [vmem:[%s3 + $0x1b0] sm:$0xff] %v322
  %391 = vst [vmem:[%s3 + $0x1b8] sm:$0xff] %v324
  %392 = vst [vmem:[%s3 + $0x1c0] sm:$0xff] %v215
  %393 = vst [vmem:[%s3 + $0x1c8] sm:$0xff] %v217
  %394 = vst [vmem:[%s3 + $0x1d0] sm:$0xff] %v328
  %395 = vst [vmem:[%s3 + $0x1d8] sm:$0xff] %v330
  %396 = vst [vmem:[%s3 + $0x1e0] sm:$0xff] %v219
  %397 = vst [vmem:[%s3 + $0x1e8] sm:$0xff] %v221
  %398 = vst [vmem:[%s3 + $0x1f0] sm:$0xff] %v332
  %399 = vst [vmem:[%s3 + $0x1f8] sm:$0xff] %v334
  // Predicated region
  $region14: #{fvae_decoder_forward.2} parent=0 // pred_check
    _
  $region15: #{fvae_decoder_forward.2} parent=0 // pred_check_branch
    %401 = sbr.rel (0) target = $region17
  $region16: #{fvae_decoder_forward.2} parent=0 // pred_region
    _
  $region17: #{fvae_decoder_forward.2} parent=0 // pred_fallthru
    _
  // Predicated region
  $region18: #{fvae_decoder_forward.2} parent=0 // pred_check
    _
  $region19: #{fvae_decoder_forward.2} parent=0 // pred_check_branch
    %403 = sbr.rel (0) target = $region21
  $region20: #{fvae_decoder_forward.2} parent=0 // pred_region
    _
  $region21: #{fvae_decoder_forward.2} parent=0 // pred_fallthru
    _

// kernel: fvae_decoder_forward.3
$region0: #{fvae_decoder_forward.3}
  #allocation0 [shape = 'u32[]', space=smem, size = 0x4, offset = 0x4, fixed_abs, tag = 'smem constant byte address 0x4 - core index']
  #allocation1 [shape = 'u32[144,128]{1,0:T(1,128)}', space=vmem, size = 0x12000, scoped, tag = 'internal scratch']
  #allocation2 [shape = 'f32[544,128]{1,0:T(8,128)}', space=vmem, size = 0x44000, scoped, tag = 'scratch operand']
  #allocation3 [shape = 'f32[256,128]{1,0:T(8,128)}', space=vmem, size = 0x20000, scoped, tag = 'scratch operand']
  %s0 = inlined_call_operand.vmem [shape: f32[2,256,128], index: 0, kind: input, shape index: {}]
  %s1 = inlined_call_operand.vmem [shape: f32[2,256,1], index: 1, kind: input, shape index: {}]
  %s2 = inlined_call_operand.vmem [shape: bf16[2,256,128], index: 2, kind: input, shape index: {}]
  %s3 = inlined_call_operand.vmem [shape: bf16[4,3,128,256], index: 3, kind: input, shape index: {}]
  %s4 = inlined_call_operand.vmem [shape: f32[4,1,256], index: 4, kind: input, shape index: {}]
  %s5 = inlined_call_operand.vmem [shape: bf16[4,128,256], index: 5, kind: input, shape index: {}]
  %s6 = inlined_call_operand.vmem [shape: f32[4,1,256], index: 6, kind: input, shape index: {}]
  %s7 = inlined_call_operand.vmem [shape: bf16[4,128,256], index: 7, kind: input, shape index: {}]
  %s8 = inlined_call_operand.vmem [shape: f32[4,1,256], index: 8, kind: input, shape index: {}]
  %s9 = inlined_call_operand.vmem [shape: bf16[128,128], index: 9, kind: input, shape index: {}]
  %s10 = inlined_call_operand.vmem [shape: f32[1,128], index: 10, kind: input, shape index: {}]
  %s11 = inlined_call_operand.vmem [shape: f32[2,256,128], index: 11, kind: output, shape index: {}]
  %s12 = sld [smem:[#allocation0]]
  $region97: #{fvae_decoder_forward.3} parent=0
    _
  %s14 = ssub.s32 1, %s12
  %s15 = scalar_select 0, %s14, %s12
  loop: start=0, step=1, limit=10
  $region2: #{fvae_decoder_forward.3} parent=0 // loop_pre_header
    _
  $region3: #{fvae_decoder_forward.3} parent=0 // loop_header
    %s17 = sphi 0, %s21
    %p18 = scmp.ge.s32.totalorder %s17, 10
    %s24 = sphi 0, %s43
    %s25 = sphi 0, %s39
    %s26 = sphi 0, %s35
    %s27 = sphi 0, %s24
    %s28 = sphi 0, %s25
    %s29 = sphi 0, %s26
    %s30 = sphi 0, %s27
    %s31 = sphi 0, %s28
    %s32 = sphi 0, %s29
    %s46 = sphi 0, %s48
    %s49 = sphi 0, %s46
    %s50 = sphi 0, %s49
    %s66 = sphi 0, %s50
    %s74 = sphi 0, %s76
    %s77 = sphi 0, %s74
    %s78 = sphi 0, %s77
    %s94 = sphi 0, %s78
    %s102 = sphi 0, %s104
    %s105 = sphi 0, %s102
    %s106 = sphi 0, %s105
    %s122 = sphi 0, %s106
    %s128 = sphi 0, %s130
    %s131 = sphi 0, %s128
    %s132 = sphi 0, %s131
    %s148 = sphi 0, %s132
    %s154 = sphi 0, %s156
    %s157 = sphi 0, %s154
    %s158 = sphi 0, %s157
    %s174 = sphi 0, %s158
    %s180 = sphi 0, %s182
    %s183 = sphi 0, %s180
    %s184 = sphi 0, %s183
    %s200 = sphi 0, %s184
    %s206 = sphi 0, %s208
    %s209 = sphi 0, %s206
    %s210 = sphi 0, %s209
    %s226 = sphi 0, %s210
    %s232 = sphi 0, %s234
    %s235 = sphi 0, %s232
    %s236 = sphi 0, %s235
    %s252 = sphi 0, %s236
    %s258 = sphi 0, %s260
    %s261 = sphi 0, %s258
    %s262 = sphi 0, %s261
    %s278 = sphi 0, %s262
    %s282 = sphi 0, %s282
    %s284 = sphi 0, %s282
    %s285 = sphi 0, %s284
    %s299 = sphi 0, %s285
    %s303 = sphi 0, %s303
    %s305 = sphi 0, %s303
    %s306 = sphi 0, %s305
    %s320 = sphi 0, %s306
    %s332 = sphi 0, %s334
    %s335 = sphi 0, %s332
    %s336 = sphi 0, %s335
    %s352 = sphi 0, %s336
  $region4: #{fvae_decoder_forward.3} parent=0 // loop_header_branch
    %20 = sbr.rel (%p18) target = $region8
  $region5: #{fvae_decoder_forward.3} parent=0 // loop_body
    %s22 = ssub.s32 %s17, 1
    %s23 = ssub.s32 %s17, 2
    %s33 = sadd.s32 1, %s26
    %p34 = scmp.ge.s32.totalorder %s33, 1
    %s35 = scalar_select %p34, 0, %s33
    %s36 = sadd.s32 1, %s25
    %s37 = scalar_select %p34, %s36, %s25
    %p38 = scmp.ge.s32.totalorder %s37, 4
    %s39 = scalar_select %p38, 0, %s37
    %s40 = sadd.s32 1, %s24
    %s41 = scalar_select %p38, %s40, %s24
    %p42 = scmp.ge.s32.totalorder %s41, 2
    %s43 = scalar_select %p42, 0, %s41
    %s44 = ssub.s32 %s24, %s43
    %p45 = scmp.eq.s32.totalorder %s44, 0
    %s47 = sadd.s32 %s46, 1
    %s48 = scalar_select %p45, %s46, %s47
    %p51 = pneg %p45
    %p52 = scmp.eq.s32.totalorder %s17, 7
    %p53 = por %p51, %p52
    %p54 = scmp.ne.s32.totalorder %s46, %s49
    %p55 = scmp.eq.s32.totalorder %s17, 0
    %p56 = por %p54, %p55
    %p57 = scmp.ne.s32.totalorder %s46, %s49
    %p58 = scmp.eq.s32.totalorder %s22, 7
    %p59 = por %p57, %p58
    %p60 = scmp.ne.s32.totalorder %s49, %s50
    %p61 = scmp.eq.s32.totalorder %s22, 0
    %p62 = por %p60, %p61
    %p63 = scmp.ne.s32.totalorder %s49, %s50
    %p64 = scmp.eq.s32.totalorder %s23, 7
    %p65 = por %p63, %p64
    %p67 = scmp.ne.s32.totalorder %s50, %s66
    %p68 = scmp.eq.s32.totalorder %s23, 0
    %p69 = por %p67, %p68
    %s70 = ssub.s32 %s24, %s43
    %s71 = ssub.s32 %s26, %s35
    %s72 = sor.u32 %s70, %s71
    %p73 = scmp.eq.s32.totalorder %s72, 0
    %s75 = sadd.s32 %s74, 1
    %s76 = scalar_select %p73, %s74, %s75
    %p79 = pneg %p73
    %p80 = scmp.eq.s32.totalorder %s17, 7
    %p81 = por %p79, %p80
    %p82 = scmp.ne.s32.totalorder %s74, %s77
    %p83 = scmp.eq.s32.totalorder %s17, 0
    %p84 = por %p82, %p83
    %p85 = scmp.ne.s32.totalorder %s74, %s77
    %p86 = scmp.eq.s32.totalorder %s22, 7
    %p87 = por %p85, %p86
    %p88 = scmp.ne.s32.totalorder %s77, %s78
    %p89 = scmp.eq.s32.totalorder %s22, 0
    %p90 = por %p88, %p89
    %p91 = scmp.ne.s32.totalorder %s77, %s78
    %p92 = scmp.eq.s32.totalorder %s23, 7
    %p93 = por %p91, %p92
    %p95 = scmp.ne.s32.totalorder %s78, %s94
    %p96 = scmp.eq.s32.totalorder %s23, 0
    %p97 = por %p95, %p96
    %s98 = ssub.s32 %s24, %s43
    %s99 = ssub.s32 %s26, %s35
    %s100 = sor.u32 %s98, %s99
    %p101 = scmp.eq.s32.totalorder %s100, 0
    %s103 = sadd.s32 %s102, 1
    %s104 = scalar_select %p101, %s102, %s103
    %p107 = pneg %p101
    %p108 = scmp.eq.s32.totalorder %s17, 7
    %p109 = por %p107, %p108
    %p110 = scmp.ne.s32.totalorder %s102, %s105
    %p111 = scmp.eq.s32.totalorder %s17, 0
    %p112 = por %p110, %p111
    %p113 = scmp.ne.s32.totalorder %s102, %s105
    %p114 = scmp.eq.s32.totalorder %s22, 7
    %p115 = por %p113, %p114
    %p116 = scmp.ne.s32.totalorder %s105, %s106
    %p117 = scmp.eq.s32.totalorder %s22, 0
    %p118 = por %p116, %p117
    %p119 = scmp.ne.s32.totalorder %s105, %s106
    %p120 = scmp.eq.s32.totalorder %s23, 7
    %p121 = por %p119, %p120
    %p123 = scmp.ne.s32.totalorder %s106, %s122
    %p124 = scmp.eq.s32.totalorder %s23, 0
    %p125 = por %p123, %p124
    %s126 = ssub.s32 %s25, %s39
    %p127 = scmp.eq.s32.totalorder %s126, 0
    %s129 = sadd.s32 %s128, 1
    %s130 = scalar_select %p127, %s128, %s129
    %p133 = pneg %p127
    %p134 = scmp.eq.s32.totalorder %s17, 7
    %p135 = por %p133, %p134
    %p136 = scmp.ne.s32.totalorder %s128, %s131
    %p137 = scmp.eq.s32.totalorder %s17, 0
    %p138 = por %p136, %p137
    %p139 = scmp.ne.s32.totalorder %s128, %s131
    %p140 = scmp.eq.s32.totalorder %s22, 7
    %p141 = por %p139, %p140
    %p142 = scmp.ne.s32.totalorder %s131, %s132
    %p143 = scmp.eq.s32.totalorder %s22, 0
    %p144 = por %p142, %p143
    %p145 = scmp.ne.s32.totalorder %s131, %s132
    %p146 = scmp.eq.s32.totalorder %s23, 7
    %p147 = por %p145, %p146
    %p149 = scmp.ne.s32.totalorder %s132, %s148
    %p150 = scmp.eq.s32.totalorder %s23, 0
    %p151 = por %p149, %p150
    %s152 = ssub.s32 %s25, %s39
    %p153 = scmp.eq.s32.totalorder %s152, 0
    %s155 = sadd.s32 %s154, 1
    %s156 = scalar_select %p153, %s154, %s155
    %p159 = pneg %p153
    %p160 = scmp.eq.s32.totalorder %s17, 7
    %p161 = por %p159, %p160
    %p162 = scmp.ne.s32.totalorder %s154, %s157
    %p163 = scmp.eq.s32.totalorder %s17, 0
    %p164 = por %p162, %p163
    %p165 = scmp.ne.s32.totalorder %s154, %s157
    %p166 = scmp.eq.s32.totalorder %s22, 7
    %p167 = por %p165, %p166
    %p168 = scmp.ne.s32.totalorder %s157, %s158
    %p169 = scmp.eq.s32.totalorder %s22, 0
    %p170 = por %p168, %p169
    %p171 = scmp.ne.s32.totalorder %s157, %s158
    %p172 = scmp.eq.s32.totalorder %s23, 7
    %p173 = por %p171, %p172
    %p175 = scmp.ne.s32.totalorder %s158, %s174
    %p176 = scmp.eq.s32.totalorder %s23, 0
    %p177 = por %p175, %p176
    %s178 = ssub.s32 %s25, %s39
    %p179 = scmp.eq.s32.totalorder %s178, 0
    %s181 = sadd.s32 %s180, 1
    %s182 = scalar_select %p179, %s180, %s181
    %p185 = pneg %p179
    %p186 = scmp.eq.s32.totalorder %s17, 7
    %p187 = por %p185, %p186
    %p188 = scmp.ne.s32.totalorder %s180, %s183
    %p189 = scmp.eq.s32.totalorder %s17, 0
    %p190 = por %p188, %p189
    %p191 = scmp.ne.s32.totalorder %s180, %s183
    %p192 = scmp.eq.s32.totalorder %s22, 7
    %p193 = por %p191, %p192
    %p194 = scmp.ne.s32.totalorder %s183, %s184
    %p195 = scmp.eq.s32.totalorder %s22, 0
    %p196 = por %p194, %p195
    %p197 = scmp.ne.s32.totalorder %s183, %s184
    %p198 = scmp.eq.s32.totalorder %s23, 7
    %p199 = por %p197, %p198
    %p201 = scmp.ne.s32.totalorder %s184, %s200
    %p202 = scmp.eq.s32.totalorder %s23, 0
    %p203 = por %p201, %p202
    %s204 = ssub.s32 %s25, %s39
    %p205 = scmp.eq.s32.totalorder %s204, 0
    %s207 = sadd.s32 %s206, 1
    %s208 = scalar_select %p205, %s206, %s207
    %p211 = pneg %p205
    %p212 = scmp.eq.s32.totalorder %s17, 7
    %p213 = por %p211, %p212
    %p214 = scmp.ne.s32.totalorder %s206, %s209
    %p215 = scmp.eq.s32.totalorder %s17, 0
    %p216 = por %p214, %p215
    %p217 = scmp.ne.s32.totalorder %s206, %s209
    %p218 = scmp.eq.s32.totalorder %s22, 7
    %p219 = por %p217, %p218
    %p220 = scmp.ne.s32.totalorder %s209, %s210
    %p221 = scmp.eq.s32.totalorder %s22, 0
    %p222 = por %p220, %p221
    %p223 = scmp.ne.s32.totalorder %s209, %s210
    %p224 = scmp.eq.s32.totalorder %s23, 7
    %p225 = por %p223, %p224
    %p227 = scmp.ne.s32.totalorder %s210, %s226
    %p228 = scmp.eq.s32.totalorder %s23, 0
    %p229 = por %p227, %p228
    %s230 = ssub.s32 %s25, %s39
    %p231 = scmp.eq.s32.totalorder %s230, 0
    %s233 = sadd.s32 %s232, 1
    %s234 = scalar_select %p231, %s232, %s233
    %p237 = pneg %p231
    %p238 = scmp.eq.s32.totalorder %s17, 7
    %p239 = por %p237, %p238
    %p240 = scmp.ne.s32.totalorder %s232, %s235
    %p241 = scmp.eq.s32.totalorder %s17, 0
    %p242 = por %p240, %p241
    %p243 = scmp.ne.s32.totalorder %s232, %s235
    %p244 = scmp.eq.s32.totalorder %s22, 7
    %p245 = por %p243, %p244
    %p246 = scmp.ne.s32.totalorder %s235, %s236
    %p247 = scmp.eq.s32.totalorder %s22, 0
    %p248 = por %p246, %p247
    %p249 = scmp.ne.s32.totalorder %s235, %s236
    %p250 = scmp.eq.s32.totalorder %s23, 7
    %p251 = por %p249, %p250
    %p253 = scmp.ne.s32.totalorder %s236, %s252
    %p254 = scmp.eq.s32.totalorder %s23, 0
    %p255 = por %p253, %p254
    %s256 = ssub.s32 %s25, %s39
    %p257 = scmp.eq.s32.totalorder %s256, 0
    %s259 = sadd.s32 %s258, 1
    %s260 = scalar_select %p257, %s258, %s259
    %p263 = pneg %p257
    %p264 = scmp.eq.s32.totalorder %s17, 7
    %p265 = por %p263, %p264
    %p266 = scmp.ne.s32.totalorder %s258, %s261
    %p267 = scmp.eq.s32.totalorder %s17, 0
    %p268 = por %p266, %p267
    %p269 = scmp.ne.s32.totalorder %s258, %s261
    %p270 = scmp.eq.s32.totalorder %s22, 7
    %p271 = por %p269, %p270
    %p272 = scmp.ne.s32.totalorder %s261, %s262
    %p273 = scmp.eq.s32.totalorder %s22, 0
    %p274 = por %p272, %p273
    %p275 = scmp.ne.s32.totalorder %s261, %s262
    %p276 = scmp.eq.s32.totalorder %s23, 7
    %p277 = por %p275, %p276
    %p279 = scmp.ne.s32.totalorder %s262, %s278
    %p280 = scmp.eq.s32.totalorder %s23, 0
    %p281 = por %p279, %p280
    %s283 = sadd.s32 %s282, 1
    %p286 = scmp.eq.s32.totalorder %s17, 7
    %p287 = scmp.ne.s32.totalorder %s282, %s284
    %p288 = scmp.eq.s32.totalorder %s17, 0
    %p289 = por %p287, %p288
    %p290 = scmp.ne.s32.totalorder %s282, %s284
    %p291 = scmp.eq.s32.totalorder %s22, 7
    %p292 = por %p290, %p291
    %p293 = scmp.ne.s32.totalorder %s284, %s285
    %p294 = scmp.eq.s32.totalorder %s22, 0
    %p295 = por %p293, %p294
    %p296 = scmp.ne.s32.totalorder %s284, %s285
    %p297 = scmp.eq.s32.totalorder %s23, 7
    %p298 = por %p296, %p297
    %p300 = scmp.ne.s32.totalorder %s285, %s299
    %p301 = scmp.eq.s32.totalorder %s23, 0
    %p302 = por %p300, %p301
    %s304 = sadd.s32 %s303, 1
    %p307 = scmp.eq.s32.totalorder %s17, 7
    %p308 = scmp.ne.s32.totalorder %s303, %s305
    %p309 = scmp.eq.s32.totalorder %s17, 0
    %p310 = por %p308, %p309
    %p311 = scmp.ne.s32.totalorder %s303, %s305
    %p312 = scmp.eq.s32.totalorder %s22, 7
    %p313 = por %p311, %p312
    %p314 = scmp.ne.s32.totalorder %s305, %s306
    %p315 = scmp.eq.s32.totalorder %s22, 0
    %p316 = por %p314, %p315
    %p317 = scmp.ne.s32.totalorder %s305, %s306
    %p318 = scmp.eq.s32.totalorder %s23, 7
    %p319 = por %p317, %p318
    %p321 = scmp.ne.s32.totalorder %s306, %s320
    %p322 = scmp.eq.s32.totalorder %s23, 0
    %p323 = por %p321, %p322
    %p324 = scmp.eq.s32.totalorder %s25, 3
    %s325 = scalar_select %p324, %s26, 0
    %p326 = scmp.eq.s32.totalorder %s39, 3
    %s327 = scalar_select %p326, %s35, 0
    %s328 = ssub.s32 %s24, %s43
    %s329 = ssub.s32 %s325, %s327
    %s330 = sor.u32 %s328, %s329
    %p331 = scmp.eq.s32.totalorder %s330, 0
    %s333 = sadd.s32 %s332, 1
    %s334 = scalar_select %p331, %s332, %s333
    %p337 = pneg %p331
    %p338 = scmp.eq.s32.totalorder %s17, 7
    %p339 = por %p337, %p338
    %p340 = scmp.ne.s32.totalorder %s332, %s335
    %p341 = scmp.eq.s32.totalorder %s17, 0
    %p342 = por %p340, %p341
    %p343 = scmp.ne.s32.totalorder %s332, %s335
    %p344 = scmp.eq.s32.totalorder %s22, 7
    %p345 = por %p343, %p344
    %p346 = scmp.ne.s32.totalorder %s335, %s336
    %p347 = scmp.eq.s32.totalorder %s22, 0
    %p348 = por %p346, %p347
    %p349 = scmp.ne.s32.totalorder %s335, %s336
    %p350 = scmp.eq.s32.totalorder %s23, 7
    %p351 = por %p349, %p350
    %p353 = scmp.ne.s32.totalorder %s336, %s352
    %p354 = scmp.eq.s32.totalorder %s23, 0
    %p355 = por %p353, %p354
    %p356 = scmp.le.s32.totalorder 1, %s17
    %p357 = scmp.lt.s32.totalorder %s17, 9
    %p358 = pnand %p356, %p357
    %p359 = pneg %p358
    // Predicated region
    $region9: #{fvae_decoder_forward.3} parent=5 // pred_check
      _
    $region10: #{fvae_decoder_forward.3} parent=5 // pred_check_branch
      %361 = sbr.rel (%p358) target = $region12
    $region11: #{fvae_decoder_forward.3} parent=5 // pred_region
      %s362 = ssub.s32 %s17, 1
      // Predicated region
      $region13: #{fvae_decoder_forward.3} parent=11 // pred_check
        %p363 = pneg %p295
      $region14: #{fvae_decoder_forward.3} parent=11 // pred_check_branch
        %365 = sbr.rel (%p363) target = $region16
      $region15: #{fvae_decoder_forward.3} parent=11 // pred_region
        _
      $region16: #{fvae_decoder_forward.3} parent=11 // pred_fallthru
        _
      // Predicated region
      $region17: #{fvae_decoder_forward.3} parent=11 // pred_check
        %p366 = pneg %p316
      $region18: #{fvae_decoder_forward.3} parent=11 // pred_check_branch
        %368 = sbr.rel (%p366) target = $region20
      $region19: #{fvae_decoder_forward.3} parent=11 // pred_region
        _
      $region20: #{fvae_decoder_forward.3} parent=11 // pred_fallthru
        _
    $region12: #{fvae_decoder_forward.3} parent=5 // pred_fallthru
      _
    %p369 = scmp.lt.s32.totalorder %s17, 8
    // Predicated region
    $region21: #{fvae_decoder_forward.3} parent=5 // pred_check
      %p370 = pneg %p369
    $region22: #{fvae_decoder_forward.3} parent=5 // pred_check_branch
      %372 = sbr.rel (%p370) target = $region24
    $region23: #{fvae_decoder_forward.3} parent=5 // pred_region
      // Predicated region
      $region25: #{fvae_decoder_forward.3} parent=23 // pred_check
        %p373 = pneg %p56
      $region26: #{fvae_decoder_forward.3} parent=23 // pred_check_branch
        %375 = sbr.rel (%p373) target = $region28
      $region27: #{fvae_decoder_forward.3} parent=23 // pred_region
        %p376 = scmp.lt.s32.totalorder %s24, 1
        %s377 = scalar_select %p376, %s24, 1
        %s378 = smul.addr %s377, 32
        %s379 = smul.addr %s378, 8
        %s380 = scalar_lea.vmem %s0, %s379
      $region28: #{fvae_decoder_forward.3} parent=23 // pred_fallthru
        _
      // Predicated region
      $region29: #{fvae_decoder_forward.3} parent=23 // pred_check
        %p381 = pneg %p84
      $region30: #{fvae_decoder_forward.3} parent=23 // pred_check_branch
        %383 = sbr.rel (%p381) target = $region32
      $region31: #{fvae_decoder_forward.3} parent=23 // pred_region
        %s384 = smul.u32 32, %s26
        %p385 = scmp.lt.s32.totalorder %s24, 1
        %s386 = scalar_select %p385, %s24, 1
        %p387 = scmp.lt.s32.totalorder %s384, 31
        %s388 = scalar_select %p387, %s384, 31
        %s389 = smul.addr %s386, 32
        %s390 = sadd.s32 %s388, %s389
        %s391 = smul.addr %s390, 8
        %s392 = scalar_lea.vmem %s1, %s391
        %s393 = smul.u32 32, %s26
      $region32: #{fvae_decoder_forward.3} parent=23 // pred_fallthru
        _
      // Predicated region
      $region33: #{fvae_decoder_forward.3} parent=23 // pred_check
        %p394 = pneg %p112
      $region34: #{fvae_decoder_forward.3} parent=23 // pred_check_branch
        %396 = sbr.rel (%p394) target = $region36
      $region35: #{fvae_decoder_forward.3} parent=23 // pred_region
        %s397 = smul.u32 32, %s26
        %p398 = scmp.lt.s32.totalorder %s24, 1
        %s399 = scalar_select %p398, %s24, 1
        %p400 = scmp.lt.s32.totalorder %s397, 31
        %s401 = scalar_select %p400, %s397, 31
        %s402 = smul.addr %s399, 32
        %s403 = sadd.s32 %s401, %s402
        %s404 = smul.addr %s403, 4
        %s405 = scalar_lea.vmem %s2, %s404
        %s406 = smul.u32 32, %s26
      $region36: #{fvae_decoder_forward.3} parent=23 // pred_fallthru
        _
      // Predicated region
      $region37: #{fvae_decoder_forward.3} parent=23 // pred_check
        %p407 = pneg %p138
      $region38: #{fvae_decoder_forward.3} parent=23 // pred_check_branch
        %409 = sbr.rel (%p407) target = $region40
      $region39: #{fvae_decoder_forward.3} parent=23 // pred_region
        %p410 = scmp.lt.s32.totalorder %s25, 3
        %s411 = scalar_select %p410, %s25, 3
        %s412 = smul.addr %s411, 96
        %s413 = smul.addr %s412, 4
        %s414 = scalar_lea.vmem %s3, %s413
      $region40: #{fvae_decoder_forward.3} parent=23 // pred_fallthru
        _
      // Predicated region
      $region41: #{fvae_decoder_forward.3} parent=23 // pred_check
        %p415 = pneg %p164
      $region42: #{fvae_decoder_forward.3} parent=23 // pred_check_branch
        %417 = sbr.rel (%p415) target = $region44
      $region43: #{fvae_decoder_forward.3} parent=23 // pred_region
        %p418 = scmp.lt.s32.totalorder %s25, 3
        %s419 = scalar_select %p418, %s25, 3
        %s420 = smul.addr %s419, 2
        %s421 = scalar_lea.vmem %s4, %s420
      $region44: #{fvae_decoder_forward.3} parent=23 // pred_fallthru
        _
      // Predicated region
      $region45: #{fvae_decoder_forward.3} parent=23 // pred_check
        %p422 = pneg %p190
      $region46: #{fvae_decoder_forward.3} parent=23 // pred_check_branch
        %424 = sbr.rel (%p422) target = $region48
      $region47: #{fvae_decoder_forward.3} parent=23 // pred_region
        %p425 = scmp.lt.s32.totalorder %s25, 3
        %s426 = scalar_select %p425, %s25, 3
        %s427 = smul.addr %s426, 32
        %s428 = smul.addr %s427, 4
        %s429 = scalar_lea.vmem %s5, %s428
      $region48: #{fvae_decoder_forward.3} parent=23 // pred_fallthru
        _
      // Predicated region
      $region49: #{fvae_decoder_forward.3} parent=23 // pred_check
        %p430 = pneg %p216
      $region50: #{fvae_decoder_forward.3} parent=23 // pred_check_branch
        %432 = sbr.rel (%p430) target = $region52
      $region51: #{fvae_decoder_forward.3} parent=23 // pred_region
        %p433 = scmp.lt.s32.totalorder %s25, 3
        %s434 = scalar_select %p433, %s25, 3
        %s435 = smul.addr %s434, 2
        %s436 = scalar_lea.vmem %s6, %s435
      $region52: #{fvae_decoder_forward.3} parent=23 // pred_fallthru
        _
      // Predicated region
      $region53: #{fvae_decoder_forward.3} parent=23 // pred_check
        %p437 = pneg %p242
      $region54: #{fvae_decoder_forward.3} parent=23 // pred_check_branch
        %439 = sbr.rel (%p437) target = $region56
      $region55: #{fvae_decoder_forward.3} parent=23 // pred_region
        %p440 = scmp.lt.s32.totalorder %s25, 3
        %s441 = scalar_select %p440, %s25, 3
        %s442 = smul.addr %s441, 32
        %s443 = smul.addr %s442, 4
        %s444 = scalar_lea.vmem %s7, %s443
      $region56: #{fvae_decoder_forward.3} parent=23 // pred_fallthru
        _
      // Predicated region
      $region57: #{fvae_decoder_forward.3} parent=23 // pred_check
        %p445 = pneg %p268
      $region58: #{fvae_decoder_forward.3} parent=23 // pred_check_branch
        %447 = sbr.rel (%p445) target = $region60
      $region59: #{fvae_decoder_forward.3} parent=23 // pred_region
        %p448 = scmp.lt.s32.totalorder %s25, 3
        %s449 = scalar_select %p448, %s25, 3
        %s450 = smul.addr %s449, 2
        %s451 = scalar_lea.vmem %s8, %s450
      $region60: #{fvae_decoder_forward.3} parent=23 // pred_fallthru
        _
    $region24: #{fvae_decoder_forward.3} parent=5 // pred_fallthru
      _
    %p452 = scmp.le.s32.totalorder 1, %s17
    %p453 = scmp.lt.s32.totalorder %s17, 9
    %p454 = pnand %p452, %p453
    %p455 = pneg %p454
    // Predicated region
    $region61: #{fvae_decoder_forward.3} parent=5 // pred_check
      _
    $region62: #{fvae_decoder_forward.3} parent=5 // pred_check_branch
      %457 = sbr.rel (%p454) target = $region64
    $region63: #{fvae_decoder_forward.3} parent=5 // pred_region
      %s458 = ssub.s32 %s17, 1
      %p459 = scmp.lt.s32.totalorder %s27, 1
      %s460 = scalar_select %p459, %s27, 1
      %s461 = smul.addr %s460, 32
      %s462 = smul.addr %s461, 8
      %s463 = scalar_lea.vmem %s0, %s462
      %p464 = pneg %p62
      %p465 = pneg %p59
      %s466 = smul.u32 32, %s29
      %p467 = scmp.lt.s32.totalorder %s27, 1
      %s468 = scalar_select %p467, %s27, 1
      %p469 = scmp.lt.s32.totalorder %s466, 31
      %s470 = scalar_select %p469, %s466, 31
      %s471 = smul.addr %s468, 32
      %s472 = sadd.s32 %s470, %s471
      %s473 = smul.addr %s472, 8
      %s474 = scalar_lea.vmem %s1, %s473
      %p475 = pneg %p90
      %p476 = pneg %p87
      %s477 = smul.u32 32, %s29
      %p478 = scmp.lt.s32.totalorder %s27, 1
      %s479 = scalar_select %p478, %s27, 1
      %p480 = scmp.lt.s32.totalorder %s477, 31
      %s481 = scalar_select %p480, %s477, 31
      %s482 = smul.addr %s479, 32
      %s483 = sadd.s32 %s481, %s482
      %s484 = smul.addr %s483, 4
      %s485 = scalar_lea.vmem %s2, %s484
      %p486 = pneg %p118
      %p487 = pneg %p115
      %p488 = scmp.lt.s32.totalorder %s28, 3
      %s489 = scalar_select %p488, %s28, 3
      %s490 = smul.addr %s489, 96
      %s491 = smul.addr %s490, 4
      %s492 = scalar_lea.vmem %s3, %s491
      %p493 = pneg %p144
      %p494 = pneg %p141
      %p495 = scmp.lt.s32.totalorder %s28, 3
      %s496 = scalar_select %p495, %s28, 3
      %s497 = smul.addr %s496, 2
      %s498 = scalar_lea.vmem %s4, %s497
      %p499 = pneg %p170
      %p500 = pneg %p167
      %p501 = scmp.lt.s32.totalorder %s28, 3
      %s502 = scalar_select %p501, %s28, 3
      %s503 = smul.addr %s502, 32
      %s504 = smul.addr %s503, 4
      %s505 = scalar_lea.vmem %s5, %s504
      %p506 = pneg %p196
      %p507 = pneg %p193
      %p508 = scmp.lt.s32.totalorder %s28, 3
      %s509 = scalar_select %p508, %s28, 3
      %s510 = smul.addr %s509, 2
      %s511 = scalar_lea.vmem %s6, %s510
      %p512 = pneg %p222
      %p513 = pneg %p219
      %p514 = scmp.lt.s32.totalorder %s28, 3
      %s515 = scalar_select %p514, %s28, 3
      %s516 = smul.addr %s515, 32
      %s517 = smul.addr %s516, 4
      %s518 = scalar_lea.vmem %s7, %s517
      %p519 = pneg %p248
      %p520 = pneg %p245
      %p521 = scmp.lt.s32.totalorder %s28, 3
      %s522 = scalar_select %p521, %s28, 3
      %s523 = smul.addr %s522, 2
      %s524 = scalar_lea.vmem %s8, %s523
      %p525 = pneg %p274
      %p526 = pneg %p271
      %p527 = pneg %p295
      %p528 = pneg %p292
      %p529 = pneg %p316
      %p530 = pneg %p313
      %p531 = pneg %p348
      %p532 = pneg %p345
      %p533 = scmp.eq.s32.totalorder %s28, 3
      %s534 = scalar_select %p533, %s29, 0
      %s535 = smul.u32 32, %s534
      %p536 = scmp.lt.s32.totalorder %s27, 1
      %s537 = scalar_select %p536, %s27, 1
      %p538 = scmp.lt.s32.totalorder %s535, 31
      %s539 = scalar_select %p538, %s535, 31
      %s540 = smul.addr %s537, 32
      %s541 = sadd.s32 %s539, %s540
      %s542 = smul.addr %s541, 8
      %s543 = scalar_lea.vmem %s11, %s542
      %p544 = scmp.lt.s32.totalorder %s27, 1
      %s545 = scalar_select %p544, %s27, 1
      %s546 = smul.addr %s545, 32
      %s547 = smul.addr %s546, 8
      %s548 = scalar_lea.vmem %s0, %s547
      %s549 = smul.u32 32, %s29
      %p550 = scmp.lt.s32.totalorder %s27, 1
      %s551 = scalar_select %p550, %s27, 1
      %p552 = scmp.lt.s32.totalorder %s549, 31
      %s553 = scalar_select %p552, %s549, 31
      %s554 = smul.addr %s551, 32
      %s555 = sadd.s32 %s553, %s554
      %s556 = smul.addr %s555, 8
      %s557 = scalar_lea.vmem %s1, %s556
      %s558 = smul.u32 32, %s29
      %s559 = smul.u32 32, %s29
      %p560 = scmp.lt.s32.totalorder %s27, 1
      %s561 = scalar_select %p560, %s27, 1
      %p562 = scmp.lt.s32.totalorder %s559, 31
      %s563 = scalar_select %p562, %s559, 31
      %s564 = smul.addr %s561, 32
      %s565 = sadd.s32 %s563, %s564
      %s566 = smul.addr %s565, 4
      %s567 = scalar_lea.vmem %s2, %s566
      %s568 = smul.u32 32, %s29
      %p569 = scmp.lt.s32.totalorder %s28, 3
      %s570 = scalar_select %p569, %s28, 3
      %s571 = smul.addr %s570, 96
      %s572 = smul.addr %s571, 4
      %s573 = scalar_lea.vmem %s3, %s572
      %p574 = scmp.lt.s32.totalorder %s28, 3
      %s575 = scalar_select %p574, %s28, 3
      %s576 = smul.addr %s575, 2
      %s577 = scalar_lea.vmem %s4, %s576
      %p578 = scmp.lt.s32.totalorder %s28, 3
      %s579 = scalar_select %p578, %s28, 3
      %s580 = smul.addr %s579, 32
      %s581 = smul.addr %s580, 4
      %s582 = scalar_lea.vmem %s5, %s581
      %p583 = scmp.lt.s32.totalorder %s28, 3
      %s584 = scalar_select %p583, %s28, 3
      %s585 = smul.addr %s584, 2
      %s586 = scalar_lea.vmem %s6, %s585
      %p587 = scmp.lt.s32.totalorder %s28, 3
      %s588 = scalar_select %p587, %s28, 3
      %s589 = smul.addr %s588, 32
      %s590 = smul.addr %s589, 4
      %s591 = scalar_lea.vmem %s7, %s590
      %p592 = scmp.lt.s32.totalorder %s28, 3
      %s593 = scalar_select %p592, %s28, 3
      %s594 = smul.addr %s593, 2
      %s595 = scalar_lea.vmem %s8, %s594
      %p596 = scmp.eq.s32.totalorder %s28, 3
      %s597 = scalar_select %p596, %s29, 0
      %s598 = smul.u32 32, %s597
      %p599 = scmp.lt.s32.totalorder %s27, 1
      %s600 = scalar_select %p599, %s27, 1
      %p601 = scmp.lt.s32.totalorder %s598, 31
      %s602 = scalar_select %p601, %s598, 31
      %s603 = smul.addr %s600, 32
      %s604 = sadd.s32 %s602, %s603
      %s605 = smul.addr %s604, 8
      %s606 = scalar_lea.vmem %s11, %s605
      %p607 = scmp.eq.s32.totalorder %s28, 3
      %s608 = scalar_select %p607, %s29, 0
      %s609 = smul.u32 32, %s608
      %s611 = smul.u32 %s29, 256
      %p612 = scmp.eq.s32.totalorder %s28, 0
      %p613 = scmp.eq.s32.totalorder %s29, 0
      %p614 = pnand %p612, %p613
      %p615 = pneg %p614
      // Predicated region
      $region65: #{fvae_decoder_forward.3} parent=63 // pred_check
        _
      $region66: #{fvae_decoder_forward.3} parent=63 // pred_check_branch
        %617 = sbr.rel (%p614) target = $region68
      $region67: #{fvae_decoder_forward.3} parent=63 // pred_region
        %618 = vst [vmem:[#allocation2] sm:$0xff] 0.0
        %619 = vst [vmem:[#allocation2 + $0x108] sm:$0xff] 0.0
        %620 = vst [vmem:[#allocation2 + $0x110] sm:$0xff] 0.0
        %621 = vst [vmem:[#allocation2 + $0x218] sm:$0xff] 0.0
        %v622 = vld [vmem:[%s548] sm:$0xff]
        %v623 = vld [vmem:[%s548 + $0x8] sm:$0xff]
        %v624 = vld [vmem:[%s548 + $0x10] sm:$0xff]
        %v625 = vld [vmem:[%s548 + $0x18] sm:$0xff]
        %v626 = vld [vmem:[%s548 + $0x20] sm:$0xff]
        %v627 = vld [vmem:[%s548 + $0x28] sm:$0xff]
        %v628 = vld [vmem:[%s548 + $0x30] sm:$0xff]
        %v629 = vld [vmem:[%s548 + $0x38] sm:$0xff]
        %v630 = vld [vmem:[%s548 + $0x40] sm:$0xff]
        %v631 = vld [vmem:[%s548 + $0x48] sm:$0xff]
        %v632 = vld [vmem:[%s548 + $0x50] sm:$0xff]
        %v633 = vld [vmem:[%s548 + $0x58] sm:$0xff]
        %v634 = vld [vmem:[%s548 + $0x60] sm:$0xff]
        %v635 = vld [vmem:[%s548 + $0x68] sm:$0xff]
        %v636 = vld [vmem:[%s548 + $0x70] sm:$0xff]
        %v637 = vld [vmem:[%s548 + $0x78] sm:$0xff]
        %v638 = vld [vmem:[%s548 + $0x80] sm:$0xff]
        %v639 = vld [vmem:[%s548 + $0x88] sm:$0xff]
        %v640 = vld [vmem:[%s548 + $0x90] sm:$0xff]
        %v641 = vld [vmem:[%s548 + $0x98] sm:$0xff]
        %v642 = vld [vmem:[%s548 + $0xa0] sm:$0xff]
        %v643 = vld [vmem:[%s548 + $0xa8] sm:$0xff]
        %v644 = vld [vmem:[%s548 + $0xb0] sm:$0xff]
        %v645 = vld [vmem:[%s548 + $0xb8] sm:$0xff]
        %v646 = vld [vmem:[%s548 + $0xc0] sm:$0xff]
        %v647 = vld [vmem:[%s548 + $0xc8] sm:$0xff]
        %v648 = vld [vmem:[%s548 + $0xd0] sm:$0xff]
        %v649 = vld [vmem:[%s548 + $0xd8] sm:$0xff]
        %v650 = vld [vmem:[%s548 + $0xe0] sm:$0xff]
        %v651 = vld [vmem:[%s548 + $0xe8] sm:$0xff]
        %v652 = vld [vmem:[%s548 + $0xf0] sm:$0xff]
        %v653 = vld [vmem:[%s548 + $0xf8] sm:$0xff]
        %654 = vst [vmem:[#allocation2 + $0x118] sm:$0xff] %v622
        %655 = vst [vmem:[#allocation2 + $0x120] sm:$0xff] %v623
        %656 = vst [vmem:[#allocation2 + $0x128] sm:$0xff] %v624
        %657 = vst [vmem:[#allocation2 + $0x130] sm:$0xff] %v625
        %658 = vst [vmem:[#allocation2 + $0x138] sm:$0xff] %v626
        %659 = vst [vmem:[#allocation2 + $0x140] sm:$0xff] %v627
        %660 = vst [vmem:[#allocation2 + $0x148] sm:$0xff] %v628
        %661 = vst [vmem:[#allocation2 + $0x150] sm:$0xff] %v629
        %662 = vst [vmem:[#allocation2 + $0x158] sm:$0xff] %v630
        %663 = vst [vmem:[#allocation2 + $0x160] sm:$0xff] %v631
        %664 = vst [vmem:[#allocation2 + $0x168] sm:$0xff] %v632
        %665 = vst [vmem:[#allocation2 + $0x170] sm:$0xff] %v633
        %666 = vst [vmem:[#allocation2 + $0x178] sm:$0xff] %v634
        %667 = vst [vmem:[#allocation2 + $0x180] sm:$0xff] %v635
        %668 = vst [vmem:[#allocation2 + $0x188] sm:$0xff] %v636
        %669 = vst [vmem:[#allocation2 + $0x190] sm:$0xff] %v637
        %670 = vst [vmem:[#allocation2 + $0x198] sm:$0xff] %v638
        %671 = vst [vmem:[#allocation2 + $0x1a0] sm:$0xff] %v639
        %672 = vst [vmem:[#allocation2 + $0x1a8] sm:$0xff] %v640
        %673 = vst [vmem:[#allocation2 + $0x1b0] sm:$0xff] %v641
        %674 = vst [vmem:[#allocation2 + $0x1b8] sm:$0xff] %v642
        %675 = vst [vmem:[#allocation2 + $0x1c0] sm:$0xff] %v643
        %676 = vst [vmem:[#allocation2 + $0x1c8] sm:$0xff] %v644
        %677 = vst [vmem:[#allocation2 + $0x1d0] sm:$0xff] %v645
        %678 = vst [vmem:[#allocation2 + $0x1d8] sm:$0xff] %v646
        %679 = vst [vmem:[#allocation2 + $0x1e0] sm:$0xff] %v647
        %680 = vst [vmem:[#allocation2 + $0x1e8] sm:$0xff] %v648
        %681 = vst [vmem:[#allocation2 + $0x1f0] sm:$0xff] %v649
        %682 = vst [vmem:[#allocation2 + $0x1f8] sm:$0xff] %v650
        %683 = vst [vmem:[#allocation2 + $0x200] sm:$0xff] %v651
        %684 = vst [vmem:[#allocation2 + $0x208] sm:$0xff] %v652
        %685 = vst [vmem:[#allocation2 + $0x210] sm:$0xff] %v653
      $region68: #{fvae_decoder_forward.3} parent=63 // pred_fallthru
        _
      %s686 = sand.u32 %s28, 1
      %s687 = ssub.s32 1, %s686
      %s688 = smul.u32 %s687, 272
      %s689 = smul.u32 %s686, 272
      %s690 = sadd.s32 %s688, %s611
      %s691 = scalar_lea.vmem [#allocation2], %s690
      %v692 = vld [vmem:[%s691] sm:$0xff]
      %v693 = vld [vmem:[%s691 + $0x8] sm:$0xff]
      %v694 = vld [vmem:[%s691 + $0x10] sm:$0xff]
      %v695 = vld [vmem:[%s691 + $0x18] sm:$0xff]
      %v696 = vld [vmem:[%s691 + $0x20] sm:$0xff]
      %v697 = vld [vmem:[%s691 + $0x28] sm:$0xff]
      %v698 = vld [vmem:[%s691 + $0x30] sm:$0xff]
      %v699 = vld [vmem:[%s691 + $0x38] sm:$0xff]
      %v700 = vld [vmem:[%s691 + $0x40] sm:$0xff]
      %v701 = vld [vmem:[%s691 + $0x48] sm:$0xff]
      %v702 = vld [vmem:[%s691 + $0x50] sm:$0xff]
      %v703 = vld [vmem:[%s691 + $0x58] sm:$0xff]
      %v704 = vld [vmem:[%s691 + $0x60] sm:$0xff]
      %v705 = vld [vmem:[%s691 + $0x68] sm:$0xff]
      %v706 = vld [vmem:[%s691 + $0x70] sm:$0xff]
      %v707 = vld [vmem:[%s691 + $0x78] sm:$0xff]
      %v708 = vld [vmem:[%s691 + $0x80] sm:$0xff]
      %v709 = vld [vmem:[%s691 + $0x88] sm:$0xff]
      %v710 = vld [vmem:[%s691 + $0x90] sm:$0xff]
      %v711 = vld [vmem:[%s691 + $0x98] sm:$0xff]
      %v712 = vld [vmem:[%s691 + $0xa0] sm:$0xff]
      %v713 = vld [vmem:[%s691 + $0xa8] sm:$0xff]
      %v714 = vld [vmem:[%s691 + $0xb0] sm:$0xff]
      %v715 = vld [vmem:[%s691 + $0xb8] sm:$0xff]
      %v716 = vld [vmem:[%s691 + $0xc0] sm:$0xff]
      %v717 = vld [vmem:[%s691 + $0xc8] sm:$0xff]
      %v718 = vld [vmem:[%s691 + $0xd0] sm:$0xff]
      %v719 = vld [vmem:[%s691 + $0xd8] sm:$0xff]
      %v720 = vld [vmem:[%s691 + $0xe0] sm:$0xff]
      %v721 = vld [vmem:[%s691 + $0xe8] sm:$0xff]
      %v722 = vld [vmem:[%s691 + $0xf0] sm:$0xff]
      %v723 = vld [vmem:[%s691 + $0xf8] sm:$0xff]
      %v724 = vld [vmem:[%s691 + $0x100] sm:$0xff]
      %v725 = vld [vmem:[%s691 + $0x108] sm:$0xff]
      %v726 = vpack.c.bf16 %v693, %v692
      %v727 = vpack.c.bf16 %v695, %v694
      %v728 = vpack.c.bf16 %v697, %v696
      %v729 = vpack.c.bf16 %v699, %v698
      %v730 = vpack.c.bf16 %v701, %v700
      %v731 = vpack.c.bf16 %v703, %v702
      %v732 = vpack.c.bf16 %v705, %v704
      %v733 = vpack.c.bf16 %v707, %v706
      %v734 = vpack.c.bf16 %v709, %v708
      %v735 = vpack.c.bf16 %v711, %v710
      %v736 = vpack.c.bf16 %v713, %v712
      %v737 = vpack.c.bf16 %v715, %v714
      %v738 = vpack.c.bf16 %v717, %v716
      %v739 = vpack.c.bf16 %v719, %v718
      %v740 = vpack.c.bf16 %v721, %v720
      %v741 = vpack.c.bf16 %v723, %v722
      %v742 = vpack.c.bf16 %v725, %v724
      %v743 = vld [vmem:[%s567] sm:$0xf]
      %v744 = vld [vmem:[%s567 + $0x4] sm:$0xf]
      %v745 = vld [vmem:[%s567 + $0x8] sm:$0xf]
      %v746 = vld [vmem:[%s567 + $0xc] sm:$0xf]
      %v747 = vld [vmem:[%s567 + $0x10] sm:$0xf]
      %v748 = vld [vmem:[%s567 + $0x14] sm:$0xf]
      %v749 = vld [vmem:[%s567 + $0x18] sm:$0xf]
      %v750 = vld [vmem:[%s567 + $0x1c] sm:$0xf]
      %v751 = vld [vmem:[%s567 + $0x20] sm:$0xf]
      %v752 = vld [vmem:[%s567 + $0x24] sm:$0xf]
      %v753 = vld [vmem:[%s567 + $0x28] sm:$0xf]
      %v754 = vld [vmem:[%s567 + $0x2c] sm:$0xf]
      %v755 = vld [vmem:[%s567 + $0x30] sm:$0xf]
      %v756 = vld [vmem:[%s567 + $0x34] sm:$0xf]
      %v757 = vld [vmem:[%s567 + $0x38] sm:$0xf]
      %v758 = vld [vmem:[%s567 + $0x3c] sm:$0xf]
      %v759 = vld [vmem:[%s567 + $0x40] sm:$0xf]
      %v760 = vld [vmem:[%s567 + $0x44] sm:$0xf]
      %v761 = vld [vmem:[%s567 + $0x48] sm:$0xf]
      %v762 = vld [vmem:[%s567 + $0x4c] sm:$0xf]
      %v763 = vld [vmem:[%s567 + $0x50] sm:$0xf]
      %v764 = vld [vmem:[%s567 + $0x54] sm:$0xf]
      %v765 = vld [vmem:[%s567 + $0x58] sm:$0xf]
      %v766 = vld [vmem:[%s567 + $0x5c] sm:$0xf]
      %v767 = vld [vmem:[%s567 + $0x60] sm:$0xf]
      %v768 = vld [vmem:[%s567 + $0x64] sm:$0xf]
      %v769 = vld [vmem:[%s567 + $0x68] sm:$0xf]
      %v770 = vld [vmem:[%s567 + $0x6c] sm:$0xf]
      %v771 = vld [vmem:[%s567 + $0x70] sm:$0xf]
      %v772 = vld [vmem:[%s567 + $0x74] sm:$0xf]
      %v773 = vld [vmem:[%s567 + $0x78] sm:$0xf]
      %v774 = vld [vmem:[%s567 + $0x7c] sm:$0xf]
      %v775 = vld [vmem:[%s582] sm:$0xff]
      %v776 = vld [vmem:[%s582 + $0x8] sm:$0xff]
      %v777 = vld [vmem:[%s582 + $0x10] sm:$0xff]
      %v778 = vld [vmem:[%s582 + $0x18] sm:$0xff]
      %v779 = vld [vmem:[%s582 + $0x20] sm:$0xff]
      %v780 = vld [vmem:[%s582 + $0x28] sm:$0xff]
      %v781 = vld [vmem:[%s582 + $0x30] sm:$0xff]
      %v782 = vld [vmem:[%s582 + $0x38] sm:$0xff]
      %v783 = vld [vmem:[%s582 + $0x40] sm:$0xff]
      %v784 = vld [vmem:[%s582 + $0x48] sm:$0xff]
      %v785 = vld [vmem:[%s582 + $0x50] sm:$0xff]
      %v786 = vld [vmem:[%s582 + $0x58] sm:$0xff]
      %v787 = vld [vmem:[%s582 + $0x60] sm:$0xff]
      %v788 = vld [vmem:[%s582 + $0x68] sm:$0xff]
      %v789 = vld [vmem:[%s582 + $0x70] sm:$0xff]
      %v790 = vld [vmem:[%s582 + $0x78] sm:$0xff]
      %v791 = vld [vmem:[%s586] sm:$0x3]
      %v793 = vlaneseq
      %v794 = vshrl.u32 %v793, 7
      %v795 = vsub.s32 0, %v794
      %v796 = vrot.slane %v791, %v795
      %v797 = vlaneseq
      %v798 = vshrl.u32 %v797, 7
      %v799 = vsub.s32 1, %v798
      %v800 = vrot.slane %v791, %v799
      %v835 = vunpack.c.l.b16 %v743
      %v836 = vunpack.c.l.b16 %v744
      %v837 = vunpack.c.l.b16 %v745
      %v838 = vunpack.c.l.b16 %v746
      %v839 = vunpack.c.l.b16 %v747
      %v840 = vunpack.c.l.b16 %v748
      %v841 = vunpack.c.l.b16 %v749
      %v842 = vunpack.c.l.b16 %v750
      %v843 = vunpack.c.l.b16 %v751
      %v844 = vunpack.c.l.b16 %v752
      %v845 = vunpack.c.l.b16 %v753
      %v846 = vunpack.c.l.b16 %v754
      %v847 = vunpack.c.l.b16 %v755
      %v848 = vunpack.c.l.b16 %v756
      %v849 = vunpack.c.l.b16 %v757
      %v850 = vunpack.c.l.b16 %v758
      %v851 = vunpack.c.l.b16 %v759
      %v852 = vunpack.c.l.b16 %v760
      %v853 = vunpack.c.l.b16 %v761
      %v854 = vunpack.c.l.b16 %v762
      %v855 = vunpack.c.l.b16 %v763
      %v856 = vunpack.c.l.b16 %v764
      %v857 = vunpack.c.l.b16 %v765
      %v858 = vunpack.c.l.b16 %v766
      %v859 = vunpack.c.l.b16 %v767
      %v860 = vunpack.c.l.b16 %v768
      %v861 = vunpack.c.l.b16 %v769
      %v862 = vunpack.c.l.b16 %v770
      %v863 = vunpack.c.l.b16 %v771
      %v864 = vunpack.c.l.b16 %v772
      %v865 = vunpack.c.l.b16 %v773
      %v866 = vunpack.c.l.b16 %v774
      %v867 = vpack.c.b16 %v836, %v835
      %v868 = vpack.c.b16 %v838, %v837
      %v869 = vpack.c.b16 %v840, %v839
      %v870 = vpack.c.b16 %v842, %v841
      %v871 = vpack.c.b16 %v844, %v843
      %v872 = vpack.c.b16 %v846, %v845
      %v873 = vpack.c.b16 %v848, %v847
      %v874 = vpack.c.b16 %v850, %v849
      %v875 = vpack.c.b16 %v852, %v851
      %v876 = vpack.c.b16 %v854, %v853
      %v877 = vpack.c.b16 %v856, %v855
      %v878 = vpack.c.b16 %v858, %v857
      %v879 = vpack.c.b16 %v860, %v859
      %v880 = vpack.c.b16 %v862, %v861
      %v881 = vpack.c.b16 %v864, %v863
      %v882 = vpack.c.b16 %v866, %v865
      %v915 = vunpack.c.l.b16 %v775
      %v916 = vunpack.c.h.b16 %v775
      %v917 = vunpack.c.l.b16 %v776
      %v918 = vunpack.c.h.b16 %v776
      %v919 = vunpack.c.l.b16 %v777
      %v920 = vunpack.c.h.b16 %v777
      %v921 = vunpack.c.l.b16 %v778
      %v922 = vunpack.c.h.b16 %v778
      %v923 = vunpack.c.l.b16 %v779
      %v924 = vunpack.c.h.b16 %v779
      %v925 = vunpack.c.l.b16 %v780
      %v926 = vunpack.c.h.b16 %v780
      %v927 = vunpack.c.l.b16 %v781
      %v928 = vunpack.c.h.b16 %v781
      %v929 = vunpack.c.l.b16 %v782
      %v930 = vunpack.c.h.b16 %v782
      %v931 = vunpack.c.l.b16 %v783
      %v932 = vunpack.c.h.b16 %v783
      %v933 = vunpack.c.l.b16 %v784
      %v934 = vunpack.c.h.b16 %v784
      %v935 = vunpack.c.l.b16 %v785
      %v936 = vunpack.c.h.b16 %v785
      %v937 = vunpack.c.l.b16 %v786
      %v938 = vunpack.c.h.b16 %v786
      %v939 = vunpack.c.l.b16 %v787
      %v940 = vunpack.c.h.b16 %v787
      %v941 = vunpack.c.l.b16 %v788
      %v942 = vunpack.c.h.b16 %v788
      %v943 = vunpack.c.l.b16 %v789
      %v944 = vunpack.c.h.b16 %v789
      %v945 = vunpack.c.l.b16 %v790
      %v946 = vunpack.c.h.b16 %v790
      %v947 = vpack.c.b16 %v917, %v915
      %v948 = vpack.c.b16 %v918, %v916
      %v949 = vpack.c.b16 %v921, %v919
      %v950 = vpack.c.b16 %v922, %v920
      %v951 = vpack.c.b16 %v925, %v923
      %v952 = vpack.c.b16 %v926, %v924
      %v953 = vpack.c.b16 %v929, %v927
      %v954 = vpack.c.b16 %v930, %v928
      %v955 = vpack.c.b16 %v933, %v931
      %v956 = vpack.c.b16 %v934, %v932
      %v957 = vpack.c.b16 %v937, %v935
      %v958 = vpack.c.b16 %v938, %v936
      %v959 = vpack.c.b16 %v941, %v939
      %v960 = vpack.c.b16 %v942, %v940
      %v961 = vpack.c.b16 %v945, %v943
      %v962 = vpack.c.b16 %v946, %v944
      %979 = vmatprep.subr.bf16.mxu0 %v962
      %980 = vmatpush1.bf16.msra.mxu0 %v961
      %981 = vmatprep.subr.bf16.mxu0 %v960
      %982 = vmatpush1.bf16.msra.mxu0 %v959
      %983 = vmatprep.subr.bf16.mxu0 %v958
      %984 = vmatpush1.bf16.msra.mxu0 %v957
      %985 = vmatprep.subr.bf16.mxu0 %v956
      %986 = vmatpush1.bf16.msra.mxu0 %v955
      %987 = vmatprep.subr.bf16.mxu0 %v954
      %988 = vmatpush1.bf16.msra.mxu0 %v953
      %989 = vmatprep.subr.bf16.mxu0 %v952
      %990 = vmatpush1.bf16.msra.mxu0 %v951
      %991 = vmatprep.subr.bf16.mxu0 %v950
      %992 = vmatpush1.bf16.msra.mxu0 %v949
      %993 = vmatprep.subr.bf16.mxu0 %v948
      %994 = vmatpush1.bf16.msra.mxu0 %v947
      %995 = vmatprep.subr.bf16.mxu0 0
      %996 = vmatpush2.bf16.msra.mxu0 0
      %997 = vmatprep.subr.bf16.mxu0 0
      %998 = vmatpush2.bf16.msra.mxu0 0
      %999 = vmatprep.subr.bf16.mxu0 0
      %1000 = vmatpush2.bf16.msra.mxu0 0
      %1001 = vmatprep.subr.bf16.mxu0 0
      %1002 = vmatpush2.bf16.msra.mxu0 0
      %1003 = vmatprep.subr.bf16.mxu0 0
      %1004 = vmatpush2.bf16.msra.mxu0 0
      %1005 = vmatprep.subr.bf16.mxu0 0
      %1006 = vmatpush2.bf16.msra.mxu0 0
      %1007 = vmatprep.subr.bf16.mxu0 0
      %1008 = vmatpush2.bf16.msra.mxu0 0
      %1009 = vmatprep.subr.bf16.mxu0 0
      %1010 = vmatpush2.bf16.msra.mxu0 0
      %1011 = vmatprep.mubr.bf16.mxu0 0
      %1012 = vmatmul.mubr.bf16.gmra.mxu0 %v867
      %v1013 = vpop.f32.mrf.mxu0
      %v1014 = vadd.f32 %v796, %v1013
      %v1015 = vpop.f32.mrf.mxu0
      %v1016 = vadd.f32 %v800, %v1015
      %v1017 = vpop.f32.mrf.mxu0
      %v1018 = vadd.f32 %v796, %v1017
      %v1019 = vpop.f32.mrf.mxu0
      %v1020 = vadd.f32 %v800, %v1019
      %1021 = vmatprep.mubr.bf16.mxu0 0
      %1022 = vmatmul.mubr.bf16.gmra.mxu0 %v868
      %v1023 = vpop.f32.mrf.mxu0
      %v1024 = vadd.f32 %v796, %v1023
      %v1025 = vpop.f32.mrf.mxu0
      %v1026 = vadd.f32 %v800, %v1025
      %v1027 = vpop.f32.mrf.mxu0
      %v1028 = vadd.f32 %v796, %v1027
      %v1029 = vpop.f32.mrf.mxu0
      %v1030 = vadd.f32 %v800, %v1029
      %1031 = vmatprep.mubr.bf16.mxu0 0
      %1032 = vmatmul.mubr.bf16.gmra.mxu0 %v869
      %v1033 = vpop.f32.mrf.mxu0
      %v1034 = vadd.f32 %v796, %v1033
      %v1035 = vpop.f32.mrf.mxu0
      %v1036 = vadd.f32 %v800, %v1035
      %v1037 = vpop.f32.mrf.mxu0
      %v1038 = vadd.f32 %v796, %v1037
      %v1039 = vpop.f32.mrf.mxu0
      %v1040 = vadd.f32 %v800, %v1039
      %1041 = vmatprep.mubr.bf16.mxu0 0
      %1042 = vmatmul.mubr.bf16.gmra.mxu0 %v870
      %v1043 = vpop.f32.mrf.mxu0
      %v1044 = vadd.f32 %v796, %v1043
      %v1045 = vpop.f32.mrf.mxu0
      %v1046 = vadd.f32 %v800, %v1045
      %v1047 = vpop.f32.mrf.mxu0
      %v1048 = vadd.f32 %v796, %v1047
      %v1049 = vpop.f32.mrf.mxu0
      %v1050 = vadd.f32 %v800, %v1049
      %1051 = vmatprep.mubr.bf16.mxu0 0
      %1052 = vmatmul.mubr.bf16.gmra.mxu0 %v871
      %v1053 = vpop.f32.mrf.mxu0
      %v1054 = vadd.f32 %v796, %v1053
      %v1055 = vpop.f32.mrf.mxu0
      %v1056 = vadd.f32 %v800, %v1055
      %v1057 = vpop.f32.mrf.mxu0
      %v1058 = vadd.f32 %v796, %v1057
      %v1059 = vpop.f32.mrf.mxu0
      %v1060 = vadd.f32 %v800, %v1059
      %1061 = vmatprep.mubr.bf16.mxu0 0
      %1062 = vmatmul.mubr.bf16.gmra.mxu0 %v872
      %v1063 = vpop.f32.mrf.mxu0
      %v1064 = vadd.f32 %v796, %v1063
      %v1065 = vpop.f32.mrf.mxu0
      %v1066 = vadd.f32 %v800, %v1065
      %v1067 = vpop.f32.mrf.mxu0
      %v1068 = vadd.f32 %v796, %v1067
      %v1069 = vpop.f32.mrf.mxu0
      %v1070 = vadd.f32 %v800, %v1069
      %1071 = vmatprep.mubr.bf16.mxu0 0
      %1072 = vmatmul.mubr.bf16.gmra.mxu0 %v873
      %v1073 = vpop.f32.mrf.mxu0
      %v1074 = vadd.f32 %v796, %v1073
      %v1075 = vpop.f32.mrf.mxu0
      %v1076 = vadd.f32 %v800, %v1075
      %v1077 = vpop.f32.mrf.mxu0
      %v1078 = vadd.f32 %v796, %v1077
      %v1079 = vpop.f32.mrf.mxu0
      %v1080 = vadd.f32 %v800, %v1079
      %1081 = vmatprep.mubr.bf16.mxu0 0
      %1082 = vmatmul.mubr.bf16.gmra.mxu0 %v874
      %v1083 = vpop.f32.mrf.mxu0
      %v1084 = vadd.f32 %v796, %v1083
      %v1085 = vpop.f32.mrf.mxu0
      %v1086 = vadd.f32 %v800, %v1085
      %v1087 = vpop.f32.mrf.mxu0
      %v1088 = vadd.f32 %v796, %v1087
      %v1089 = vpop.f32.mrf.mxu0
      %v1090 = vadd.f32 %v800, %v1089
      %1091 = vmatprep.mubr.bf16.mxu0 0
      %1092 = vmatmul.mubr.bf16.gmra.mxu0 %v875
      %v1093 = vpop.f32.mrf.mxu0
      %v1094 = vadd.f32 %v796, %v1093
      %v1095 = vpop.f32.mrf.mxu0
      %v1096 = vadd.f32 %v800, %v1095
      %v1097 = vpop.f32.mrf.mxu0
      %v1098 = vadd.f32 %v796, %v1097
      %v1099 = vpop.f32.mrf.mxu0
      %v1100 = vadd.f32 %v800, %v1099
      %1101 = vmatprep.mubr.bf16.mxu0 0
      %1102 = vmatmul.mubr.bf16.gmra.mxu0 %v876
      %v1103 = vpop.f32.mrf.mxu0
      %v1104 = vadd.f32 %v796, %v1103
      %v1105 = vpop.f32.mrf.mxu0
      %v1106 = vadd.f32 %v800, %v1105
      %v1107 = vpop.f32.mrf.mxu0
      %v1108 = vadd.f32 %v796, %v1107
      %v1109 = vpop.f32.mrf.mxu0
      %v1110 = vadd.f32 %v800, %v1109
      %1111 = vmatprep.mubr.bf16.mxu0 0
      %1112 = vmatmul.mubr.bf16.gmra.mxu0 %v877
      %v1113 = vpop.f32.mrf.mxu0
      %v1114 = vadd.f32 %v796, %v1113
      %v1115 = vpop.f32.mrf.mxu0
      %v1116 = vadd.f32 %v800, %v1115
      %v1117 = vpop.f32.mrf.mxu0
      %v1118 = vadd.f32 %v796, %v1117
      %v1119 = vpop.f32.mrf.mxu0
      %v1120 = vadd.f32 %v800, %v1119
      %1121 = vmatprep.mubr.bf16.mxu0 0
      %1122 = vmatmul.mubr.bf16.gmra.mxu0 %v878
      %v1123 = vpop.f32.mrf.mxu0
      %v1124 = vadd.f32 %v796, %v1123
      %v1125 = vpop.f32.mrf.mxu0
      %v1126 = vadd.f32 %v800, %v1125
      %v1127 = vpop.f32.mrf.mxu0
      %v1128 = vadd.f32 %v796, %v1127
      %v1129 = vpop.f32.mrf.mxu0
      %v1130 = vadd.f32 %v800, %v1129
      %1131 = vmatprep.mubr.bf16.mxu0 0
      %1132 = vmatmul.mubr.bf16.gmra.mxu0 %v879
      %v1133 = vpop.f32.mrf.mxu0
      %v1134 = vadd.f32 %v796, %v1133
      %v1135 = vpop.f32.mrf.mxu0
      %v1136 = vadd.f32 %v800, %v1135
      %v1137 = vpop.f32.mrf.mxu0
      %v1138 = vadd.f32 %v796, %v1137
      %v1139 = vpop.f32.mrf.mxu0
      %v1140 = vadd.f32 %v800, %v1139
      %1141 = vmatprep.mubr.bf16.mxu0 0
      %1142 = vmatmul.mubr.bf16.gmra.mxu0 %v880
      %v1143 = vpop.f32.mrf.mxu0
      %v1144 = vadd.f32 %v796, %v1143
      %v1145 = vpop.f32.mrf.mxu0
      %v1146 = vadd.f32 %v800, %v1145
      %v1147 = vpop.f32.mrf.mxu0
      %v1148 = vadd.f32 %v796, %v1147
      %v1149 = vpop.f32.mrf.mxu0
      %v1150 = vadd.f32 %v800, %v1149
      %1151 = vmatprep.mubr.bf16.mxu0 0
      %1152 = vmatmul.mubr.bf16.gmra.mxu0 %v881
      %v1153 = vpop.f32.mrf.mxu0
      %v1154 = vadd.f32 %v796, %v1153
      %v1155 = vpop.f32.mrf.mxu0
      %v1156 = vadd.f32 %v800, %v1155
      %v1157 = vpop.f32.mrf.mxu0
      %v1158 = vadd.f32 %v796, %v1157
      %v1159 = vpop.f32.mrf.mxu0
      %v1160 = vadd.f32 %v800, %v1159
      %1161 = vmatprep.mubr.bf16.mxu0 0
      %1162 = vmatmul.mubr.bf16.gmra.mxu0 %v882
      %v1163 = vpop.f32.mrf.mxu0
      %v1164 = vadd.f32 %v796, %v1163
      %v1165 = vpop.f32.mrf.mxu0
      %v1166 = vadd.f32 %v800, %v1165
      %v1167 = vpop.f32.mrf.mxu0
      %v1168 = vadd.f32 %v796, %v1167
      %v1169 = vpop.f32.mrf.mxu0
      %v1170 = vadd.f32 %v800, %v1169
      %1171 = vdwg.mxu0
      %v1172 = vld [vmem:[%s577] sm:$0x3]
      %v1174 = vlaneseq
      %v1175 = vshrl.u32 %v1174, 7
      %v1176 = vsub.s32 0, %v1175
      %v1177 = vrot.slane %v1172, %v1176
      %v1178 = vlaneseq
      %v1179 = vshrl.u32 %v1178, 7
      %v1180 = vsub.s32 1, %v1179
      %v1181 = vrot.slane %v1172, %v1180
      %v1184 = vadd.f32 %v1014, %v1177
      %v1185 = vadd.f32 %v1016, %v1181
      %v1186 = vadd.f32 %v1018, %v1177
      %v1187 = vadd.f32 %v1020, %v1181
      %v1188 = vadd.f32 %v1024, %v1177
      %v1189 = vadd.f32 %v1026, %v1181
      %v1190 = vadd.f32 %v1028, %v1177
      %v1191 = vadd.f32 %v1030, %v1181
      %v1192 = vadd.f32 %v1034, %v1177
      %v1193 = vadd.f32 %v1036, %v1181
      %v1194 = vadd.f32 %v1038, %v1177
      %v1195 = vadd.f32 %v1040, %v1181
      %v1196 = vadd.f32 %v1044, %v1177
      %v1197 = vadd.f32 %v1046, %v1181
      %v1198 = vadd.f32 %v1048, %v1177
      %v1199 = vadd.f32 %v1050, %v1181
      %v1200 = vadd.f32 %v1054, %v1177
      %v1201 = vadd.f32 %v1056, %v1181
      %v1202 = vadd.f32 %v1058, %v1177
      %v1203 = vadd.f32 %v1060, %v1181
      %v1204 = vadd.f32 %v1064, %v1177
      %v1205 = vadd.f32 %v1066, %v1181
      %v1206 = vadd.f32 %v1068, %v1177
      %v1207 = vadd.f32 %v1070, %v1181
      %v1208 = vadd.f32 %v1074, %v1177
      %v1209 = vadd.f32 %v1076, %v1181
      %v1210 = vadd.f32 %v1078, %v1177
      %v1211 = vadd.f32 %v1080, %v1181
      %v1212 = vadd.f32 %v1084, %v1177
      %v1213 = vadd.f32 %v1086, %v1181
      %v1214 = vadd.f32 %v1088, %v1177
      %v1215 = vadd.f32 %v1090, %v1181
      %v1216 = vadd.f32 %v1094, %v1177
      %v1217 = vadd.f32 %v1096, %v1181
      %v1218 = vadd.f32 %v1098, %v1177
      %v1219 = vadd.f32 %v1100, %v1181
      %v1220 = vadd.f32 %v1104, %v1177
      %v1221 = vadd.f32 %v1106, %v1181
      %v1222 = vadd.f32 %v1108, %v1177
      %v1223 = vadd.f32 %v1110, %v1181
      %v1224 = vadd.f32 %v1114, %v1177
      %v1225 = vadd.f32 %v1116, %v1181
      %v1226 = vadd.f32 %v1118, %v1177
      %v1227 = vadd.f32 %v1120, %v1181
      %v1228 = vadd.f32 %v1124, %v1177
      %v1229 = vadd.f32 %v1126, %v1181
      %v1230 = vadd.f32 %v1128, %v1177
      %v1231 = vadd.f32 %v1130, %v1181
      %v1232 = vadd.f32 %v1134, %v1177
      %v1233 = vadd.f32 %v1136, %v1181
      %v1234 = vadd.f32 %v1138, %v1177
      %v1235 = vadd.f32 %v1140, %v1181
      %v1236 = vadd.f32 %v1144, %v1177
      %v1237 = vadd.f32 %v1146, %v1181
      %v1238 = vadd.f32 %v1148, %v1177
      %v1239 = vadd.f32 %v1150, %v1181
      %v1240 = vadd.f32 %v1154, %v1177
      %v1241 = vadd.f32 %v1156, %v1181
      %v1242 = vadd.f32 %v1158, %v1177
      %v1243 = vadd.f32 %v1160, %v1181
      %v1244 = vadd.f32 %v1164, %v1177
      %v1245 = vadd.f32 %v1166, %v1181
      %v1246 = vadd.f32 %v1168, %v1177
      %v1247 = vadd.f32 %v1170, %v1181
      %v1248 = vld [vmem:[%s573] sm:$0xff]
      %v1249 = vld [vmem:[%s573 + $0x8] sm:$0xff]
      %v1250 = vld [vmem:[%s573 + $0x10] sm:$0xff]
      %v1251 = vld [vmem:[%s573 + $0x18] sm:$0xff]
      %v1252 = vld [vmem:[%s573 + $0x20] sm:$0xff]
      %v1253 = vld [vmem:[%s573 + $0x28] sm:$0xff]
      %v1254 = vld [vmem:[%s573 + $0x30] sm:$0xff]
      %v1255 = vld [vmem:[%s573 + $0x38] sm:$0xff]
      %v1256 = vld [vmem:[%s573 + $0x40] sm:$0xff]
      %v1257 = vld [vmem:[%s573 + $0x48] sm:$0xff]
      %v1258 = vld [vmem:[%s573 + $0x50] sm:$0xff]
      %v1259 = vld [vmem:[%s573 + $0x58] sm:$0xff]
      %v1260 = vld [vmem:[%s573 + $0x60] sm:$0xff]
      %v1261 = vld [vmem:[%s573 + $0x68] sm:$0xff]
      %v1262 = vld [vmem:[%s573 + $0x70] sm:$0xff]
      %v1263 = vld [vmem:[%s573 + $0x78] sm:$0xff]
      %vm1264 = vsmask.f32 4352
      %v1266 = vshrl.u32 %v726, 16
      %v1268 = vrot.slane %v1266, 3
      %v1269 = vshll.u32 %v726, 16
      %v1271 = vrot.slane %v1269, 4
      %v1272 = vor.u32 %v1268, %v1271
      %v1274 = vshrl.u32 %v727, 16
      %v1276 = vrot.slane %v1274, 3
      %v1277 = vshll.u32 %v727, 16
      %v1279 = vrot.slane %v1277, 4
      %v1280 = vor.u32 %v1276, %v1279
      %v1281 = vsel %vm1264, %v1272, %v1280
      %v1283 = vshrl.u32 %v728, 16
      %v1285 = vrot.slane %v1283, 3
      %v1286 = vshll.u32 %v728, 16
      %v1288 = vrot.slane %v1286, 4
      %v1289 = vor.u32 %v1285, %v1288
      %v1290 = vsel %vm1264, %v1280, %v1289
      %v1292 = vshrl.u32 %v729, 16
      %v1294 = vrot.slane %v1292, 3
      %v1295 = vshll.u32 %v729, 16
      %v1297 = vrot.slane %v1295, 4
      %v1298 = vor.u32 %v1294, %v1297
      %v1299 = vsel %vm1264, %v1289, %v1298
      %v1301 = vshrl.u32 %v730, 16
      %v1303 = vrot.slane %v1301, 3
      %v1304 = vshll.u32 %v730, 16
      %v1306 = vrot.slane %v1304, 4
      %v1307 = vor.u32 %v1303, %v1306
      %v1308 = vsel %vm1264, %v1298, %v1307
      %v1310 = vshrl.u32 %v731, 16
      %v1312 = vrot.slane %v1310, 3
      %v1313 = vshll.u32 %v731, 16
      %v1315 = vrot.slane %v1313, 4
      %v1316 = vor.u32 %v1312, %v1315
      %v1317 = vsel %vm1264, %v1307, %v1316
      %v1319 = vshrl.u32 %v732, 16
      %v1321 = vrot.slane %v1319, 3
      %v1322 = vshll.u32 %v732, 16
      %v1324 = vrot.slane %v1322, 4
      %v1325 = vor.u32 %v1321, %v1324
      %v1326 = vsel %vm1264, %v1316, %v1325
      %v1328 = vshrl.u32 %v733, 16
      %v1330 = vrot.slane %v1328, 3
      %v1331 = vshll.u32 %v733, 16
      %v1333 = vrot.slane %v1331, 4
      %v1334 = vor.u32 %v1330, %v1333
      %v1335 = vsel %vm1264, %v1325, %v1334
      %v1337 = vshrl.u32 %v734, 16
      %v1339 = vrot.slane %v1337, 3
      %v1340 = vshll.u32 %v734, 16
      %v1342 = vrot.slane %v1340, 4
      %v1343 = vor.u32 %v1339, %v1342
      %v1344 = vsel %vm1264, %v1334, %v1343
      %v1346 = vshrl.u32 %v735, 16
      %v1348 = vrot.slane %v1346, 3
      %v1349 = vshll.u32 %v735, 16
      %v1351 = vrot.slane %v1349, 4
      %v1352 = vor.u32 %v1348, %v1351
      %v1353 = vsel %vm1264, %v1343, %v1352
      %v1355 = vshrl.u32 %v736, 16
      %v1357 = vrot.slane %v1355, 3
      %v1358 = vshll.u32 %v736, 16
      %v1360 = vrot.slane %v1358, 4
      %v1361 = vor.u32 %v1357, %v1360
      %v1362 = vsel %vm1264, %v1352, %v1361
      %v1364 = vshrl.u32 %v737, 16
      %v1366 = vrot.slane %v1364, 3
      %v1367 = vshll.u32 %v737, 16
      %v1369 = vrot.slane %v1367, 4
      %v1370 = vor.u32 %v1366, %v1369
      %v1371 = vsel %vm1264, %v1361, %v1370
      %v1373 = vshrl.u32 %v738, 16
      %v1375 = vrot.slane %v1373, 3
      %v1376 = vshll.u32 %v738, 16
      %v1378 = vrot.slane %v1376, 4
      %v1379 = vor.u32 %v1375, %v1378
      %v1380 = vsel %vm1264, %v1370, %v1379
      %v1382 = vshrl.u32 %v739, 16
      %v1384 = vrot.slane %v1382, 3
      %v1385 = vshll.u32 %v739, 16
      %v1387 = vrot.slane %v1385, 4
      %v1388 = vor.u32 %v1384, %v1387
      %v1389 = vsel %vm1264, %v1379, %v1388
      %v1391 = vshrl.u32 %v740, 16
      %v1393 = vrot.slane %v1391, 3
      %v1394 = vshll.u32 %v740, 16
      %v1396 = vrot.slane %v1394, 4
      %v1397 = vor.u32 %v1393, %v1396
      %v1398 = vsel %vm1264, %v1388, %v1397
      %v1400 = vshrl.u32 %v741, 16
      %v1402 = vrot.slane %v1400, 3
      %v1403 = vshll.u32 %v741, 16
      %v1405 = vrot.slane %v1403, 4
      %v1406 = vor.u32 %v1402, %v1405
      %v1407 = vsel %vm1264, %v1397, %v1406
      %v1409 = vshrl.u32 %v742, 16
      %v1411 = vrot.slane %v1409, 3
      %v1412 = vshll.u32 %v742, 16
      %v1414 = vrot.slane %v1412, 4
      %v1415 = vor.u32 %v1411, %v1414
      %v1416 = vsel %vm1264, %v1406, %v1415
      %v1449 = vunpack.c.l.b16 %v1248
      %v1450 = vunpack.c.h.b16 %v1248
      %v1451 = vunpack.c.l.b16 %v1249
      %v1452 = vunpack.c.h.b16 %v1249
      %v1453 = vunpack.c.l.b16 %v1250
      %v1454 = vunpack.c.h.b16 %v1250
      %v1455 = vunpack.c.l.b16 %v1251
      %v1456 = vunpack.c.h.b16 %v1251
      %v1457 = vunpack.c.l.b16 %v1252
      %v1458 = vunpack.c.h.b16 %v1252
      %v1459 = vunpack.c.l.b16 %v1253
      %v1460 = vunpack.c.h.b16 %v1253
      %v1461 = vunpack.c.l.b16 %v1254
      %v1462 = vunpack.c.h.b16 %v1254
      %v1463 = vunpack.c.l.b16 %v1255
      %v1464 = vunpack.c.h.b16 %v1255
      %v1465 = vunpack.c.l.b16 %v1256
      %v1466 = vunpack.c.h.b16 %v1256
      %v1467 = vunpack.c.l.b16 %v1257
      %v1468 = vunpack.c.h.b16 %v1257
      %v1469 = vunpack.c.l.b16 %v1258
      %v1470 = vunpack.c.h.b16 %v1258
      %v1471 = vunpack.c.l.b16 %v1259
      %v1472 = vunpack.c.h.b16 %v1259
      %v1473 = vunpack.c.l.b16 %v1260
      %v1474 = vunpack.c.h.b16 %v1260
      %v1475 = vunpack.c.l.b16 %v1261
      %v1476 = vunpack.c.h.b16 %v1261
      %v1477 = vunpack.c.l.b16 %v1262
      %v1478 = vunpack.c.h.b16 %v1262
      %v1479 = vunpack.c.l.b16 %v1263
      %v1480 = vunpack.c.h.b16 %v1263
      %v1481 = vpack.c.b16 %v1451, %v1449
      %v1482 = vpack.c.b16 %v1452, %v1450
      %v1483 = vpack.c.b16 %v1455, %v1453
      %v1484 = vpack.c.b16 %v1456, %v1454
      %v1485 = vpack.c.b16 %v1459, %v1457
      %v1486 = vpack.c.b16 %v1460, %v1458
      %v1487 = vpack.c.b16 %v1463, %v1461
      %v1488 = vpack.c.b16 %v1464, %v1462
      %v1489 = vpack.c.b16 %v1467, %v1465
      %v1490 = vpack.c.b16 %v1468, %v1466
      %v1491 = vpack.c.b16 %v1471, %v1469
      %v1492 = vpack.c.b16 %v1472, %v1470
      %v1493 = vpack.c.b16 %v1475, %v1473
      %v1494 = vpack.c.b16 %v1476, %v1474
      %v1495 = vpack.c.b16 %v1479, %v1477
      %v1496 = vpack.c.b16 %v1480, %v1478
      %1513 = vmatprep.subr.bf16.mxu0 %v1496
      %1514 = vmatpush1.bf16.msra.mxu0 %v1495
      %1515 = vmatprep.subr.bf16.mxu0 %v1494
      %1516 = vmatpush1.bf16.msra.mxu0 %v1493
      %1517 = vmatprep.subr.bf16.mxu0 %v1492
      %1518 = vmatpush1.bf16.msra.mxu0 %v1491
      %1519 = vmatprep.subr.bf16.mxu0 %v1490
      %1520 = vmatpush1.bf16.msra.mxu0 %v1489
      %1521 = vmatprep.subr.bf16.mxu0 %v1488
      %1522 = vmatpush1.bf16.msra.mxu0 %v1487
      %1523 = vmatprep.subr.bf16.mxu0 %v1486
      %1524 = vmatpush1.bf16.msra.mxu0 %v1485
      %1525 = vmatprep.subr.bf16.mxu0 %v1484
      %1526 = vmatpush1.bf16.msra.mxu0 %v1483
      %1527 = vmatprep.subr.bf16.mxu0 %v1482
      %1528 = vmatpush1.bf16.msra.mxu0 %v1481
      %1529 = vmatprep.subr.bf16.mxu0 0
      %1530 = vmatpush2.bf16.msra.mxu0 0
      %1531 = vmatprep.subr.bf16.mxu0 0
      %1532 = vmatpush2.bf16.msra.mxu0 0
      %1533 = vmatprep.subr.bf16.mxu0 0
      %1534 = vmatpush2.bf16.msra.mxu0 0
      %1535 = vmatprep.subr.bf16.mxu0 0
      %1536 = vmatpush2.bf16.msra.mxu0 0
      %1537 = vmatprep.subr.bf16.mxu0 0
      %1538 = vmatpush2.bf16.msra.mxu0 0
      %1539 = vmatprep.subr.bf16.mxu0 0
      %1540 = vmatpush2.bf16.msra.mxu0 0
      %1541 = vmatprep.subr.bf16.mxu0 0
      %1542 = vmatpush2.bf16.msra.mxu0 0
      %1543 = vmatprep.subr.bf16.mxu0 0
      %1544 = vmatpush2.bf16.msra.mxu0 0
      %1545 = vmatprep.mubr.bf16.mxu0 0
      %1546 = vmatmul.mubr.bf16.gmra.mxu0 %v1281
      %v1547 = vpop.f32.mrf.mxu0
      %v1548 = vadd.f32 0.0, %v1547
      %v1549 = vpop.f32.mrf.mxu0
      %v1550 = vadd.f32 0.0, %v1549
      %v1551 = vpop.f32.mrf.mxu0
      %v1552 = vadd.f32 0.0, %v1551
      %v1553 = vpop.f32.mrf.mxu0
      %v1554 = vadd.f32 0.0, %v1553
      %1555 = vmatprep.mubr.bf16.mxu0 0
      %1556 = vmatmul.mubr.bf16.gmra.mxu0 %v1290
      %v1557 = vpop.f32.mrf.mxu0
      %v1558 = vadd.f32 0.0, %v1557
      %v1559 = vpop.f32.mrf.mxu0
      %v1560 = vadd.f32 0.0, %v1559
      %v1561 = vpop.f32.mrf.mxu0
      %v1562 = vadd.f32 0.0, %v1561
      %v1563 = vpop.f32.mrf.mxu0
      %v1564 = vadd.f32 0.0, %v1563
      %1565 = vmatprep.mubr.bf16.mxu0 0
      %1566 = vmatmul.mubr.bf16.gmra.mxu0 %v1299
      %v1567 = vpop.f32.mrf.mxu0
      %v1568 = vadd.f32 0.0, %v1567
      %v1569 = vpop.f32.mrf.mxu0
      %v1570 = vadd.f32 0.0, %v1569
      %v1571 = vpop.f32.mrf.mxu0
      %v1572 = vadd.f32 0.0, %v1571
      %v1573 = vpop.f32.mrf.mxu0
      %v1574 = vadd.f32 0.0, %v1573
      %1575 = vmatprep.mubr.bf16.mxu0 0
      %1576 = vmatmul.mubr.bf16.gmra.mxu0 %v1308
      %v1577 = vpop.f32.mrf.mxu0
      %v1578 = vadd.f32 0.0, %v1577
      %v1579 = vpop.f32.mrf.mxu0
      %v1580 = vadd.f32 0.0, %v1579
      %v1581 = vpop.f32.mrf.mxu0
      %v1582 = vadd.f32 0.0, %v1581
      %v1583 = vpop.f32.mrf.mxu0
      %v1584 = vadd.f32 0.0, %v1583
      %1585 = vmatprep.mubr.bf16.mxu0 0
      %1586 = vmatmul.mubr.bf16.gmra.mxu0 %v1317
      %v1587 = vpop.f32.mrf.mxu0
      %v1588 = vadd.f32 0.0, %v1587
      %v1589 = vpop.f32.mrf.mxu0
      %v1590 = vadd.f32 0.0, %v1589
      %v1591 = vpop.f32.mrf.mxu0
      %v1592 = vadd.f32 0.0, %v1591
      %v1593 = vpop.f32.mrf.mxu0
      %v1594 = vadd.f32 0.0, %v1593
      %1595 = vmatprep.mubr.bf16.mxu0 0
      %1596 = vmatmul.mubr.bf16.gmra.mxu0 %v1326
      %v1597 = vpop.f32.mrf.mxu0
      %v1598 = vadd.f32 0.0, %v1597
      %v1599 = vpop.f32.mrf.mxu0
      %v1600 = vadd.f32 0.0, %v1599
      %v1601 = vpop.f32.mrf.mxu0
      %v1602 = vadd.f32 0.0, %v1601
      %v1603 = vpop.f32.mrf.mxu0
      %v1604 = vadd.f32 0.0, %v1603
      %1605 = vmatprep.mubr.bf16.mxu0 0
      %1606 = vmatmul.mubr.bf16.gmra.mxu0 %v1335
      %v1607 = vpop.f32.mrf.mxu0
      %v1608 = vadd.f32 0.0, %v1607
      %v1609 = vpop.f32.mrf.mxu0
      %v1610 = vadd.f32 0.0, %v1609
      %v1611 = vpop.f32.mrf.mxu0
      %v1612 = vadd.f32 0.0, %v1611
      %v1613 = vpop.f32.mrf.mxu0
      %v1614 = vadd.f32 0.0, %v1613
      %1615 = vmatprep.mubr.bf16.mxu0 0
      %1616 = vmatmul.mubr.bf16.gmra.mxu0 %v1344
      %v1617 = vpop.f32.mrf.mxu0
      %v1618 = vadd.f32 0.0, %v1617
      %v1619 = vpop.f32.mrf.mxu0
      %v1620 = vadd.f32 0.0, %v1619
      %v1621 = vpop.f32.mrf.mxu0
      %v1622 = vadd.f32 0.0, %v1621
      %v1623 = vpop.f32.mrf.mxu0
      %v1624 = vadd.f32 0.0, %v1623
      %1625 = vmatprep.mubr.bf16.mxu0 0
      %1626 = vmatmul.mubr.bf16.gmra.mxu0 %v1353
      %v1627 = vpop.f32.mrf.mxu0
      %v1628 = vadd.f32 0.0, %v1627
      %v1629 = vpop.f32.mrf.mxu0
      %v1630 = vadd.f32 0.0, %v1629
      %v1631 = vpop.f32.mrf.mxu0
      %v1632 = vadd.f32 0.0, %v1631
      %v1633 = vpop.f32.mrf.mxu0
      %v1634 = vadd.f32 0.0, %v1633
      %1635 = vmatprep.mubr.bf16.mxu0 0
      %1636 = vmatmul.mubr.bf16.gmra.mxu0 %v1362
      %v1637 = vpop.f32.mrf.mxu0
      %v1638 = vadd.f32 0.0, %v1637
      %v1639 = vpop.f32.mrf.mxu0
      %v1640 = vadd.f32 0.0, %v1639
      %v1641 = vpop.f32.mrf.mxu0
      %v1642 = vadd.f32 0.0, %v1641
      %v1643 = vpop.f32.mrf.mxu0
      %v1644 = vadd.f32 0.0, %v1643
      %1645 = vmatprep.mubr.bf16.mxu0 0
      %1646 = vmatmul.mubr.bf16.gmra.mxu0 %v1371
      %v1647 = vpop.f32.mrf.mxu0
      %v1648 = vadd.f32 0.0, %v1647
      %v1649 = vpop.f32.mrf.mxu0
      %v1650 = vadd.f32 0.0, %v1649
      %v1651 = vpop.f32.mrf.mxu0
      %v1652 = vadd.f32 0.0, %v1651
      %v1653 = vpop.f32.mrf.mxu0
      %v1654 = vadd.f32 0.0, %v1653
      %1655 = vmatprep.mubr.bf16.mxu0 0
      %1656 = vmatmul.mubr.bf16.gmra.mxu0 %v1380
      %v1657 = vpop.f32.mrf.mxu0
      %v1658 = vadd.f32 0.0, %v1657
      %v1659 = vpop.f32.mrf.mxu0
      %v1660 = vadd.f32 0.0, %v1659
      %v1661 = vpop.f32.mrf.mxu0
      %v1662 = vadd.f32 0.0, %v1661
      %v1663 = vpop.f32.mrf.mxu0
      %v1664 = vadd.f32 0.0, %v1663
      %1665 = vmatprep.mubr.bf16.mxu0 0
      %1666 = vmatmul.mubr.bf16.gmra.mxu0 %v1389
      %v1667 = vpop.f32.mrf.mxu0
      %v1668 = vadd.f32 0.0, %v1667
      %v1669 = vpop.f32.mrf.mxu0
      %v1670 = vadd.f32 0.0, %v1669
      %v1671 = vpop.f32.mrf.mxu0
      %v1672 = vadd.f32 0.0, %v1671
      %v1673 = vpop.f32.mrf.mxu0
      %v1674 = vadd.f32 0.0, %v1673
      %1675 = vmatprep.mubr.bf16.mxu0 0
      %1676 = vmatmul.mubr.bf16.gmra.mxu0 %v1398
      %v1677 = vpop.f32.mrf.mxu0
      %v1678 = vadd.f32 0.0, %v1677
      %v1679 = vpop.f32.mrf.mxu0
      %v1680 = vadd.f32 0.0, %v1679
      %v1681 = vpop.f32.mrf.mxu0
      %v1682 = vadd.f32 0.0, %v1681
      %v1683 = vpop.f32.mrf.mxu0
      %v1684 = vadd.f32 0.0, %v1683
      %1685 = vmatprep.mubr.bf16.mxu0 0
      %1686 = vmatmul.mubr.bf16.gmra.mxu0 %v1407
      %v1687 = vpop.f32.mrf.mxu0
      %v1688 = vadd.f32 0.0, %v1687
      %v1689 = vpop.f32.mrf.mxu0
      %v1690 = vadd.f32 0.0, %v1689
      %v1691 = vpop.f32.mrf.mxu0
      %v1692 = vadd.f32 0.0, %v1691
      %v1693 = vpop.f32.mrf.mxu0
      %v1694 = vadd.f32 0.0, %v1693
      %1695 = vmatprep.mubr.bf16.mxu0 0
      %1696 = vmatmul.mubr.bf16.gmra.mxu0 %v1416
      %v1697 = vpop.f32.mrf.mxu0
      %v1698 = vadd.f32 0.0, %v1697
      %v1699 = vpop.f32.mrf.mxu0
      %v1700 = vadd.f32 0.0, %v1699
      %v1701 = vpop.f32.mrf.mxu0
      %v1702 = vadd.f32 0.0, %v1701
      %v1703 = vpop.f32.mrf.mxu0
      %v1704 = vadd.f32 0.0, %v1703
      %1705 = vdwg.mxu0
      %v1706 = vadd.f32 %v1184, %v1548
      %v1707 = vadd.f32 %v1185, %v1550
      %v1708 = vadd.f32 %v1186, %v1552
      %v1709 = vadd.f32 %v1187, %v1554
      %v1710 = vadd.f32 %v1188, %v1558
      %v1711 = vadd.f32 %v1189, %v1560
      %v1712 = vadd.f32 %v1190, %v1562
      %v1713 = vadd.f32 %v1191, %v1564
      %v1714 = vadd.f32 %v1192, %v1568
      %v1715 = vadd.f32 %v1193, %v1570
      %v1716 = vadd.f32 %v1194, %v1572
      %v1717 = vadd.f32 %v1195, %v1574
      %v1718 = vadd.f32 %v1196, %v1578
      %v1719 = vadd.f32 %v1197, %v1580
      %v1720 = vadd.f32 %v1198, %v1582
      %v1721 = vadd.f32 %v1199, %v1584
      %v1722 = vadd.f32 %v1200, %v1588
      %v1723 = vadd.f32 %v1201, %v1590
      %v1724 = vadd.f32 %v1202, %v1592
      %v1725 = vadd.f32 %v1203, %v1594
      %v1726 = vadd.f32 %v1204, %v1598
      %v1727 = vadd.f32 %v1205, %v1600
      %v1728 = vadd.f32 %v1206, %v1602
      %v1729 = vadd.f32 %v1207, %v1604
      %v1730 = vadd.f32 %v1208, %v1608
      %v1731 = vadd.f32 %v1209, %v1610
      %v1732 = vadd.f32 %v1210, %v1612
      %v1733 = vadd.f32 %v1211, %v1614
      %v1734 = vadd.f32 %v1212, %v1618
      %v1735 = vadd.f32 %v1213, %v1620
      %v1736 = vadd.f32 %v1214, %v1622
      %v1737 = vadd.f32 %v1215, %v1624
      %v1738 = vadd.f32 %v1216, %v1628
      %v1739 = vadd.f32 %v1217, %v1630
      %v1740 = vadd.f32 %v1218, %v1632
      %v1741 = vadd.f32 %v1219, %v1634
      %v1742 = vadd.f32 %v1220, %v1638
      %v1743 = vadd.f32 %v1221, %v1640
      %v1744 = vadd.f32 %v1222, %v1642
      %v1745 = vadd.f32 %v1223, %v1644
      %v1746 = vadd.f32 %v1224, %v1648
      %v1747 = vadd.f32 %v1225, %v1650
      %v1748 = vadd.f32 %v1226, %v1652
      %v1749 = vadd.f32 %v1227, %v1654
      %v1750 = vadd.f32 %v1228, %v1658
      %v1751 = vadd.f32 %v1229, %v1660
      %v1752 = vadd.f32 %v1230, %v1662
      %v1753 = vadd.f32 %v1231, %v1664
      %v1754 = vadd.f32 %v1232, %v1668
      %v1755 = vadd.f32 %v1233, %v1670
      %v1756 = vadd.f32 %v1234, %v1672
      %v1757 = vadd.f32 %v1235, %v1674
      %v1758 = vadd.f32 %v1236, %v1678
      %v1759 = vadd.f32 %v1237, %v1680
      %v1760 = vadd.f32 %v1238, %v1682
      %v1761 = vadd.f32 %v1239, %v1684
      %v1762 = vadd.f32 %v1240, %v1688
      %v1763 = vadd.f32 %v1241, %v1690
      %v1764 = vadd.f32 %v1242, %v1692
      %v1765 = vadd.f32 %v1243, %v1694
      %v1766 = vadd.f32 %v1244, %v1698
      %v1767 = vadd.f32 %v1245, %v1700
      %v1768 = vadd.f32 %v1246, %v1702
      %v1769 = vadd.f32 %v1247, %v1704
      %s1770 = scalar_lea.vmem %s573, 128
      %v1771 = vld [vmem:[%s1770] sm:$0xff]
      %v1772 = vld [vmem:[%s1770 + $0x8] sm:$0xff]
      %v1773 = vld [vmem:[%s1770 + $0x10] sm:$0xff]
      %v1774 = vld [vmem:[%s1770 + $0x18] sm:$0xff]
      %v1775 = vld [vmem:[%s1770 + $0x20] sm:$0xff]
      %v1776 = vld [vmem:[%s1770 + $0x28] sm:$0xff]
      %v1777 = vld [vmem:[%s1770 + $0x30] sm:$0xff]
      %v1778 = vld [vmem:[%s1770 + $0x38] sm:$0xff]
      %v1779 = vld [vmem:[%s1770 + $0x40] sm:$0xff]
      %v1780 = vld [vmem:[%s1770 + $0x48] sm:$0xff]
      %v1781 = vld [vmem:[%s1770 + $0x50] sm:$0xff]
      %v1782 = vld [vmem:[%s1770 + $0x58] sm:$0xff]
      %v1783 = vld [vmem:[%s1770 + $0x60] sm:$0xff]
      %v1784 = vld [vmem:[%s1770 + $0x68] sm:$0xff]
      %v1785 = vld [vmem:[%s1770 + $0x70] sm:$0xff]
      %v1786 = vld [vmem:[%s1770 + $0x78] sm:$0xff]
      %vm1804 = vcmask 1043456
      %v1805 = vrot.slane %v726, 4
      %v1806 = vrot.slane %v727, 4
      %v1807 = vsel %vm1804, %v1805, %v1806
      %v1808 = vrot.slane %v728, 4
      %v1809 = vsel %vm1804, %v1806, %v1808
      %v1810 = vrot.slane %v729, 4
      %v1811 = vsel %vm1804, %v1808, %v1810
      %v1812 = vrot.slane %v730, 4
      %v1813 = vsel %vm1804, %v1810, %v1812
      %v1814 = vrot.slane %v731, 4
      %v1815 = vsel %vm1804, %v1812, %v1814
      %v1816 = vrot.slane %v732, 4
      %v1817 = vsel %vm1804, %v1814, %v1816
      %v1818 = vrot.slane %v733, 4
      %v1819 = vsel %vm1804, %v1816, %v1818
      %v1820 = vrot.slane %v734, 4
      %v1821 = vsel %vm1804, %v1818, %v1820
      %v1822 = vrot.slane %v735, 4
      %v1823 = vsel %vm1804, %v1820, %v1822
      %v1824 = vrot.slane %v736, 4
      %v1825 = vsel %vm1804, %v1822, %v1824
      %v1826 = vrot.slane %v737, 4
      %v1827 = vsel %vm1804, %v1824, %v1826
      %v1828 = vrot.slane %v738, 4
      %v1829 = vsel %vm1804, %v1826, %v1828
      %v1830 = vrot.slane %v739, 4
      %v1831 = vsel %vm1804, %v1828, %v1830
      %v1832 = vrot.slane %v740, 4
      %v1833 = vsel %vm1804, %v1830, %v1832
      %v1834 = vrot.slane %v741, 4
      %v1835 = vsel %vm1804, %v1832, %v1834
      %v1836 = vrot.slane %v742, 4
      %v1837 = vsel %vm1804, %v1834, %v1836
      %v1870 = vunpack.c.l.b16 %v1771
      %v1871 = vunpack.c.h.b16 %v1771
      %v1872 = vunpack.c.l.b16 %v1772
      %v1873 = vunpack.c.h.b16 %v1772
      %v1874 = vunpack.c.l.b16 %v1773
      %v1875 = vunpack.c.h.b16 %v1773
      %v1876 = vunpack.c.l.b16 %v1774
      %v1877 = vunpack.c.h.b16 %v1774
      %v1878 = vunpack.c.l.b16 %v1775
      %v1879 = vunpack.c.h.b16 %v1775
      %v1880 = vunpack.c.l.b16 %v1776
      %v1881 = vunpack.c.h.b16 %v1776
      %v1882 = vunpack.c.l.b16 %v1777
      %v1883 = vunpack.c.h.b16 %v1777
      %v1884 = vunpack.c.l.b16 %v1778
      %v1885 = vunpack.c.h.b16 %v1778
      %v1886 = vunpack.c.l.b16 %v1779
      %v1887 = vunpack.c.h.b16 %v1779
      %v1888 = vunpack.c.l.b16 %v1780
      %v1889 = vunpack.c.h.b16 %v1780
      %v1890 = vunpack.c.l.b16 %v1781
      %v1891 = vunpack.c.h.b16 %v1781
      %v1892 = vunpack.c.l.b16 %v1782
      %v1893 = vunpack.c.h.b16 %v1782
      %v1894 = vunpack.c.l.b16 %v1783
      %v1895 = vunpack.c.h.b16 %v1783
      %v1896 = vunpack.c.l.b16 %v1784
      %v1897 = vunpack.c.h.b16 %v1784
      %v1898 = vunpack.c.l.b16 %v1785
      %v1899 = vunpack.c.h.b16 %v1785
      %v1900 = vunpack.c.l.b16 %v1786
      %v1901 = vunpack.c.h.b16 %v1786
      %v1902 = vpack.c.b16 %v1872, %v1870
      %v1903 = vpack.c.b16 %v1873, %v1871
      %v1904 = vpack.c.b16 %v1876, %v1874
      %v1905 = vpack.c.b16 %v1877, %v1875
      %v1906 = vpack.c.b16 %v1880, %v1878
      %v1907 = vpack.c.b16 %v1881, %v1879
      %v1908 = vpack.c.b16 %v1884, %v1882
      %v1909 = vpack.c.b16 %v1885, %v1883
      %v1910 = vpack.c.b16 %v1888, %v1886
      %v1911 = vpack.c.b16 %v1889, %v1887
      %v1912 = vpack.c.b16 %v1892, %v1890
      %v1913 = vpack.c.b16 %v1893, %v1891
      %v1914 = vpack.c.b16 %v1896, %v1894
      %v1915 = vpack.c.b16 %v1897, %v1895
      %v1916 = vpack.c.b16 %v1900, %v1898
      %v1917 = vpack.c.b16 %v1901, %v1899
      %1934 = vmatprep.subr.bf16.mxu0 %v1917
      %1935 = vmatpush1.bf16.msra.mxu0 %v1916
      %1936 = vmatprep.subr.bf16.mxu0 %v1915
      %1937 = vmatpush1.bf16.msra.mxu0 %v1914
      %1938 = vmatprep.subr.bf16.mxu0 %v1913
      %1939 = vmatpush1.bf16.msra.mxu0 %v1912
      %1940 = vmatprep.subr.bf16.mxu0 %v1911
      %1941 = vmatpush1.bf16.msra.mxu0 %v1910
      %1942 = vmatprep.subr.bf16.mxu0 %v1909
      %1943 = vmatpush1.bf16.msra.mxu0 %v1908
      %1944 = vmatprep.subr.bf16.mxu0 %v1907
      %1945 = vmatpush1.bf16.msra.mxu0 %v1906
      %1946 = vmatprep.subr.bf16.mxu0 %v1905
      %1947 = vmatpush1.bf16.msra.mxu0 %v1904
      %1948 = vmatprep.subr.bf16.mxu0 %v1903
      %1949 = vmatpush1.bf16.msra.mxu0 %v1902
      %1950 = vmatprep.subr.bf16.mxu0 0
      %1951 = vmatpush2.bf16.msra.mxu0 0
      %1952 = vmatprep.subr.bf16.mxu0 0
      %1953 = vmatpush2.bf16.msra.mxu0 0
      %1954 = vmatprep.subr.bf16.mxu0 0
      %1955 = vmatpush2.bf16.msra.mxu0 0
      %1956 = vmatprep.subr.bf16.mxu0 0
      %1957 = vmatpush2.bf16.msra.mxu0 0
      %1958 = vmatprep.subr.bf16.mxu0 0
      %1959 = vmatpush2.bf16.msra.mxu0 0
      %1960 = vmatprep.subr.bf16.mxu0 0
      %1961 = vmatpush2.bf16.msra.mxu0 0
      %1962 = vmatprep.subr.bf16.mxu0 0
      %1963 = vmatpush2.bf16.msra.mxu0 0
      %1964 = vmatprep.subr.bf16.mxu0 0
      %1965 = vmatpush2.bf16.msra.mxu0 0
      %1966 = vmatprep.mubr.bf16.mxu0 0
      %1967 = vmatmul.mubr.bf16.gmra.mxu0 %v1807
      %v1968 = vpop.f32.mrf.mxu0
      %v1969 = vadd.f32 0.0, %v1968
      %v1970 = vpop.f32.mrf.mxu0
      %v1971 = vadd.f32 0.0, %v1970
      %v1972 = vpop.f32.mrf.mxu0
      %v1973 = vadd.f32 0.0, %v1972
      %v1974 = vpop.f32.mrf.mxu0
      %v1975 = vadd.f32 0.0, %v1974
      %1976 = vmatprep.mubr.bf16.mxu0 0
      %1977 = vmatmul.mubr.bf16.gmra.mxu0 %v1809
      %v1978 = vpop.f32.mrf.mxu0
      %v1979 = vadd.f32 0.0, %v1978
      %v1980 = vpop.f32.mrf.mxu0
      %v1981 = vadd.f32 0.0, %v1980
      %v1982 = vpop.f32.mrf.mxu0
      %v1983 = vadd.f32 0.0, %v1982
      %v1984 = vpop.f32.mrf.mxu0
      %v1985 = vadd.f32 0.0, %v1984
      %1986 = vmatprep.mubr.bf16.mxu0 0
      %1987 = vmatmul.mubr.bf16.gmra.mxu0 %v1811
      %v1988 = vpop.f32.mrf.mxu0
      %v1989 = vadd.f32 0.0, %v1988
      %v1990 = vpop.f32.mrf.mxu0
      %v1991 = vadd.f32 0.0, %v1990
      %v1992 = vpop.f32.mrf.mxu0
      %v1993 = vadd.f32 0.0, %v1992
      %v1994 = vpop.f32.mrf.mxu0
      %v1995 = vadd.f32 0.0, %v1994
      %1996 = vmatprep.mubr.bf16.mxu0 0
      %1997 = vmatmul.mubr.bf16.gmra.mxu0 %v1813
      %v1998 = vpop.f32.mrf.mxu0
      %v1999 = vadd.f32 0.0, %v1998
      %v2000 = vpop.f32.mrf.mxu0
      %v2001 = vadd.f32 0.0, %v2000
      %v2002 = vpop.f32.mrf.mxu0
      %v2003 = vadd.f32 0.0, %v2002
      %v2004 = vpop.f32.mrf.mxu0
      %v2005 = vadd.f32 0.0, %v2004
      %2006 = vmatprep.mubr.bf16.mxu0 0
      %2007 = vmatmul.mubr.bf16.gmra.mxu0 %v1815
      %v2008 = vpop.f32.mrf.mxu0
      %v2009 = vadd.f32 0.0, %v2008
      %v2010 = vpop.f32.mrf.mxu0
      %v2011 = vadd.f32 0.0, %v2010
      %v2012 = vpop.f32.mrf.mxu0
      %v2013 = vadd.f32 0.0, %v2012
      %v2014 = vpop.f32.mrf.mxu0
      %v2015 = vadd.f32 0.0, %v2014
      %2016 = vmatprep.mubr.bf16.mxu0 0
      %2017 = vmatmul.mubr.bf16.gmra.mxu0 %v1817
      %v2018 = vpop.f32.mrf.mxu0
      %v2019 = vadd.f32 0.0, %v2018
      %v2020 = vpop.f32.mrf.mxu0
      %v2021 = vadd.f32 0.0, %v2020
      %v2022 = vpop.f32.mrf.mxu0
      %v2023 = vadd.f32 0.0, %v2022
      %v2024 = vpop.f32.mrf.mxu0
      %v2025 = vadd.f32 0.0, %v2024
      %2026 = vmatprep.mubr.bf16.mxu0 0
      %2027 = vmatmul.mubr.bf16.gmra.mxu0 %v1819
      %v2028 = vpop.f32.mrf.mxu0
      %v2029 = vadd.f32 0.0, %v2028
      %v2030 = vpop.f32.mrf.mxu0
      %v2031 = vadd.f32 0.0, %v2030
      %v2032 = vpop.f32.mrf.mxu0
      %v2033 = vadd.f32 0.0, %v2032
      %v2034 = vpop.f32.mrf.mxu0
      %v2035 = vadd.f32 0.0, %v2034
      %2036 = vmatprep.mubr.bf16.mxu0 0
      %2037 = vmatmul.mubr.bf16.gmra.mxu0 %v1821
      %v2038 = vpop.f32.mrf.mxu0
      %v2039 = vadd.f32 0.0, %v2038
      %v2040 = vpop.f32.mrf.mxu0
      %v2041 = vadd.f32 0.0, %v2040
      %v2042 = vpop.f32.mrf.mxu0
      %v2043 = vadd.f32 0.0, %v2042
      %v2044 = vpop.f32.mrf.mxu0
      %v2045 = vadd.f32 0.0, %v2044
      %2046 = vmatprep.mubr.bf16.mxu0 0
      %2047 = vmatmul.mubr.bf16.gmra.mxu0 %v1823
      %v2048 = vpop.f32.mrf.mxu0
      %v2049 = vadd.f32 0.0, %v2048
      %v2050 = vpop.f32.mrf.mxu0
      %v2051 = vadd.f32 0.0, %v2050
      %v2052 = vpop.f32.mrf.mxu0
      %v2053 = vadd.f32 0.0, %v2052
      %v2054 = vpop.f32.mrf.mxu0
      %v2055 = vadd.f32 0.0, %v2054
      %2056 = vmatprep.mubr.bf16.mxu0 0
      %2057 = vmatmul.mubr.bf16.gmra.mxu0 %v1825
      %v2058 = vpop.f32.mrf.mxu0
      %v2059 = vadd.f32 0.0, %v2058
      %v2060 = vpop.f32.mrf.mxu0
      %v2061 = vadd.f32 0.0, %v2060
      %v2062 = vpop.f32.mrf.mxu0
      %v2063 = vadd.f32 0.0, %v2062
      %v2064 = vpop.f32.mrf.mxu0
      %v2065 = vadd.f32 0.0, %v2064
      %2066 = vmatprep.mubr.bf16.mxu0 0
      %2067 = vmatmul.mubr.bf16.gmra.mxu0 %v1827
      %v2068 = vpop.f32.mrf.mxu0
      %v2069 = vadd.f32 0.0, %v2068
      %v2070 = vpop.f32.mrf.mxu0
      %v2071 = vadd.f32 0.0, %v2070
      %v2072 = vpop.f32.mrf.mxu0
      %v2073 = vadd.f32 0.0, %v2072
      %v2074 = vpop.f32.mrf.mxu0
      %v2075 = vadd.f32 0.0, %v2074
      %2076 = vmatprep.mubr.bf16.mxu0 0
      %2077 = vmatmul.mubr.bf16.gmra.mxu0 %v1829
      %v2078 = vpop.f32.mrf.mxu0
      %v2079 = vadd.f32 0.0, %v2078
      %v2080 = vpop.f32.mrf.mxu0
      %v2081 = vadd.f32 0.0, %v2080
      %v2082 = vpop.f32.mrf.mxu0
      %v2083 = vadd.f32 0.0, %v2082
      %v2084 = vpop.f32.mrf.mxu0
      %v2085 = vadd.f32 0.0, %v2084
      %2086 = vmatprep.mubr.bf16.mxu0 0
      %2087 = vmatmul.mubr.bf16.gmra.mxu0 %v1831
      %v2088 = vpop.f32.mrf.mxu0
      %v2089 = vadd.f32 0.0, %v2088
      %v2090 = vpop.f32.mrf.mxu0
      %v2091 = vadd.f32 0.0, %v2090
      %v2092 = vpop.f32.mrf.mxu0
      %v2093 = vadd.f32 0.0, %v2092
      %v2094 = vpop.f32.mrf.mxu0
      %v2095 = vadd.f32 0.0, %v2094
      %2096 = vmatprep.mubr.bf16.mxu0 0
      %2097 = vmatmul.mubr.bf16.gmra.mxu0 %v1833
      %v2098 = vpop.f32.mrf.mxu0
      %v2099 = vadd.f32 0.0, %v2098
      %v2100 = vpop.f32.mrf.mxu0
      %v2101 = vadd.f32 0.0, %v2100
      %v2102 = vpop.f32.mrf.mxu0
      %v2103 = vadd.f32 0.0, %v2102
      %v2104 = vpop.f32.mrf.mxu0
      %v2105 = vadd.f32 0.0, %v2104
      %2106 = vmatprep.mubr.bf16.mxu0 0
      %2107 = vmatmul.mubr.bf16.gmra.mxu0 %v1835
      %v2108 = vpop.f32.mrf.mxu0
      %v2109 = vadd.f32 0.0, %v2108
      %v2110 = vpop.f32.mrf.mxu0
      %v2111 = vadd.f32 0.0, %v2110
      %v2112 = vpop.f32.mrf.mxu0
      %v2113 = vadd.f32 0.0, %v2112
      %v2114 = vpop.f32.mrf.mxu0
      %v2115 = vadd.f32 0.0, %v2114
      %2116 = vmatprep.mubr.bf16.mxu0 0
      %2117 = vmatmul.mubr.bf16.gmra.mxu0 %v1837
      %v2118 = vpop.f32.mrf.mxu0
      %v2119 = vadd.f32 0.0, %v2118
      %v2120 = vpop.f32.mrf.mxu0
      %v2121 = vadd.f32 0.0, %v2120
      %v2122 = vpop.f32.mrf.mxu0
      %v2123 = vadd.f32 0.0, %v2122
      %v2124 = vpop.f32.mrf.mxu0
      %v2125 = vadd.f32 0.0, %v2124
      %2126 = vdwg.mxu0
      %v2127 = vadd.f32 %v1706, %v1969
      %v2128 = vadd.f32 %v1707, %v1971
      %v2129 = vadd.f32 %v1708, %v1973
      %v2130 = vadd.f32 %v1709, %v1975
      %v2131 = vadd.f32 %v1710, %v1979
      %v2132 = vadd.f32 %v1711, %v1981
      %v2133 = vadd.f32 %v1712, %v1983
      %v2134 = vadd.f32 %v1713, %v1985
      %v2135 = vadd.f32 %v1714, %v1989
      %v2136 = vadd.f32 %v1715, %v1991
      %v2137 = vadd.f32 %v1716, %v1993
      %v2138 = vadd.f32 %v1717, %v1995
      %v2139 = vadd.f32 %v1718, %v1999
      %v2140 = vadd.f32 %v1719, %v2001
      %v2141 = vadd.f32 %v1720, %v2003
      %v2142 = vadd.f32 %v1721, %v2005
      %v2143 = vadd.f32 %v1722, %v2009
      %v2144 = vadd.f32 %v1723, %v2011
      %v2145 = vadd.f32 %v1724, %v2013
      %v2146 = vadd.f32 %v1725, %v2015
      %v2147 = vadd.f32 %v1726, %v2019
      %v2148 = vadd.f32 %v1727, %v2021
      %v2149 = vadd.f32 %v1728, %v2023
      %v2150 = vadd.f32 %v1729, %v2025
      %v2151 = vadd.f32 %v1730, %v2029
      %v2152 = vadd.f32 %v1731, %v2031
      %v2153 = vadd.f32 %v1732, %v2033
      %v2154 = vadd.f32 %v1733, %v2035
      %v2155 = vadd.f32 %v1734, %v2039
      %v2156 = vadd.f32 %v1735, %v2041
      %v2157 = vadd.f32 %v1736, %v2043
      %v2158 = vadd.f32 %v1737, %v2045
      %v2159 = vadd.f32 %v1738, %v2049
      %v2160 = vadd.f32 %v1739, %v2051
      %v2161 = vadd.f32 %v1740, %v2053
      %v2162 = vadd.f32 %v1741, %v2055
      %v2163 = vadd.f32 %v1742, %v2059
      %v2164 = vadd.f32 %v1743, %v2061
      %v2165 = vadd.f32 %v1744, %v2063
      %v2166 = vadd.f32 %v1745, %v2065
      %v2167 = vadd.f32 %v1746, %v2069
      %v2168 = vadd.f32 %v1747, %v2071
      %v2169 = vadd.f32 %v1748, %v2073
      %v2170 = vadd.f32 %v1749, %v2075
      %v2171 = vadd.f32 %v1750, %v2079
      %v2172 = vadd.f32 %v1751, %v2081
      %v2173 = vadd.f32 %v1752, %v2083
      %v2174 = vadd.f32 %v1753, %v2085
      %v2175 = vadd.f32 %v1754, %v2089
      %v2176 = vadd.f32 %v1755, %v2091
      %v2177 = vadd.f32 %v1756, %v2093
      %v2178 = vadd.f32 %v1757, %v2095
      %v2179 = vadd.f32 %v1758, %v2099
      %v2180 = vadd.f32 %v1759, %v2101
      %v2181 = vadd.f32 %v1760, %v2103
      %v2182 = vadd.f32 %v1761, %v2105
      %v2183 = vadd.f32 %v1762, %v2109
      %v2184 = vadd.f32 %v1763, %v2111
      %v2185 = vadd.f32 %v1764, %v2113
      %v2186 = vadd.f32 %v1765, %v2115
      %v2187 = vadd.f32 %v1766, %v2119
      %v2188 = vadd.f32 %v1767, %v2121
      %v2189 = vadd.f32 %v1768, %v2123
      %v2190 = vadd.f32 %v1769, %v2125
      %s2191 = scalar_lea.vmem %s573, 256
      %v2192 = vld [vmem:[%s2191] sm:$0xff]
      %v2193 = vld [vmem:[%s2191 + $0x8] sm:$0xff]
      %v2194 = vld [vmem:[%s2191 + $0x10] sm:$0xff]
      %v2195 = vld [vmem:[%s2191 + $0x18] sm:$0xff]
      %v2196 = vld [vmem:[%s2191 + $0x20] sm:$0xff]
      %v2197 = vld [vmem:[%s2191 + $0x28] sm:$0xff]
      %v2198 = vld [vmem:[%s2191 + $0x30] sm:$0xff]
      %v2199 = vld [vmem:[%s2191 + $0x38] sm:$0xff]
      %v2200 = vld [vmem:[%s2191 + $0x40] sm:$0xff]
      %v2201 = vld [vmem:[%s2191 + $0x48] sm:$0xff]
      %v2202 = vld [vmem:[%s2191 + $0x50] sm:$0xff]
      %v2203 = vld [vmem:[%s2191 + $0x58] sm:$0xff]
      %v2204 = vld [vmem:[%s2191 + $0x60] sm:$0xff]
      %v2205 = vld [vmem:[%s2191 + $0x68] sm:$0xff]
      %v2206 = vld [vmem:[%s2191 + $0x70] sm:$0xff]
      %v2207 = vld [vmem:[%s2191 + $0x78] sm:$0xff]
      %vm2208 = vsmask.f32 3328
      %v2209 = vrot.slane %v1266, 4
      %v2210 = vrot.slane %v1269, 5
      %v2211 = vor.u32 %v2209, %v2210
      %v2212 = vrot.slane %v1274, 4
      %v2213 = vrot.slane %v1277, 5
      %v2214 = vor.u32 %v2212, %v2213
      %v2215 = vsel %vm2208, %v2211, %v2214
      %v2216 = vrot.slane %v1283, 4
      %v2217 = vrot.slane %v1286, 5
      %v2218 = vor.u32 %v2216, %v2217
      %v2219 = vsel %vm2208, %v2214, %v2218
      %v2220 = vrot.slane %v1292, 4
      %v2221 = vrot.slane %v1295, 5
      %v2222 = vor.u32 %v2220, %v2221
      %v2223 = vsel %vm2208, %v2218, %v2222
      %v2224 = vrot.slane %v1301, 4
      %v2225 = vrot.slane %v1304, 5
      %v2226 = vor.u32 %v2224, %v2225
      %v2227 = vsel %vm2208, %v2222, %v2226
      %v2228 = vrot.slane %v1310, 4
      %v2229 = vrot.slane %v1313, 5
      %v2230 = vor.u32 %v2228, %v2229
      %v2231 = vsel %vm2208, %v2226, %v2230
      %v2232 = vrot.slane %v1319, 4
      %v2233 = vrot.slane %v1322, 5
      %v2234 = vor.u32 %v2232, %v2233
      %v2235 = vsel %vm2208, %v2230, %v2234
      %v2236 = vrot.slane %v1328, 4
      %v2237 = vrot.slane %v1331, 5
      %v2238 = vor.u32 %v2236, %v2237
      %v2239 = vsel %vm2208, %v2234, %v2238
      %v2240 = vrot.slane %v1337, 4
      %v2241 = vrot.slane %v1340, 5
      %v2242 = vor.u32 %v2240, %v2241
      %v2243 = vsel %vm2208, %v2238, %v2242
      %v2244 = vrot.slane %v1346, 4
      %v2245 = vrot.slane %v1349, 5
      %v2246 = vor.u32 %v2244, %v2245
      %v2247 = vsel %vm2208, %v2242, %v2246
      %v2248 = vrot.slane %v1355, 4
      %v2249 = vrot.slane %v1358, 5
      %v2250 = vor.u32 %v2248, %v2249
      %v2251 = vsel %vm2208, %v2246, %v2250
      %v2252 = vrot.slane %v1364, 4
      %v2253 = vrot.slane %v1367, 5
      %v2254 = vor.u32 %v2252, %v2253
      %v2255 = vsel %vm2208, %v2250, %v2254
      %v2256 = vrot.slane %v1373, 4
      %v2257 = vrot.slane %v1376, 5
      %v2258 = vor.u32 %v2256, %v2257
      %v2259 = vsel %vm2208, %v2254, %v2258
      %v2260 = vrot.slane %v1382, 4
      %v2261 = vrot.slane %v1385, 5
      %v2262 = vor.u32 %v2260, %v2261
      %v2263 = vsel %vm2208, %v2258, %v2262
      %v2264 = vrot.slane %v1391, 4
      %v2265 = vrot.slane %v1394, 5
      %v2266 = vor.u32 %v2264, %v2265
      %v2267 = vsel %vm2208, %v2262, %v2266
      %v2268 = vrot.slane %v1400, 4
      %v2269 = vrot.slane %v1403, 5
      %v2270 = vor.u32 %v2268, %v2269
      %v2271 = vsel %vm2208, %v2266, %v2270
      %v2272 = vrot.slane %v1409, 4
      %v2273 = vrot.slane %v1412, 5
      %v2274 = vor.u32 %v2272, %v2273
      %v2275 = vsel %vm2208, %v2270, %v2274
      %v2308 = vunpack.c.l.b16 %v2192
      %v2309 = vunpack.c.h.b16 %v2192
      %v2310 = vunpack.c.l.b16 %v2193
      %v2311 = vunpack.c.h.b16 %v2193
      %v2312 = vunpack.c.l.b16 %v2194
      %v2313 = vunpack.c.h.b16 %v2194
      %v2314 = vunpack.c.l.b16 %v2195
      %v2315 = vunpack.c.h.b16 %v2195
      %v2316 = vunpack.c.l.b16 %v2196
      %v2317 = vunpack.c.h.b16 %v2196
      %v2318 = vunpack.c.l.b16 %v2197
      %v2319 = vunpack.c.h.b16 %v2197
      %v2320 = vunpack.c.l.b16 %v2198
      %v2321 = vunpack.c.h.b16 %v2198
      %v2322 = vunpack.c.l.b16 %v2199
      %v2323 = vunpack.c.h.b16 %v2199
      %v2324 = vunpack.c.l.b16 %v2200
      %v2325 = vunpack.c.h.b16 %v2200
      %v2326 = vunpack.c.l.b16 %v2201
      %v2327 = vunpack.c.h.b16 %v2201
      %v2328 = vunpack.c.l.b16 %v2202
      %v2329 = vunpack.c.h.b16 %v2202
      %v2330 = vunpack.c.l.b16 %v2203
      %v2331 = vunpack.c.h.b16 %v2203
      %v2332 = vunpack.c.l.b16 %v2204
      %v2333 = vunpack.c.h.b16 %v2204
      %v2334 = vunpack.c.l.b16 %v2205
      %v2335 = vunpack.c.h.b16 %v2205
      %v2336 = vunpack.c.l.b16 %v2206
      %v2337 = vunpack.c.h.b16 %v2206
      %v2338 = vunpack.c.l.b16 %v2207
      %v2339 = vunpack.c.h.b16 %v2207
      %v2340 = vpack.c.b16 %v2310, %v2308
      %v2341 = vpack.c.b16 %v2311, %v2309
      %v2342 = vpack.c.b16 %v2314, %v2312
      %v2343 = vpack.c.b16 %v2315, %v2313
      %v2344 = vpack.c.b16 %v2318, %v2316
      %v2345 = vpack.c.b16 %v2319, %v2317
      %v2346 = vpack.c.b16 %v2322, %v2320
      %v2347 = vpack.c.b16 %v2323, %v2321
      %v2348 = vpack.c.b16 %v2326, %v2324
      %v2349 = vpack.c.b16 %v2327, %v2325
      %v2350 = vpack.c.b16 %v2330, %v2328
      %v2351 = vpack.c.b16 %v2331, %v2329
      %v2352 = vpack.c.b16 %v2334, %v2332
      %v2353 = vpack.c.b16 %v2335, %v2333
      %v2354 = vpack.c.b16 %v2338, %v2336
      %v2355 = vpack.c.b16 %v2339, %v2337
      %2372 = vmatprep.subr.bf16.mxu0 %v2355
      %2373 = vmatpush1.bf16.msra.mxu0 %v2354
      %2374 = vmatprep.subr.bf16.mxu0 %v2353
      %2375 = vmatpush1.bf16.msra.mxu0 %v2352
      %2376 = vmatprep.subr.bf16.mxu0 %v2351
      %2377 = vmatpush1.bf16.msra.mxu0 %v2350
      %2378 = vmatprep.subr.bf16.mxu0 %v2349
      %2379 = vmatpush1.bf16.msra.mxu0 %v2348
      %2380 = vmatprep.subr.bf16.mxu0 %v2347
      %2381 = vmatpush1.bf16.msra.mxu0 %v2346
      %2382 = vmatprep.subr.bf16.mxu0 %v2345
      %2383 = vmatpush1.bf16.msra.mxu0 %v2344
      %2384 = vmatprep.subr.bf16.mxu0 %v2343
      %2385 = vmatpush1.bf16.msra.mxu0 %v2342
      %2386 = vmatprep.subr.bf16.mxu0 %v2341
      %2387 = vmatpush1.bf16.msra.mxu0 %v2340
      %2388 = vmatprep.subr.bf16.mxu0 0
      %2389 = vmatpush2.bf16.msra.mxu0 0
      %2390 = vmatprep.subr.bf16.mxu0 0
      %2391 = vmatpush2.bf16.msra.mxu0 0
      %2392 = vmatprep.subr.bf16.mxu0 0
      %2393 = vmatpush2.bf16.msra.mxu0 0
      %2394 = vmatprep.subr.bf16.mxu0 0
      %2395 = vmatpush2.bf16.msra.mxu0 0
      %2396 = vmatprep.subr.bf16.mxu0 0
      %2397 = vmatpush2.bf16.msra.mxu0 0
      %2398 = vmatprep.subr.bf16.mxu0 0
      %2399 = vmatpush2.bf16.msra.mxu0 0
      %2400 = vmatprep.subr.bf16.mxu0 0
      %2401 = vmatpush2.bf16.msra.mxu0 0
      %2402 = vmatprep.subr.bf16.mxu0 0
      %2403 = vmatpush2.bf16.msra.mxu0 0
      %2404 = vmatprep.mubr.bf16.mxu0 0
      %2405 = vmatmul.mubr.bf16.gmra.mxu0 %v2215
      %v2406 = vpop.f32.mrf.mxu0
      %v2407 = vadd.f32 0.0, %v2406
      %v2408 = vpop.f32.mrf.mxu0
      %v2409 = vadd.f32 0.0, %v2408
      %v2410 = vpop.f32.mrf.mxu0
      %v2411 = vadd.f32 0.0, %v2410
      %v2412 = vpop.f32.mrf.mxu0
      %v2413 = vadd.f32 0.0, %v2412
      %2414 = vmatprep.mubr.bf16.mxu0 0
      %2415 = vmatmul.mubr.bf16.gmra.mxu0 %v2219
      %v2416 = vpop.f32.mrf.mxu0
      %v2417 = vadd.f32 0.0, %v2416
      %v2418 = vpop.f32.mrf.mxu0
      %v2419 = vadd.f32 0.0, %v2418
      %v2420 = vpop.f32.mrf.mxu0
      %v2421 = vadd.f32 0.0, %v2420
      %v2422 = vpop.f32.mrf.mxu0
      %v2423 = vadd.f32 0.0, %v2422
      %2424 = vmatprep.mubr.bf16.mxu0 0
      %2425 = vmatmul.mubr.bf16.gmra.mxu0 %v2223
      %v2426 = vpop.f32.mrf.mxu0
      %v2427 = vadd.f32 0.0, %v2426
      %v2428 = vpop.f32.mrf.mxu0
      %v2429 = vadd.f32 0.0, %v2428
      %v2430 = vpop.f32.mrf.mxu0
      %v2431 = vadd.f32 0.0, %v2430
      %v2432 = vpop.f32.mrf.mxu0
      %v2433 = vadd.f32 0.0, %v2432
      %2434 = vmatprep.mubr.bf16.mxu0 0
      %2435 = vmatmul.mubr.bf16.gmra.mxu0 %v2227
      %v2436 = vpop.f32.mrf.mxu0
      %v2437 = vadd.f32 0.0, %v2436
      %v2438 = vpop.f32.mrf.mxu0
      %v2439 = vadd.f32 0.0, %v2438
      %v2440 = vpop.f32.mrf.mxu0
      %v2441 = vadd.f32 0.0, %v2440
      %v2442 = vpop.f32.mrf.mxu0
      %v2443 = vadd.f32 0.0, %v2442
      %2444 = vmatprep.mubr.bf16.mxu0 0
      %2445 = vmatmul.mubr.bf16.gmra.mxu0 %v2231
      %v2446 = vpop.f32.mrf.mxu0
      %v2447 = vadd.f32 0.0, %v2446
      %v2448 = vpop.f32.mrf.mxu0
      %v2449 = vadd.f32 0.0, %v2448
      %v2450 = vpop.f32.mrf.mxu0
      %v2451 = vadd.f32 0.0, %v2450
      %v2452 = vpop.f32.mrf.mxu0
      %v2453 = vadd.f32 0.0, %v2452
      %2454 = vmatprep.mubr.bf16.mxu0 0
      %2455 = vmatmul.mubr.bf16.gmra.mxu0 %v2235
      %v2456 = vpop.f32.mrf.mxu0
      %v2457 = vadd.f32 0.0, %v2456
      %v2458 = vpop.f32.mrf.mxu0
      %v2459 = vadd.f32 0.0, %v2458
      %v2460 = vpop.f32.mrf.mxu0
      %v2461 = vadd.f32 0.0, %v2460
      %v2462 = vpop.f32.mrf.mxu0
      %v2463 = vadd.f32 0.0, %v2462
      %2464 = vmatprep.mubr.bf16.mxu0 0
      %2465 = vmatmul.mubr.bf16.gmra.mxu0 %v2239
      %v2466 = vpop.f32.mrf.mxu0
      %v2467 = vadd.f32 0.0, %v2466
      %v2468 = vpop.f32.mrf.mxu0
      %v2469 = vadd.f32 0.0, %v2468
      %v2470 = vpop.f32.mrf.mxu0
      %v2471 = vadd.f32 0.0, %v2470
      %v2472 = vpop.f32.mrf.mxu0
      %v2473 = vadd.f32 0.0, %v2472
      %2474 = vmatprep.mubr.bf16.mxu0 0
      %2475 = vmatmul.mubr.bf16.gmra.mxu0 %v2243
      %v2476 = vpop.f32.mrf.mxu0
      %v2477 = vadd.f32 0.0, %v2476
      %v2478 = vpop.f32.mrf.mxu0
      %v2479 = vadd.f32 0.0, %v2478
      %v2480 = vpop.f32.mrf.mxu0
      %v2481 = vadd.f32 0.0, %v2480
      %v2482 = vpop.f32.mrf.mxu0
      %v2483 = vadd.f32 0.0, %v2482
      %2484 = vmatprep.mubr.bf16.mxu0 0
      %2485 = vmatmul.mubr.bf16.gmra.mxu0 %v2247
      %v2486 = vpop.f32.mrf.mxu0
      %v2487 = vadd.f32 0.0, %v2486
      %v2488 = vpop.f32.mrf.mxu0
      %v2489 = vadd.f32 0.0, %v2488
      %v2490 = vpop.f32.mrf.mxu0
      %v2491 = vadd.f32 0.0, %v2490
      %v2492 = vpop.f32.mrf.mxu0
      %v2493 = vadd.f32 0.0, %v2492
      %2494 = vmatprep.mubr.bf16.mxu0 0
      %2495 = vmatmul.mubr.bf16.gmra.mxu0 %v2251
      %v2496 = vpop.f32.mrf.mxu0
      %v2497 = vadd.f32 0.0, %v2496
      %v2498 = vpop.f32.mrf.mxu0
      %v2499 = vadd.f32 0.0, %v2498
      %v2500 = vpop.f32.mrf.mxu0
      %v2501 = vadd.f32 0.0, %v2500
      %v2502 = vpop.f32.mrf.mxu0
      %v2503 = vadd.f32 0.0, %v2502
      %2504 = vmatprep.mubr.bf16.mxu0 0
      %2505 = vmatmul.mubr.bf16.gmra.mxu0 %v2255
      %v2506 = vpop.f32.mrf.mxu0
      %v2507 = vadd.f32 0.0, %v2506
      %v2508 = vpop.f32.mrf.mxu0
      %v2509 = vadd.f32 0.0, %v2508
      %v2510 = vpop.f32.mrf.mxu0
      %v2511 = vadd.f32 0.0, %v2510
      %v2512 = vpop.f32.mrf.mxu0
      %v2513 = vadd.f32 0.0, %v2512
      %2514 = vmatprep.mubr.bf16.mxu0 0
      %2515 = vmatmul.mubr.bf16.gmra.mxu0 %v2259
      %v2516 = vpop.f32.mrf.mxu0
      %v2517 = vadd.f32 0.0, %v2516
      %v2518 = vpop.f32.mrf.mxu0
      %v2519 = vadd.f32 0.0, %v2518
      %v2520 = vpop.f32.mrf.mxu0
      %v2521 = vadd.f32 0.0, %v2520
      %v2522 = vpop.f32.mrf.mxu0
      %v2523 = vadd.f32 0.0, %v2522
      %2524 = vmatprep.mubr.bf16.mxu0 0
      %2525 = vmatmul.mubr.bf16.gmra.mxu0 %v2263
      %v2526 = vpop.f32.mrf.mxu0
      %v2527 = vadd.f32 0.0, %v2526
      %v2528 = vpop.f32.mrf.mxu0
      %v2529 = vadd.f32 0.0, %v2528
      %v2530 = vpop.f32.mrf.mxu0
      %v2531 = vadd.f32 0.0, %v2530
      %v2532 = vpop.f32.mrf.mxu0
      %v2533 = vadd.f32 0.0, %v2532
      %2534 = vmatprep.mubr.bf16.mxu0 0
      %2535 = vmatmul.mubr.bf16.gmra.mxu0 %v2267
      %v2536 = vpop.f32.mrf.mxu0
      %v2537 = vadd.f32 0.0, %v2536
      %v2538 = vpop.f32.mrf.mxu0
      %v2539 = vadd.f32 0.0, %v2538
      %v2540 = vpop.f32.mrf.mxu0
      %v2541 = vadd.f32 0.0, %v2540
      %v2542 = vpop.f32.mrf.mxu0
      %v2543 = vadd.f32 0.0, %v2542
      %2544 = vmatprep.mubr.bf16.mxu0 0
      %2545 = vmatmul.mubr.bf16.gmra.mxu0 %v2271
      %v2546 = vpop.f32.mrf.mxu0
      %v2547 = vadd.f32 0.0, %v2546
      %v2548 = vpop.f32.mrf.mxu0
      %v2549 = vadd.f32 0.0, %v2548
      %v2550 = vpop.f32.mrf.mxu0
      %v2551 = vadd.f32 0.0, %v2550
      %v2552 = vpop.f32.mrf.mxu0
      %v2553 = vadd.f32 0.0, %v2552
      %2554 = vmatprep.mubr.bf16.mxu0 0
      %2555 = vmatmul.mubr.bf16.gmra.mxu0 %v2275
      %v2556 = vpop.f32.mrf.mxu0
      %v2557 = vadd.f32 0.0, %v2556
      %v2558 = vpop.f32.mrf.mxu0
      %v2559 = vadd.f32 0.0, %v2558
      %v2560 = vpop.f32.mrf.mxu0
      %v2561 = vadd.f32 0.0, %v2560
      %v2562 = vpop.f32.mrf.mxu0
      %v2563 = vadd.f32 0.0, %v2562
      %2564 = vdwg.mxu0
      %v2565 = vadd.f32 %v2127, %v2407
      %v2566 = vadd.f32 %v2128, %v2409
      %v2567 = vadd.f32 %v2129, %v2411
      %v2568 = vadd.f32 %v2130, %v2413
      %v2569 = vadd.f32 %v2131, %v2417
      %v2570 = vadd.f32 %v2132, %v2419
      %v2571 = vadd.f32 %v2133, %v2421
      %v2572 = vadd.f32 %v2134, %v2423
      %v2573 = vadd.f32 %v2135, %v2427
      %v2574 = vadd.f32 %v2136, %v2429
      %v2575 = vadd.f32 %v2137, %v2431
      %v2576 = vadd.f32 %v2138, %v2433
      %v2577 = vadd.f32 %v2139, %v2437
      %v2578 = vadd.f32 %v2140, %v2439
      %v2579 = vadd.f32 %v2141, %v2441
      %v2580 = vadd.f32 %v2142, %v2443
      %v2581 = vadd.f32 %v2143, %v2447
      %v2582 = vadd.f32 %v2144, %v2449
      %v2583 = vadd.f32 %v2145, %v2451
      %v2584 = vadd.f32 %v2146, %v2453
      %v2585 = vadd.f32 %v2147, %v2457
      %v2586 = vadd.f32 %v2148, %v2459
      %v2587 = vadd.f32 %v2149, %v2461
      %v2588 = vadd.f32 %v2150, %v2463
      %v2589 = vadd.f32 %v2151, %v2467
      %v2590 = vadd.f32 %v2152, %v2469
      %v2591 = vadd.f32 %v2153, %v2471
      %v2592 = vadd.f32 %v2154, %v2473
      %v2593 = vadd.f32 %v2155, %v2477
      %v2594 = vadd.f32 %v2156, %v2479
      %v2595 = vadd.f32 %v2157, %v2481
      %v2596 = vadd.f32 %v2158, %v2483
      %v2597 = vadd.f32 %v2159, %v2487
      %v2598 = vadd.f32 %v2160, %v2489
      %v2599 = vadd.f32 %v2161, %v2491
      %v2600 = vadd.f32 %v2162, %v2493
      %v2601 = vadd.f32 %v2163, %v2497
      %v2602 = vadd.f32 %v2164, %v2499
      %v2603 = vadd.f32 %v2165, %v2501
      %v2604 = vadd.f32 %v2166, %v2503
      %v2605 = vadd.f32 %v2167, %v2507
      %v2606 = vadd.f32 %v2168, %v2509
      %v2607 = vadd.f32 %v2169, %v2511
      %v2608 = vadd.f32 %v2170, %v2513
      %v2609 = vadd.f32 %v2171, %v2517
      %v2610 = vadd.f32 %v2172, %v2519
      %v2611 = vadd.f32 %v2173, %v2521
      %v2612 = vadd.f32 %v2174, %v2523
      %v2613 = vadd.f32 %v2175, %v2527
      %v2614 = vadd.f32 %v2176, %v2529
      %v2615 = vadd.f32 %v2177, %v2531
      %v2616 = vadd.f32 %v2178, %v2533
      %v2617 = vadd.f32 %v2179, %v2537
      %v2618 = vadd.f32 %v2180, %v2539
      %v2619 = vadd.f32 %v2181, %v2541
      %v2620 = vadd.f32 %v2182, %v2543
      %v2621 = vadd.f32 %v2183, %v2547
      %v2622 = vadd.f32 %v2184, %v2549
      %v2623 = vadd.f32 %v2185, %v2551
      %v2624 = vadd.f32 %v2186, %v2553
      %v2625 = vadd.f32 %v2187, %v2557
      %v2626 = vadd.f32 %v2188, %v2559
      %v2627 = vadd.f32 %v2189, %v2561
      %v2628 = vadd.f32 %v2190, %v2563
      %v2629 = vtanh.pop %v2565
      %v2630 = vtanh.pop %v2567
      %v2631 = vtanh.pop %v2569
      %v2632 = vtanh.pop %v2571
      %v2633 = vtanh.pop %v2573
      %v2634 = vtanh.pop %v2575
      %v2635 = vtanh.pop %v2577
      %v2636 = vtanh.pop %v2579
      %v2637 = vtanh.pop %v2581
      %v2638 = vtanh.pop %v2583
      %v2639 = vtanh.pop %v2585
      %v2640 = vtanh.pop %v2587
      %v2641 = vtanh.pop %v2589
      %v2642 = vtanh.pop %v2591
      %v2643 = vtanh.pop %v2593
      %v2644 = vtanh.pop %v2595
      %v2645 = vtanh.pop %v2597
      %v2646 = vtanh.pop %v2599
      %v2647 = vtanh.pop %v2601
      %v2648 = vtanh.pop %v2603
      %v2649 = vtanh.pop %v2605
      %v2650 = vtanh.pop %v2607
      %v2651 = vtanh.pop %v2609
      %v2652 = vtanh.pop %v2611
      %v2653 = vtanh.pop %v2613
      %v2654 = vtanh.pop %v2615
      %v2655 = vtanh.pop %v2617
      %v2656 = vtanh.pop %v2619
      %v2657 = vtanh.pop %v2621
      %v2658 = vtanh.pop %v2623
      %v2659 = vtanh.pop %v2625
      %v2660 = vtanh.pop %v2627
      %v2661 = vxor.u32 %v2566, 2147483648
      %v2662 = vxor.u32 %v2568, 2147483648
      %v2663 = vxor.u32 %v2570, 2147483648
      %v2664 = vxor.u32 %v2572, 2147483648
      %v2665 = vxor.u32 %v2574, 2147483648
      %v2666 = vxor.u32 %v2576, 2147483648
      %v2667 = vxor.u32 %v2578, 2147483648
      %v2668 = vxor.u32 %v2580, 2147483648
      %v2669 = vxor.u32 %v2582, 2147483648
      %v2670 = vxor.u32 %v2584, 2147483648
      %v2671 = vxor.u32 %v2586, 2147483648
      %v2672 = vxor.u32 %v2588, 2147483648
      %v2673 = vxor.u32 %v2590, 2147483648
      %v2674 = vxor.u32 %v2592, 2147483648
      %v2675 = vxor.u32 %v2594, 2147483648
      %v2676 = vxor.u32 %v2596, 2147483648
      %v2677 = vxor.u32 %v2598, 2147483648
      %v2678 = vxor.u32 %v2600, 2147483648
      %v2679 = vxor.u32 %v2602, 2147483648
      %v2680 = vxor.u32 %v2604, 2147483648
      %v2681 = vxor.u32 %v2606, 2147483648
      %v2682 = vxor.u32 %v2608, 2147483648
      %v2683 = vxor.u32 %v2610, 2147483648
      %v2684 = vxor.u32 %v2612, 2147483648
      %v2685 = vxor.u32 %v2614, 2147483648
      %v2686 = vxor.u32 %v2616, 2147483648
      %v2687 = vxor.u32 %v2618, 2147483648
      %v2688 = vxor.u32 %v2620, 2147483648
      %v2689 = vxor.u32 %v2622, 2147483648
      %v2690 = vxor.u32 %v2624, 2147483648
      %v2691 = vxor.u32 %v2626, 2147483648
      %v2692 = vxor.u32 %v2628, 2147483648
      %v2693 = vmul.f32 %v2661, 1.442695
      %v2694 = vpow.pop %v2693
      %v2695 = vmul.f32 %v2662, 1.442695
      %v2696 = vpow.pop %v2695
      %v2697 = vmul.f32 %v2663, 1.442695
      %v2698 = vpow.pop %v2697
      %v2699 = vmul.f32 %v2664, 1.442695
      %v2700 = vpow.pop %v2699
      %v2701 = vmul.f32 %v2665, 1.442695
      %v2702 = vpow.pop %v2701
      %v2703 = vmul.f32 %v2666, 1.442695
      %v2704 = vpow.pop %v2703
      %v2705 = vmul.f32 %v2667, 1.442695
      %v2706 = vpow.pop %v2705
      %v2707 = vmul.f32 %v2668, 1.442695
      %v2708 = vpow.pop %v2707
      %v2709 = vmul.f32 %v2669, 1.442695
      %v2710 = vpow.pop %v2709
      %v2711 = vmul.f32 %v2670, 1.442695
      %v2712 = vpow.pop %v2711
      %v2713 = vmul.f32 %v2671, 1.442695
      %v2714 = vpow.pop %v2713
      %v2715 = vmul.f32 %v2672, 1.442695
      %v2716 = vpow.pop %v2715
      %v2717 = vmul.f32 %v2673, 1.442695
      %v2718 = vpow.pop %v2717
      %v2719 = vmul.f32 %v2674, 1.442695
      %v2720 = vpow.pop %v2719
      %v2721 = vmul.f32 %v2675, 1.442695
      %v2722 = vpow.pop %v2721
      %v2723 = vmul.f32 %v2676, 1.442695
      %v2724 = vpow.pop %v2723
      %v2725 = vmul.f32 %v2677, 1.442695
      %v2726 = vpow.pop %v2725
      %v2727 = vmul.f32 %v2678, 1.442695
      %v2728 = vpow.pop %v2727
      %v2729 = vmul.f32 %v2679, 1.442695
      %v2730 = vpow.pop %v2729
      %v2731 = vmul.f32 %v2680, 1.442695
      %v2732 = vpow.pop %v2731
      %v2733 = vmul.f32 %v2681, 1.442695
      %v2734 = vpow.pop %v2733
      %v2735 = vmul.f32 %v2682, 1.442695
      %v2736 = vpow.pop %v2735
      %v2737 = vmul.f32 %v2683, 1.442695
      %v2738 = vpow.pop %v2737
      %v2739 = vmul.f32 %v2684, 1.442695
      %v2740 = vpow.pop %v2739
      %v2741 = vmul.f32 %v2685, 1.442695
      %v2742 = vpow.pop %v2741
      %v2743 = vmul.f32 %v2686, 1.442695
      %v2744 = vpow.pop %v2743
      %v2745 = vmul.f32 %v2687, 1.442695
      %v2746 = vpow.pop %v2745
      %v2747 = vmul.f32 %v2688, 1.442695
      %v2748 = vpow.pop %v2747
      %v2749 = vmul.f32 %v2689, 1.442695
      %v2750 = vpow.pop %v2749
      %v2751 = vmul.f32 %v2690, 1.442695
      %v2752 = vpow.pop %v2751
      %v2753 = vmul.f32 %v2691, 1.442695
      %v2754 = vpow.pop %v2753
      %v2755 = vmul.f32 %v2692, 1.442695
      %v2756 = vpow.pop %v2755
      %v2757 = vadd.f32 %v2694, 1.0
      %v2758 = vadd.f32 %v2696, 1.0
      %v2759 = vadd.f32 %v2698, 1.0
      %v2760 = vadd.f32 %v2700, 1.0
      %v2761 = vadd.f32 %v2702, 1.0
      %v2762 = vadd.f32 %v2704, 1.0
      %v2763 = vadd.f32 %v2706, 1.0
      %v2764 = vadd.f32 %v2708, 1.0
      %v2765 = vadd.f32 %v2710, 1.0
      %v2766 = vadd.f32 %v2712, 1.0
      %v2767 = vadd.f32 %v2714, 1.0
      %v2768 = vadd.f32 %v2716, 1.0
      %v2769 = vadd.f32 %v2718, 1.0
      %v2770 = vadd.f32 %v2720, 1.0
      %v2771 = vadd.f32 %v2722, 1.0
      %v2772 = vadd.f32 %v2724, 1.0
      %v2773 = vadd.f32 %v2726, 1.0
      %v2774 = vadd.f32 %v2728, 1.0
      %v2775 = vadd.f32 %v2730, 1.0
      %v2776 = vadd.f32 %v2732, 1.0
      %v2777 = vadd.f32 %v2734, 1.0
      %v2778 = vadd.f32 %v2736, 1.0
      %v2779 = vadd.f32 %v2738, 1.0
      %v2780 = vadd.f32 %v2740, 1.0
      %v2781 = vadd.f32 %v2742, 1.0
      %v2782 = vadd.f32 %v2744, 1.0
      %v2783 = vadd.f32 %v2746, 1.0
      %v2784 = vadd.f32 %v2748, 1.0
      %v2785 = vadd.f32 %v2750, 1.0
      %v2786 = vadd.f32 %v2752, 1.0
      %v2787 = vadd.f32 %v2754, 1.0
      %v2788 = vadd.f32 %v2756, 1.0
      %v2789 = vrcp.pop %v2757
      %v2790 = vmul.f32 1.0, %v2789
      %v2791 = vrcp.pop %v2758
      %v2792 = vmul.f32 1.0, %v2791
      %v2793 = vrcp.pop %v2759
      %v2794 = vmul.f32 1.0, %v2793
      %v2795 = vrcp.pop %v2760
      %v2796 = vmul.f32 1.0, %v2795
      %v2797 = vrcp.pop %v2761
      %v2798 = vmul.f32 1.0, %v2797
      %v2799 = vrcp.pop %v2762
      %v2800 = vmul.f32 1.0, %v2799
      %v2801 = vrcp.pop %v2763
      %v2802 = vmul.f32 1.0, %v2801
      %v2803 = vrcp.pop %v2764
      %v2804 = vmul.f32 1.0, %v2803
      %v2805 = vrcp.pop %v2765
      %v2806 = vmul.f32 1.0, %v2805
      %v2807 = vrcp.pop %v2766
      %v2808 = vmul.f32 1.0, %v2807
      %v2809 = vrcp.pop %v2767
      %v2810 = vmul.f32 1.0, %v2809
      %v2811 = vrcp.pop %v2768
      %v2812 = vmul.f32 1.0, %v2811
      %v2813 = vrcp.pop %v2769
      %v2814 = vmul.f32 1.0, %v2813
      %v2815 = vrcp.pop %v2770
      %v2816 = vmul.f32 1.0, %v2815
      %v2817 = vrcp.pop %v2771
      %v2818 = vmul.f32 1.0, %v2817
      %v2819 = vrcp.pop %v2772
      %v2820 = vmul.f32 1.0, %v2819
      %v2821 = vrcp.pop %v2773
      %v2822 = vmul.f32 1.0, %v2821
      %v2823 = vrcp.pop %v2774
      %v2824 = vmul.f32 1.0, %v2823
      %v2825 = vrcp.pop %v2775
      %v2826 = vmul.f32 1.0, %v2825
      %v2827 = vrcp.pop %v2776
      %v2828 = vmul.f32 1.0, %v2827
      %v2829 = vrcp.pop %v2777
      %v2830 = vmul.f32 1.0, %v2829
      %v2831 = vrcp.pop %v2778
      %v2832 = vmul.f32 1.0, %v2831
      %v2833 = vrcp.pop %v2779
      %v2834 = vmul.f32 1.0, %v2833
      %v2835 = vrcp.pop %v2780
      %v2836 = vmul.f32 1.0, %v2835
      %v2837 = vrcp.pop %v2781
      %v2838 = vmul.f32 1.0, %v2837
      %v2839 = vrcp.pop %v2782
      %v2840 = vmul.f32 1.0, %v2839
      %v2841 = vrcp.pop %v2783
      %v2842 = vmul.f32 1.0, %v2841
      %v2843 = vrcp.pop %v2784
      %v2844 = vmul.f32 1.0, %v2843
      %v2845 = vrcp.pop %v2785
      %v2846 = vmul.f32 1.0, %v2845
      %v2847 = vrcp.pop %v2786
      %v2848 = vmul.f32 1.0, %v2847
      %v2849 = vrcp.pop %v2787
      %v2850 = vmul.f32 1.0, %v2849
      %v2851 = vrcp.pop %v2788
      %v2852 = vmul.f32 1.0, %v2851
      %v2853 = vmul.f32 %v2629, %v2790
      %v2854 = vmul.f32 %v2630, %v2792
      %v2855 = vmul.f32 %v2631, %v2794
      %v2856 = vmul.f32 %v2632, %v2796
      %v2857 = vmul.f32 %v2633, %v2798
      %v2858 = vmul.f32 %v2634, %v2800
      %v2859 = vmul.f32 %v2635, %v2802
      %v2860 = vmul.f32 %v2636, %v2804
      %v2861 = vmul.f32 %v2637, %v2806
      %v2862 = vmul.f32 %v2638, %v2808
      %v2863 = vmul.f32 %v2639, %v2810
      %v2864 = vmul.f32 %v2640, %v2812
      %v2865 = vmul.f32 %v2641, %v2814
      %v2866 = vmul.f32 %v2642, %v2816
      %v2867 = vmul.f32 %v2643, %v2818
      %v2868 = vmul.f32 %v2644, %v2820
      %v2869 = vmul.f32 %v2645, %v2822
      %v2870 = vmul.f32 %v2646, %v2824
      %v2871 = vmul.f32 %v2647, %v2826
      %v2872 = vmul.f32 %v2648, %v2828
      %v2873 = vmul.f32 %v2649, %v2830
      %v2874 = vmul.f32 %v2650, %v2832
      %v2875 = vmul.f32 %v2651, %v2834
      %v2876 = vmul.f32 %v2652, %v2836
      %v2877 = vmul.f32 %v2653, %v2838
      %v2878 = vmul.f32 %v2654, %v2840
      %v2879 = vmul.f32 %v2655, %v2842
      %v2880 = vmul.f32 %v2656, %v2844
      %v2881 = vmul.f32 %v2657, %v2846
      %v2882 = vmul.f32 %v2658, %v2848
      %v2883 = vmul.f32 %v2659, %v2850
      %v2884 = vmul.f32 %v2660, %v2852
      %v2885 = vpack.c.bf16 %v2854, %v2853
      %v2886 = vpack.c.bf16 %v2856, %v2855
      %v2887 = vpack.c.bf16 %v2858, %v2857
      %v2888 = vpack.c.bf16 %v2860, %v2859
      %v2889 = vpack.c.bf16 %v2862, %v2861
      %v2890 = vpack.c.bf16 %v2864, %v2863
      %v2891 = vpack.c.bf16 %v2866, %v2865
      %v2892 = vpack.c.bf16 %v2868, %v2867
      %v2893 = vpack.c.bf16 %v2870, %v2869
      %v2894 = vpack.c.bf16 %v2872, %v2871
      %v2895 = vpack.c.bf16 %v2874, %v2873
      %v2896 = vpack.c.bf16 %v2876, %v2875
      %v2897 = vpack.c.bf16 %v2878, %v2877
      %v2898 = vpack.c.bf16 %v2880, %v2879
      %v2899 = vpack.c.bf16 %v2882, %v2881
      %v2900 = vpack.c.bf16 %v2884, %v2883
      %v2901 = vld [vmem:[%s591] sm:$0xff]
      %v2902 = vld [vmem:[%s591 + $0x8] sm:$0xff]
      %v2903 = vld [vmem:[%s591 + $0x10] sm:$0xff]
      %v2904 = vld [vmem:[%s591 + $0x18] sm:$0xff]
      %v2905 = vld [vmem:[%s591 + $0x20] sm:$0xff]
      %v2906 = vld [vmem:[%s591 + $0x28] sm:$0xff]
      %v2907 = vld [vmem:[%s591 + $0x30] sm:$0xff]
      %v2908 = vld [vmem:[%s591 + $0x38] sm:$0xff]
      %v2909 = vld [vmem:[%s591 + $0x40] sm:$0xff]
      %v2910 = vld [vmem:[%s591 + $0x48] sm:$0xff]
      %v2911 = vld [vmem:[%s591 + $0x50] sm:$0xff]
      %v2912 = vld [vmem:[%s591 + $0x58] sm:$0xff]
      %v2913 = vld [vmem:[%s591 + $0x60] sm:$0xff]
      %v2914 = vld [vmem:[%s591 + $0x68] sm:$0xff]
      %v2915 = vld [vmem:[%s591 + $0x70] sm:$0xff]
      %v2916 = vld [vmem:[%s591 + $0x78] sm:$0xff]
      %v2917 = vld [vmem:[%s595] sm:$0x3]
      %v2919 = vlaneseq
      %v2920 = vshrl.u32 %v2919, 7
      %v2921 = vsub.s32 0, %v2920
      %v2922 = vrot.slane %v2917, %v2921
      %v2923 = vlaneseq
      %v2924 = vshrl.u32 %v2923, 7
      %v2925 = vsub.s32 1, %v2924
      %v2926 = vrot.slane %v2917, %v2925
      %v2945 = vunpack.c.l.b16 %v2901
      %v2946 = vunpack.c.h.b16 %v2901
      %v2947 = vunpack.c.l.b16 %v2902
      %v2948 = vunpack.c.h.b16 %v2902
      %v2949 = vunpack.c.l.b16 %v2903
      %v2950 = vunpack.c.h.b16 %v2903
      %v2951 = vunpack.c.l.b16 %v2904
      %v2952 = vunpack.c.h.b16 %v2904
      %v2953 = vunpack.c.l.b16 %v2905
      %v2954 = vunpack.c.h.b16 %v2905
      %v2955 = vunpack.c.l.b16 %v2906
      %v2956 = vunpack.c.h.b16 %v2906
      %v2957 = vunpack.c.l.b16 %v2907
      %v2958 = vunpack.c.h.b16 %v2907
      %v2959 = vunpack.c.l.b16 %v2908
      %v2960 = vunpack.c.h.b16 %v2908
      %v2961 = vunpack.c.l.b16 %v2909
      %v2962 = vunpack.c.h.b16 %v2909
      %v2963 = vunpack.c.l.b16 %v2910
      %v2964 = vunpack.c.h.b16 %v2910
      %v2965 = vunpack.c.l.b16 %v2911
      %v2966 = vunpack.c.h.b16 %v2911
      %v2967 = vunpack.c.l.b16 %v2912
      %v2968 = vunpack.c.h.b16 %v2912
      %v2969 = vunpack.c.l.b16 %v2913
      %v2970 = vunpack.c.h.b16 %v2913
      %v2971 = vunpack.c.l.b16 %v2914
      %v2972 = vunpack.c.h.b16 %v2914
      %v2973 = vunpack.c.l.b16 %v2915
      %v2974 = vunpack.c.h.b16 %v2915
      %v2975 = vunpack.c.l.b16 %v2916
      %v2976 = vunpack.c.h.b16 %v2916
      %v2977 = vpack.c.b16 %v2947, %v2945
      %v2978 = vpack.c.b16 %v2948, %v2946
      %v2979 = vpack.c.b16 %v2951, %v2949
      %v2980 = vpack.c.b16 %v2952, %v2950
      %v2981 = vpack.c.b16 %v2955, %v2953
      %v2982 = vpack.c.b16 %v2956, %v2954
      %v2983 = vpack.c.b16 %v2959, %v2957
      %v2984 = vpack.c.b16 %v2960, %v2958
      %v2985 = vpack.c.b16 %v2963, %v2961
      %v2986 = vpack.c.b16 %v2964, %v2962
      %v2987 = vpack.c.b16 %v2967, %v2965
      %v2988 = vpack.c.b16 %v2968, %v2966
      %v2989 = vpack.c.b16 %v2971, %v2969
      %v2990 = vpack.c.b16 %v2972, %v2970
      %v2991 = vpack.c.b16 %v2975, %v2973
      %v2992 = vpack.c.b16 %v2976, %v2974
      %3009 = vmatprep.subr.bf16.mxu0 %v2992
      %3010 = vmatpush1.bf16.msra.mxu0 %v2991
      %3011 = vmatprep.subr.bf16.mxu0 %v2990
      %3012 = vmatpush1.bf16.msra.mxu0 %v2989
      %3013 = vmatprep.subr.bf16.mxu0 %v2988
      %3014 = vmatpush1.bf16.msra.mxu0 %v2987
      %3015 = vmatprep.subr.bf16.mxu0 %v2986
      %3016 = vmatpush1.bf16.msra.mxu0 %v2985
      %3017 = vmatprep.subr.bf16.mxu0 %v2984
      %3018 = vmatpush1.bf16.msra.mxu0 %v2983
      %3019 = vmatprep.subr.bf16.mxu0 %v2982
      %3020 = vmatpush1.bf16.msra.mxu0 %v2981
      %3021 = vmatprep.subr.bf16.mxu0 %v2980
      %3022 = vmatpush1.bf16.msra.mxu0 %v2979
      %3023 = vmatprep.subr.bf16.mxu0 %v2978
      %3024 = vmatpush1.bf16.msra.mxu0 %v2977
      %3025 = vmatprep.subr.bf16.mxu0 0
      %3026 = vmatpush2.bf16.msra.mxu0 0
      %3027 = vmatprep.subr.bf16.mxu0 0
      %3028 = vmatpush2.bf16.msra.mxu0 0
      %3029 = vmatprep.subr.bf16.mxu0 0
      %3030 = vmatpush2.bf16.msra.mxu0 0
      %3031 = vmatprep.subr.bf16.mxu0 0
      %3032 = vmatpush2.bf16.msra.mxu0 0
      %3033 = vmatprep.subr.bf16.mxu0 0
      %3034 = vmatpush2.bf16.msra.mxu0 0
      %3035 = vmatprep.subr.bf16.mxu0 0
      %3036 = vmatpush2.bf16.msra.mxu0 0
      %3037 = vmatprep.subr.bf16.mxu0 0
      %3038 = vmatpush2.bf16.msra.mxu0 0
      %3039 = vmatprep.subr.bf16.mxu0 0
      %3040 = vmatpush2.bf16.msra.mxu0 0
      %3041 = vmatprep.mubr.bf16.mxu0 0
      %3042 = vmatmul.mubr.bf16.gmra.mxu0 %v2885
      %v3043 = vpop.f32.mrf.mxu0
      %v3044 = vadd.f32 %v2922, %v3043
      %v3045 = vpop.f32.mrf.mxu0
      %v3046 = vadd.f32 %v2926, %v3045
      %v3047 = vpop.f32.mrf.mxu0
      %v3048 = vadd.f32 %v2922, %v3047
      %v3049 = vpop.f32.mrf.mxu0
      %v3050 = vadd.f32 %v2926, %v3049
      %3051 = vmatprep.mubr.bf16.mxu0 0
      %3052 = vmatmul.mubr.bf16.gmra.mxu0 %v2886
      %v3053 = vpop.f32.mrf.mxu0
      %v3054 = vadd.f32 %v2922, %v3053
      %v3055 = vpop.f32.mrf.mxu0
      %v3056 = vadd.f32 %v2926, %v3055
      %v3057 = vpop.f32.mrf.mxu0
      %v3058 = vadd.f32 %v2922, %v3057
      %v3059 = vpop.f32.mrf.mxu0
      %v3060 = vadd.f32 %v2926, %v3059
      %3061 = vmatprep.mubr.bf16.mxu0 0
      %3062 = vmatmul.mubr.bf16.gmra.mxu0 %v2887
      %v3063 = vpop.f32.mrf.mxu0
      %v3064 = vadd.f32 %v2922, %v3063
      %v3065 = vpop.f32.mrf.mxu0
      %v3066 = vadd.f32 %v2926, %v3065
      %v3067 = vpop.f32.mrf.mxu0
      %v3068 = vadd.f32 %v2922, %v3067
      %v3069 = vpop.f32.mrf.mxu0
      %v3070 = vadd.f32 %v2926, %v3069
      %3071 = vmatprep.mubr.bf16.mxu0 0
      %3072 = vmatmul.mubr.bf16.gmra.mxu0 %v2888
      %v3073 = vpop.f32.mrf.mxu0
      %v3074 = vadd.f32 %v2922, %v3073
      %v3075 = vpop.f32.mrf.mxu0
      %v3076 = vadd.f32 %v2926, %v3075
      %v3077 = vpop.f32.mrf.mxu0
      %v3078 = vadd.f32 %v2922, %v3077
      %v3079 = vpop.f32.mrf.mxu0
      %v3080 = vadd.f32 %v2926, %v3079
      %3081 = vmatprep.mubr.bf16.mxu0 0
      %3082 = vmatmul.mubr.bf16.gmra.mxu0 %v2889
      %v3083 = vpop.f32.mrf.mxu0
      %v3084 = vadd.f32 %v2922, %v3083
      %v3085 = vpop.f32.mrf.mxu0
      %v3086 = vadd.f32 %v2926, %v3085
      %v3087 = vpop.f32.mrf.mxu0
      %v3088 = vadd.f32 %v2922, %v3087
      %v3089 = vpop.f32.mrf.mxu0
      %v3090 = vadd.f32 %v2926, %v3089
      %3091 = vmatprep.mubr.bf16.mxu0 0
      %3092 = vmatmul.mubr.bf16.gmra.mxu0 %v2890
      %v3093 = vpop.f32.mrf.mxu0
      %v3094 = vadd.f32 %v2922, %v3093
      %v3095 = vpop.f32.mrf.mxu0
      %v3096 = vadd.f32 %v2926, %v3095
      %v3097 = vpop.f32.mrf.mxu0
      %v3098 = vadd.f32 %v2922, %v3097
      %v3099 = vpop.f32.mrf.mxu0
      %v3100 = vadd.f32 %v2926, %v3099
      %3101 = vmatprep.mubr.bf16.mxu0 0
      %3102 = vmatmul.mubr.bf16.gmra.mxu0 %v2891
      %v3103 = vpop.f32.mrf.mxu0
      %v3104 = vadd.f32 %v2922, %v3103
      %v3105 = vpop.f32.mrf.mxu0
      %v3106 = vadd.f32 %v2926, %v3105
      %v3107 = vpop.f32.mrf.mxu0
      %v3108 = vadd.f32 %v2922, %v3107
      %v3109 = vpop.f32.mrf.mxu0
      %v3110 = vadd.f32 %v2926, %v3109
      %3111 = vmatprep.mubr.bf16.mxu0 0
      %3112 = vmatmul.mubr.bf16.gmra.mxu0 %v2892
      %v3113 = vpop.f32.mrf.mxu0
      %v3114 = vadd.f32 %v2922, %v3113
      %v3115 = vpop.f32.mrf.mxu0
      %v3116 = vadd.f32 %v2926, %v3115
      %v3117 = vpop.f32.mrf.mxu0
      %v3118 = vadd.f32 %v2922, %v3117
      %v3119 = vpop.f32.mrf.mxu0
      %v3120 = vadd.f32 %v2926, %v3119
      %3121 = vmatprep.mubr.bf16.mxu0 0
      %3122 = vmatmul.mubr.bf16.gmra.mxu0 %v2893
      %v3123 = vpop.f32.mrf.mxu0
      %v3124 = vadd.f32 %v2922, %v3123
      %v3125 = vpop.f32.mrf.mxu0
      %v3126 = vadd.f32 %v2926, %v3125
      %v3127 = vpop.f32.mrf.mxu0
      %v3128 = vadd.f32 %v2922, %v3127
      %v3129 = vpop.f32.mrf.mxu0
      %v3130 = vadd.f32 %v2926, %v3129
      %3131 = vmatprep.mubr.bf16.mxu0 0
      %3132 = vmatmul.mubr.bf16.gmra.mxu0 %v2894
      %v3133 = vpop.f32.mrf.mxu0
      %v3134 = vadd.f32 %v2922, %v3133
      %v3135 = vpop.f32.mrf.mxu0
      %v3136 = vadd.f32 %v2926, %v3135
      %v3137 = vpop.f32.mrf.mxu0
      %v3138 = vadd.f32 %v2922, %v3137
      %v3139 = vpop.f32.mrf.mxu0
      %v3140 = vadd.f32 %v2926, %v3139
      %3141 = vmatprep.mubr.bf16.mxu0 0
      %3142 = vmatmul.mubr.bf16.gmra.mxu0 %v2895
      %v3143 = vpop.f32.mrf.mxu0
      %v3144 = vadd.f32 %v2922, %v3143
      %v3145 = vpop.f32.mrf.mxu0
      %v3146 = vadd.f32 %v2926, %v3145
      %v3147 = vpop.f32.mrf.mxu0
      %v3148 = vadd.f32 %v2922, %v3147
      %v3149 = vpop.f32.mrf.mxu0
      %v3150 = vadd.f32 %v2926, %v3149
      %3151 = vmatprep.mubr.bf16.mxu0 0
      %3152 = vmatmul.mubr.bf16.gmra.mxu0 %v2896
      %v3153 = vpop.f32.mrf.mxu0
      %v3154 = vadd.f32 %v2922, %v3153
      %v3155 = vpop.f32.mrf.mxu0
      %v3156 = vadd.f32 %v2926, %v3155
      %v3157 = vpop.f32.mrf.mxu0
      %v3158 = vadd.f32 %v2922, %v3157
      %v3159 = vpop.f32.mrf.mxu0
      %v3160 = vadd.f32 %v2926, %v3159
      %3161 = vmatprep.mubr.bf16.mxu0 0
      %3162 = vmatmul.mubr.bf16.gmra.mxu0 %v2897
      %v3163 = vpop.f32.mrf.mxu0
      %v3164 = vadd.f32 %v2922, %v3163
      %v3165 = vpop.f32.mrf.mxu0
      %v3166 = vadd.f32 %v2926, %v3165
      %v3167 = vpop.f32.mrf.mxu0
      %v3168 = vadd.f32 %v2922, %v3167
      %v3169 = vpop.f32.mrf.mxu0
      %v3170 = vadd.f32 %v2926, %v3169
      %3171 = vmatprep.mubr.bf16.mxu0 0
      %3172 = vmatmul.mubr.bf16.gmra.mxu0 %v2898
      %v3173 = vpop.f32.mrf.mxu0
      %v3174 = vadd.f32 %v2922, %v3173
      %v3175 = vpop.f32.mrf.mxu0
      %v3176 = vadd.f32 %v2926, %v3175
      %v3177 = vpop.f32.mrf.mxu0
      %v3178 = vadd.f32 %v2922, %v3177
      %v3179 = vpop.f32.mrf.mxu0
      %v3180 = vadd.f32 %v2926, %v3179
      %3181 = vmatprep.mubr.bf16.mxu0 0
      %3182 = vmatmul.mubr.bf16.gmra.mxu0 %v2899
      %v3183 = vpop.f32.mrf.mxu0
      %v3184 = vadd.f32 %v2922, %v3183
      %v3185 = vpop.f32.mrf.mxu0
      %v3186 = vadd.f32 %v2926, %v3185
      %v3187 = vpop.f32.mrf.mxu0
      %v3188 = vadd.f32 %v2922, %v3187
      %v3189 = vpop.f32.mrf.mxu0
      %v3190 = vadd.f32 %v2926, %v3189
      %3191 = vmatprep.mubr.bf16.mxu0 0
      %3192 = vmatmul.mubr.bf16.gmra.mxu0 %v2900
      %v3193 = vpop.f32.mrf.mxu0
      %v3194 = vadd.f32 %v2922, %v3193
      %v3195 = vpop.f32.mrf.mxu0
      %v3196 = vadd.f32 %v2926, %v3195
      %v3197 = vpop.f32.mrf.mxu0
      %v3198 = vadd.f32 %v2922, %v3197
      %v3199 = vpop.f32.mrf.mxu0
      %v3200 = vadd.f32 %v2926, %v3199
      %3201 = vdwg.mxu0
      %v3202 = vld [vmem:[%s557] sm:$0xff]
      %v3203 = vld [vmem:[%s557 + $0x8] sm:$0xff]
      %v3204 = vld [vmem:[%s557 + $0x10] sm:$0xff]
      %v3205 = vld [vmem:[%s557 + $0x18] sm:$0xff]
      %v3206 = vld [vmem:[%s557 + $0x20] sm:$0xff]
      %v3207 = vld [vmem:[%s557 + $0x28] sm:$0xff]
      %v3208 = vld [vmem:[%s557 + $0x30] sm:$0xff]
      %v3209 = vld [vmem:[%s557 + $0x38] sm:$0xff]
      %v3210 = vld [vmem:[%s557 + $0x40] sm:$0xff]
      %v3211 = vld [vmem:[%s557 + $0x48] sm:$0xff]
      %v3212 = vld [vmem:[%s557 + $0x50] sm:$0xff]
      %v3213 = vld [vmem:[%s557 + $0x58] sm:$0xff]
      %v3214 = vld [vmem:[%s557 + $0x60] sm:$0xff]
      %v3215 = vld [vmem:[%s557 + $0x68] sm:$0xff]
      %v3216 = vld [vmem:[%s557 + $0x70] sm:$0xff]
      %v3217 = vld [vmem:[%s557 + $0x78] sm:$0xff]
      %v3218 = vld [vmem:[%s557 + $0x80] sm:$0xff]
      %v3219 = vld [vmem:[%s557 + $0x88] sm:$0xff]
      %v3220 = vld [vmem:[%s557 + $0x90] sm:$0xff]
      %v3221 = vld [vmem:[%s557 + $0x98] sm:$0xff]
      %v3222 = vld [vmem:[%s557 + $0xa0] sm:$0xff]
      %v3223 = vld [vmem:[%s557 + $0xa8] sm:$0xff]
      %v3224 = vld [vmem:[%s557 + $0xb0] sm:$0xff]
      %v3225 = vld [vmem:[%s557 + $0xb8] sm:$0xff]
      %v3226 = vld [vmem:[%s557 + $0xc0] sm:$0xff]
      %v3227 = vld [vmem:[%s557 + $0xc8] sm:$0xff]
      %v3228 = vld [vmem:[%s557 + $0xd0] sm:$0xff]
      %v3229 = vld [vmem:[%s557 + $0xd8] sm:$0xff]
      %v3230 = vld [vmem:[%s557 + $0xe0] sm:$0xff]
      %v3231 = vld [vmem:[%s557 + $0xe8] sm:$0xff]
      %v3232 = vld [vmem:[%s557 + $0xf0] sm:$0xff]
      %v3233 = vld [vmem:[%s557 + $0xf8] sm:$0xff]
      %p3234 = scmp.lt.s32.totalorder %s28, 3
      // Predicated region
      $region69: #{fvae_decoder_forward.3} parent=63 // pred_check
        %p3235 = pneg %p3234
      $region70: #{fvae_decoder_forward.3} parent=63 // pred_check_branch
        %3237 = sbr.rel (%p3235) target = $region72
      $region71: #{fvae_decoder_forward.3} parent=63 // pred_region
        %s3238 = sadd.s32 %s689, 8
        %s3239 = sadd.s32 %s3238, %s611
        %v3240 = vadd.f32 %v693, %v3044
        %v3241 = vadd.f32 %v694, %v3048
        %v3242 = vadd.f32 %v695, %v3054
        %v3243 = vadd.f32 %v696, %v3058
        %v3244 = vadd.f32 %v697, %v3064
        %v3245 = vadd.f32 %v698, %v3068
        %v3246 = vadd.f32 %v699, %v3074
        %v3247 = vadd.f32 %v700, %v3078
        %v3248 = vadd.f32 %v701, %v3084
        %v3249 = vadd.f32 %v702, %v3088
        %v3250 = vadd.f32 %v703, %v3094
        %v3251 = vadd.f32 %v704, %v3098
        %v3252 = vadd.f32 %v705, %v3104
        %v3253 = vadd.f32 %v706, %v3108
        %v3254 = vadd.f32 %v707, %v3114
        %v3255 = vadd.f32 %v708, %v3118
        %v3256 = vadd.f32 %v709, %v3124
        %v3257 = vadd.f32 %v710, %v3128
        %v3258 = vadd.f32 %v711, %v3134
        %v3259 = vadd.f32 %v712, %v3138
        %v3260 = vadd.f32 %v713, %v3144
        %v3261 = vadd.f32 %v714, %v3148
        %v3262 = vadd.f32 %v715, %v3154
        %v3263 = vadd.f32 %v716, %v3158
        %v3264 = vadd.f32 %v717, %v3164
        %v3265 = vadd.f32 %v718, %v3168
        %v3266 = vadd.f32 %v719, %v3174
        %v3267 = vadd.f32 %v720, %v3178
        %v3268 = vadd.f32 %v721, %v3184
        %v3269 = vadd.f32 %v722, %v3188
        %v3270 = vadd.f32 %v723, %v3194
        %v3271 = vadd.f32 %v724, %v3198
        %3273 = vset.pattern.permute.xlu0 0
        %3274 = vperm.xlu0 %3273, %v3202
        %v3275 = vpop.permute.xlu0 %3274
        %3278 = vset.pattern.permute.xlu0 0
        %3279 = vperm.xlu0 %3278, %v3203
        %v3280 = vpop.permute.xlu0 %3279
        %3283 = vset.pattern.permute.xlu0 0
        %3284 = vperm.xlu0 %3283, %v3204
        %v3285 = vpop.permute.xlu0 %3284
        %3288 = vset.pattern.permute.xlu0 0
        %3289 = vperm.xlu0 %3288, %v3205
        %v3290 = vpop.permute.xlu0 %3289
        %3293 = vset.pattern.permute.xlu0 0
        %3294 = vperm.xlu0 %3293, %v3206
        %v3295 = vpop.permute.xlu0 %3294
        %3298 = vset.pattern.permute.xlu0 0
        %3299 = vperm.xlu0 %3298, %v3207
        %v3300 = vpop.permute.xlu0 %3299
        %3303 = vset.pattern.permute.xlu0 0
        %3304 = vperm.xlu0 %3303, %v3208
        %v3305 = vpop.permute.xlu0 %3304
        %3308 = vset.pattern.permute.xlu0 0
        %3309 = vperm.xlu0 %3308, %v3209
        %v3310 = vpop.permute.xlu0 %3309
        %3313 = vset.pattern.permute.xlu0 0
        %3314 = vperm.xlu0 %3313, %v3210
        %v3315 = vpop.permute.xlu0 %3314
        %3318 = vset.pattern.permute.xlu0 0
        %3319 = vperm.xlu0 %3318, %v3211
        %v3320 = vpop.permute.xlu0 %3319
        %3323 = vset.pattern.permute.xlu0 0
        %3324 = vperm.xlu0 %3323, %v3212
        %v3325 = vpop.permute.xlu0 %3324
        %3328 = vset.pattern.permute.xlu0 0
        %3329 = vperm.xlu0 %3328, %v3213
        %v3330 = vpop.permute.xlu0 %3329
        %3333 = vset.pattern.permute.xlu0 0
        %3334 = vperm.xlu0 %3333, %v3214
        %v3335 = vpop.permute.xlu0 %3334
        %3338 = vset.pattern.permute.xlu0 0
        %3339 = vperm.xlu0 %3338, %v3215
        %v3340 = vpop.permute.xlu0 %3339
        %3343 = vset.pattern.permute.xlu0 0
        %3344 = vperm.xlu0 %3343, %v3216
        %v3345 = vpop.permute.xlu0 %3344
        %3348 = vset.pattern.permute.xlu0 0
        %3349 = vperm.xlu0 %3348, %v3217
        %v3350 = vpop.permute.xlu0 %3349
        %3353 = vset.pattern.permute.xlu0 0
        %3354 = vperm.xlu0 %3353, %v3218
        %v3355 = vpop.permute.xlu0 %3354
        %3358 = vset.pattern.permute.xlu0 0
        %3359 = vperm.xlu0 %3358, %v3219
        %v3360 = vpop.permute.xlu0 %3359
        %3363 = vset.pattern.permute.xlu0 0
        %3364 = vperm.xlu0 %3363, %v3220
        %v3365 = vpop.permute.xlu0 %3364
        %3368 = vset.pattern.permute.xlu0 0
        %3369 = vperm.xlu0 %3368, %v3221
        %v3370 = vpop.permute.xlu0 %3369
        %3373 = vset.pattern.permute.xlu0 0
        %3374 = vperm.xlu0 %3373, %v3222
        %v3375 = vpop.permute.xlu0 %3374
        %3378 = vset.pattern.permute.xlu0 0
        %3379 = vperm.xlu0 %3378, %v3223
        %v3380 = vpop.permute.xlu0 %3379
        %3383 = vset.pattern.permute.xlu0 0
        %3384 = vperm.xlu0 %3383, %v3224
        %v3385 = vpop.permute.xlu0 %3384
        %3388 = vset.pattern.permute.xlu0 0
        %3389 = vperm.xlu0 %3388, %v3225
        %v3390 = vpop.permute.xlu0 %3389
        %3393 = vset.pattern.permute.xlu0 0
        %3394 = vperm.xlu0 %3393, %v3226
        %v3395 = vpop.permute.xlu0 %3394
        %3398 = vset.pattern.permute.xlu0 0
        %3399 = vperm.xlu0 %3398, %v3227
        %v3400 = vpop.permute.xlu0 %3399
        %3403 = vset.pattern.permute.xlu0 0
        %3404 = vperm.xlu0 %3403, %v3228
        %v3405 = vpop.permute.xlu0 %3404
        %3408 = vset.pattern.permute.xlu0 0
        %3409 = vperm.xlu0 %3408, %v3229
        %v3410 = vpop.permute.xlu0 %3409
        %3413 = vset.pattern.permute.xlu0 0
        %3414 = vperm.xlu0 %3413, %v3230
        %v3415 = vpop.permute.xlu0 %3414
        %3418 = vset.pattern.permute.xlu0 0
        %3419 = vperm.xlu0 %3418, %v3231
        %v3420 = vpop.permute.xlu0 %3419
        %3423 = vset.pattern.permute.xlu0 0
        %3424 = vperm.xlu0 %3423, %v3232
        %v3425 = vpop.permute.xlu0 %3424
        %3428 = vset.pattern.permute.xlu0 0
        %3429 = vperm.xlu0 %3428, %v3233
        %v3430 = vpop.permute.xlu0 %3429
        %v3432 = vmul.f32 %v3240, %v3275
        %v3433 = vmul.f32 %v3241, %v3280
        %v3434 = vmul.f32 %v3242, %v3285
        %v3435 = vmul.f32 %v3243, %v3290
        %v3436 = vmul.f32 %v3244, %v3295
        %v3437 = vmul.f32 %v3245, %v3300
        %v3438 = vmul.f32 %v3246, %v3305
        %v3439 = vmul.f32 %v3247, %v3310
        %v3440 = vmul.f32 %v3248, %v3315
        %v3441 = vmul.f32 %v3249, %v3320
        %v3442 = vmul.f32 %v3250, %v3325
        %v3443 = vmul.f32 %v3251, %v3330
        %v3444 = vmul.f32 %v3252, %v3335
        %v3445 = vmul.f32 %v3253, %v3340
        %v3446 = vmul.f32 %v3254, %v3345
        %v3447 = vmul.f32 %v3255, %v3350
        %v3448 = vmul.f32 %v3256, %v3355
        %v3449 = vmul.f32 %v3257, %v3360
        %v3450 = vmul.f32 %v3258, %v3365
        %v3451 = vmul.f32 %v3259, %v3370
        %v3452 = vmul.f32 %v3260, %v3375
        %v3453 = vmul.f32 %v3261, %v3380
        %v3454 = vmul.f32 %v3262, %v3385
        %v3455 = vmul.f32 %v3263, %v3390
        %v3456 = vmul.f32 %v3264, %v3395
        %v3457 = vmul.f32 %v3265, %v3400
        %v3458 = vmul.f32 %v3266, %v3405
        %v3459 = vmul.f32 %v3267, %v3410
        %v3460 = vmul.f32 %v3268, %v3415
        %v3461 = vmul.f32 %v3269, %v3420
        %v3462 = vmul.f32 %v3270, %v3425
        %v3463 = vmul.f32 %v3271, %v3430
        %s3464 = scalar_lea.vmem [#allocation2], %s3239
        %3465 = vst [vmem:[%s3464] sm:$0xff] %v3432
        %3466 = vst [vmem:[%s3464 + $0x8] sm:$0xff] %v3433
        %3467 = vst [vmem:[%s3464 + $0x10] sm:$0xff] %v3434
        %3468 = vst [vmem:[%s3464 + $0x18] sm:$0xff] %v3435
        %3469 = vst [vmem:[%s3464 + $0x20] sm:$0xff] %v3436
        %3470 = vst [vmem:[%s3464 + $0x28] sm:$0xff] %v3437
        %3471 = vst [vmem:[%s3464 + $0x30] sm:$0xff] %v3438
        %3472 = vst [vmem:[%s3464 + $0x38] sm:$0xff] %v3439
        %3473 = vst [vmem:[%s3464 + $0x40] sm:$0xff] %v3440
        %3474 = vst [vmem:[%s3464 + $0x48] sm:$0xff] %v3441
        %3475 = vst [vmem:[%s3464 + $0x50] sm:$0xff] %v3442
        %3476 = vst [vmem:[%s3464 + $0x58] sm:$0xff] %v3443
        %3477 = vst [vmem:[%s3464 + $0x60] sm:$0xff] %v3444
        %3478 = vst [vmem:[%s3464 + $0x68] sm:$0xff] %v3445
        %3479 = vst [vmem:[%s3464 + $0x70] sm:$0xff] %v3446
        %3480 = vst [vmem:[%s3464 + $0x78] sm:$0xff] %v3447
        %3481 = vst [vmem:[%s3464 + $0x80] sm:$0xff] %v3448
        %3482 = vst [vmem:[%s3464 + $0x88] sm:$0xff] %v3449
        %3483 = vst [vmem:[%s3464 + $0x90] sm:$0xff] %v3450
        %3484 = vst [vmem:[%s3464 + $0x98] sm:$0xff] %v3451
        %3485 = vst [vmem:[%s3464 + $0xa0] sm:$0xff] %v3452
        %3486 = vst [vmem:[%s3464 + $0xa8] sm:$0xff] %v3453
        %3487 = vst [vmem:[%s3464 + $0xb0] sm:$0xff] %v3454
        %3488 = vst [vmem:[%s3464 + $0xb8] sm:$0xff] %v3455
        %3489 = vst [vmem:[%s3464 + $0xc0] sm:$0xff] %v3456
        %3490 = vst [vmem:[%s3464 + $0xc8] sm:$0xff] %v3457
        %3491 = vst [vmem:[%s3464 + $0xd0] sm:$0xff] %v3458
        %3492 = vst [vmem:[%s3464 + $0xd8] sm:$0xff] %v3459
        %3493 = vst [vmem:[%s3464 + $0xe0] sm:$0xff] %v3460
        %3494 = vst [vmem:[%s3464 + $0xe8] sm:$0xff] %v3461
        %3495 = vst [vmem:[%s3464 + $0xf0] sm:$0xff] %v3462
        %3496 = vst [vmem:[%s3464 + $0xf8] sm:$0xff] %v3463
      $region72: #{fvae_decoder_forward.3} parent=63 // pred_fallthru
        _
      // Predicated region
      $region73: #{fvae_decoder_forward.3} parent=63 // pred_check
        %p3497 = pneg %p612
      $region74: #{fvae_decoder_forward.3} parent=63 // pred_check_branch
        %3499 = sbr.rel (%p3497) target = $region76
      $region75: #{fvae_decoder_forward.3} parent=63 // pred_region
        %s3500 = scalar_lea.vmem [#allocation3], %s611
        %3501 = vst [vmem:[%s3500] sm:$0xff] %v3046
        %3502 = vst [vmem:[%s3500 + $0x8] sm:$0xff] %v3050
        %3503 = vst [vmem:[%s3500 + $0x10] sm:$0xff] %v3056
        %3504 = vst [vmem:[%s3500 + $0x18] sm:$0xff] %v3060
        %3505 = vst [vmem:[%s3500 + $0x20] sm:$0xff] %v3066
        %3506 = vst [vmem:[%s3500 + $0x28] sm:$0xff] %v3070
        %3507 = vst [vmem:[%s3500 + $0x30] sm:$0xff] %v3076
        %3508 = vst [vmem:[%s3500 + $0x38] sm:$0xff] %v3080
        %3509 = vst [vmem:[%s3500 + $0x40] sm:$0xff] %v3086
        %3510 = vst [vmem:[%s3500 + $0x48] sm:$0xff] %v3090
        %3511 = vst [vmem:[%s3500 + $0x50] sm:$0xff] %v3096
        %3512 = vst [vmem:[%s3500 + $0x58] sm:$0xff] %v3100
        %3513 = vst [vmem:[%s3500 + $0x60] sm:$0xff] %v3106
        %3514 = vst [vmem:[%s3500 + $0x68] sm:$0xff] %v3110
        %3515 = vst [vmem:[%s3500 + $0x70] sm:$0xff] %v3116
        %3516 = vst [vmem:[%s3500 + $0x78] sm:$0xff] %v3120
        %3517 = vst [vmem:[%s3500 + $0x80] sm:$0xff] %v3126
        %3518 = vst [vmem:[%s3500 + $0x88] sm:$0xff] %v3130
        %3519 = vst [vmem:[%s3500 + $0x90] sm:$0xff] %v3136
        %3520 = vst [vmem:[%s3500 + $0x98] sm:$0xff] %v3140
        %3521 = vst [vmem:[%s3500 + $0xa0] sm:$0xff] %v3146
        %3522 = vst [vmem:[%s3500 + $0xa8] sm:$0xff] %v3150
        %3523 = vst [vmem:[%s3500 + $0xb0] sm:$0xff] %v3156
        %3524 = vst [vmem:[%s3500 + $0xb8] sm:$0xff] %v3160
        %3525 = vst [vmem:[%s3500 + $0xc0] sm:$0xff] %v3166
        %3526 = vst [vmem:[%s3500 + $0xc8] sm:$0xff] %v3170
        %3527 = vst [vmem:[%s3500 + $0xd0] sm:$0xff] %v3176
        %3528 = vst [vmem:[%s3500 + $0xd8] sm:$0xff] %v3180
        %3529 = vst [vmem:[%s3500 + $0xe0] sm:$0xff] %v3186
        %3530 = vst [vmem:[%s3500 + $0xe8] sm:$0xff] %v3190
        %3531 = vst [vmem:[%s3500 + $0xf0] sm:$0xff] %v3196
        %3532 = vst [vmem:[%s3500 + $0xf8] sm:$0xff] %v3200
      $region76: #{fvae_decoder_forward.3} parent=63 // pred_fallthru
        _
      %p3533 = scmp.gt.s32.totalorder %s28, 0
      %p3534 = pnand %p3533, %p3234
      %p3535 = pneg %p3534
      // Predicated region
      $region77: #{fvae_decoder_forward.3} parent=63 // pred_check
        _
      $region78: #{fvae_decoder_forward.3} parent=63 // pred_check_branch
        %3537 = sbr.rel (%p3534) target = $region80
      $region79: #{fvae_decoder_forward.3} parent=63 // pred_region
        %s3538 = scalar_lea.vmem [#allocation3], %s611
        %v3539 = vld [vmem:[%s3538] sm:$0xff]
        %v3540 = vld [vmem:[%s3538 + $0x8] sm:$0xff]
        %v3541 = vld [vmem:[%s3538 + $0x10] sm:$0xff]
        %v3542 = vld [vmem:[%s3538 + $0x18] sm:$0xff]
        %v3543 = vld [vmem:[%s3538 + $0x20] sm:$0xff]
        %v3544 = vld [vmem:[%s3538 + $0x28] sm:$0xff]
        %v3545 = vld [vmem:[%s3538 + $0x30] sm:$0xff]
        %v3546 = vld [vmem:[%s3538 + $0x38] sm:$0xff]
        %v3547 = vld [vmem:[%s3538 + $0x40] sm:$0xff]
        %v3548 = vld [vmem:[%s3538 + $0x48] sm:$0xff]
        %v3549 = vld [vmem:[%s3538 + $0x50] sm:$0xff]
        %v3550 = vld [vmem:[%s3538 + $0x58] sm:$0xff]
        %v3551 = vld [vmem:[%s3538 + $0x60] sm:$0xff]
        %v3552 = vld [vmem:[%s3538 + $0x68] sm:$0xff]
        %v3553 = vld [vmem:[%s3538 + $0x70] sm:$0xff]
        %v3554 = vld [vmem:[%s3538 + $0x78] sm:$0xff]
        %v3555 = vld [vmem:[%s3538 + $0x80] sm:$0xff]
        %v3556 = vld [vmem:[%s3538 + $0x88] sm:$0xff]
        %v3557 = vld [vmem:[%s3538 + $0x90] sm:$0xff]
        %v3558 = vld [vmem:[%s3538 + $0x98] sm:$0xff]
        %v3559 = vld [vmem:[%s3538 + $0xa0] sm:$0xff]
        %v3560 = vld [vmem:[%s3538 + $0xa8] sm:$0xff]
        %v3561 = vld [vmem:[%s3538 + $0xb0] sm:$0xff]
        %v3562 = vld [vmem:[%s3538 + $0xb8] sm:$0xff]
        %v3563 = vld [vmem:[%s3538 + $0xc0] sm:$0xff]
        %v3564 = vld [vmem:[%s3538 + $0xc8] sm:$0xff]
        %v3565 = vld [vmem:[%s3538 + $0xd0] sm:$0xff]
        %v3566 = vld [vmem:[%s3538 + $0xd8] sm:$0xff]
        %v3567 = vld [vmem:[%s3538 + $0xe0] sm:$0xff]
        %v3568 = vld [vmem:[%s3538 + $0xe8] sm:$0xff]
        %v3569 = vld [vmem:[%s3538 + $0xf0] sm:$0xff]
        %v3570 = vld [vmem:[%s3538 + $0xf8] sm:$0xff]
        %v3571 = vadd.f32 %v3539, %v3046
        %v3572 = vadd.f32 %v3540, %v3050
        %v3573 = vadd.f32 %v3541, %v3056
        %v3574 = vadd.f32 %v3542, %v3060
        %v3575 = vadd.f32 %v3543, %v3066
        %v3576 = vadd.f32 %v3544, %v3070
        %v3577 = vadd.f32 %v3545, %v3076
        %v3578 = vadd.f32 %v3546, %v3080
        %v3579 = vadd.f32 %v3547, %v3086
        %v3580 = vadd.f32 %v3548, %v3090
        %v3581 = vadd.f32 %v3549, %v3096
        %v3582 = vadd.f32 %v3550, %v3100
        %v3583 = vadd.f32 %v3551, %v3106
        %v3584 = vadd.f32 %v3552, %v3110
        %v3585 = vadd.f32 %v3553, %v3116
        %v3586 = vadd.f32 %v3554, %v3120
        %v3587 = vadd.f32 %v3555, %v3126
        %v3588 = vadd.f32 %v3556, %v3130
        %v3589 = vadd.f32 %v3557, %v3136
        %v3590 = vadd.f32 %v3558, %v3140
        %v3591 = vadd.f32 %v3559, %v3146
        %v3592 = vadd.f32 %v3560, %v3150
        %v3593 = vadd.f32 %v3561, %v3156
        %v3594 = vadd.f32 %v3562, %v3160
        %v3595 = vadd.f32 %v3563, %v3166
        %v3596 = vadd.f32 %v3564, %v3170
        %v3597 = vadd.f32 %v3565, %v3176
        %v3598 = vadd.f32 %v3566, %v3180
        %v3599 = vadd.f32 %v3567, %v3186
        %v3600 = vadd.f32 %v3568, %v3190
        %v3601 = vadd.f32 %v3569, %v3196
        %v3602 = vadd.f32 %v3570, %v3200
        %3603 = vst [vmem:[%s3538] sm:$0xff] %v3571
        %3604 = vst [vmem:[%s3538 + $0x8] sm:$0xff] %v3572
        %3605 = vst [vmem:[%s3538 + $0x10] sm:$0xff] %v3573
        %3606 = vst [vmem:[%s3538 + $0x18] sm:$0xff] %v3574
        %3607 = vst [vmem:[%s3538 + $0x20] sm:$0xff] %v3575
        %3608 = vst [vmem:[%s3538 + $0x28] sm:$0xff] %v3576
        %3609 = vst [vmem:[%s3538 + $0x30] sm:$0xff] %v3577
        %3610 = vst [vmem:[%s3538 + $0x38] sm:$0xff] %v3578
        %3611 = vst [vmem:[%s3538 + $0x40] sm:$0xff] %v3579
        %3612 = vst [vmem:[%s3538 + $0x48] sm:$0xff] %v3580
        %3613 = vst [vmem:[%s3538 + $0x50] sm:$0xff] %v3581
        %3614 = vst [vmem:[%s3538 + $0x58] sm:$0xff] %v3582
        %3615 = vst [vmem:[%s3538 + $0x60] sm:$0xff] %v3583
        %3616 = vst [vmem:[%s3538 + $0x68] sm:$0xff] %v3584
        %3617 = vst [vmem:[%s3538 + $0x70] sm:$0xff] %v3585
        %3618 = vst [vmem:[%s3538 + $0x78] sm:$0xff] %v3586
        %3619 = vst [vmem:[%s3538 + $0x80] sm:$0xff] %v3587
        %3620 = vst [vmem:[%s3538 + $0x88] sm:$0xff] %v3588
        %3621 = vst [vmem:[%s3538 + $0x90] sm:$0xff] %v3589
        %3622 = vst [vmem:[%s3538 + $0x98] sm:$0xff] %v3590
        %3623 = vst [vmem:[%s3538 + $0xa0] sm:$0xff] %v3591
        %3624 = vst [vmem:[%s3538 + $0xa8] sm:$0xff] %v3592
        %3625 = vst [vmem:[%s3538 + $0xb0] sm:$0xff] %v3593
        %3626 = vst [vmem:[%s3538 + $0xb8] sm:$0xff] %v3594
        %3627 = vst [vmem:[%s3538 + $0xc0] sm:$0xff] %v3595
        %3628 = vst [vmem:[%s3538 + $0xc8] sm:$0xff] %v3596
        %3629 = vst [vmem:[%s3538 + $0xd0] sm:$0xff] %v3597
        %3630 = vst [vmem:[%s3538 + $0xd8] sm:$0xff] %v3598
        %3631 = vst [vmem:[%s3538 + $0xe0] sm:$0xff] %v3599
        %3632 = vst [vmem:[%s3538 + $0xe8] sm:$0xff] %v3600
        %3633 = vst [vmem:[%s3538 + $0xf0] sm:$0xff] %v3601
        %3634 = vst [vmem:[%s3538 + $0xf8] sm:$0xff] %v3602
      $region80: #{fvae_decoder_forward.3} parent=63 // pred_fallthru
        _
      %p3635 = scmp.eq.s32.totalorder %s28, 3
      // Predicated region
      $region81: #{fvae_decoder_forward.3} parent=63 // pred_check
        %p3636 = pneg %p3635
      $region82: #{fvae_decoder_forward.3} parent=63 // pred_check_branch
        %3638 = sbr.rel (%p3636) target = $region84
      $region83: #{fvae_decoder_forward.3} parent=63 // pred_region
        %s3639 = scalar_lea.vmem [#allocation3], %s611
        %v3640 = vld [vmem:[%s3639] sm:$0xff]
        %v3641 = vld [vmem:[%s3639 + $0x8] sm:$0xff]
        %v3642 = vld [vmem:[%s3639 + $0x10] sm:$0xff]
        %v3643 = vld [vmem:[%s3639 + $0x18] sm:$0xff]
        %v3644 = vld [vmem:[%s3639 + $0x20] sm:$0xff]
        %v3645 = vld [vmem:[%s3639 + $0x28] sm:$0xff]
        %v3646 = vld [vmem:[%s3639 + $0x30] sm:$0xff]
        %v3647 = vld [vmem:[%s3639 + $0x38] sm:$0xff]
        %v3648 = vld [vmem:[%s3639 + $0x40] sm:$0xff]
        %v3649 = vld [vmem:[%s3639 + $0x48] sm:$0xff]
        %v3650 = vld [vmem:[%s3639 + $0x50] sm:$0xff]
        %v3651 = vld [vmem:[%s3639 + $0x58] sm:$0xff]
        %v3652 = vld [vmem:[%s3639 + $0x60] sm:$0xff]
        %v3653 = vld [vmem:[%s3639 + $0x68] sm:$0xff]
        %v3654 = vld [vmem:[%s3639 + $0x70] sm:$0xff]
        %v3655 = vld [vmem:[%s3639 + $0x78] sm:$0xff]
        %v3656 = vld [vmem:[%s3639 + $0x80] sm:$0xff]
        %v3657 = vld [vmem:[%s3639 + $0x88] sm:$0xff]
        %v3658 = vld [vmem:[%s3639 + $0x90] sm:$0xff]
        %v3659 = vld [vmem:[%s3639 + $0x98] sm:$0xff]
        %v3660 = vld [vmem:[%s3639 + $0xa0] sm:$0xff]
        %v3661 = vld [vmem:[%s3639 + $0xa8] sm:$0xff]
        %v3662 = vld [vmem:[%s3639 + $0xb0] sm:$0xff]
        %v3663 = vld [vmem:[%s3639 + $0xb8] sm:$0xff]
        %v3664 = vld [vmem:[%s3639 + $0xc0] sm:$0xff]
        %v3665 = vld [vmem:[%s3639 + $0xc8] sm:$0xff]
        %v3666 = vld [vmem:[%s3639 + $0xd0] sm:$0xff]
        %v3667 = vld [vmem:[%s3639 + $0xd8] sm:$0xff]
        %v3668 = vld [vmem:[%s3639 + $0xe0] sm:$0xff]
        %v3669 = vld [vmem:[%s3639 + $0xe8] sm:$0xff]
        %v3670 = vld [vmem:[%s3639 + $0xf0] sm:$0xff]
        %v3671 = vld [vmem:[%s3639 + $0xf8] sm:$0xff]
        %v3672 = vadd.f32 %v3640, %v3046
        %v3673 = vadd.f32 %v3641, %v3050
        %v3674 = vadd.f32 %v3642, %v3056
        %v3675 = vadd.f32 %v3643, %v3060
        %v3676 = vadd.f32 %v3644, %v3066
        %v3677 = vadd.f32 %v3645, %v3070
        %v3678 = vadd.f32 %v3646, %v3076
        %v3679 = vadd.f32 %v3647, %v3080
        %v3680 = vadd.f32 %v3648, %v3086
        %v3681 = vadd.f32 %v3649, %v3090
        %v3682 = vadd.f32 %v3650, %v3096
        %v3683 = vadd.f32 %v3651, %v3100
        %v3684 = vadd.f32 %v3652, %v3106
        %v3685 = vadd.f32 %v3653, %v3110
        %v3686 = vadd.f32 %v3654, %v3116
        %v3687 = vadd.f32 %v3655, %v3120
        %v3688 = vadd.f32 %v3656, %v3126
        %v3689 = vadd.f32 %v3657, %v3130
        %v3690 = vadd.f32 %v3658, %v3136
        %v3691 = vadd.f32 %v3659, %v3140
        %v3692 = vadd.f32 %v3660, %v3146
        %v3693 = vadd.f32 %v3661, %v3150
        %v3694 = vadd.f32 %v3662, %v3156
        %v3695 = vadd.f32 %v3663, %v3160
        %v3696 = vadd.f32 %v3664, %v3166
        %v3697 = vadd.f32 %v3665, %v3170
        %v3698 = vadd.f32 %v3666, %v3176
        %v3699 = vadd.f32 %v3667, %v3180
        %v3700 = vadd.f32 %v3668, %v3186
        %v3701 = vadd.f32 %v3669, %v3190
        %v3702 = vadd.f32 %v3670, %v3196
        %v3703 = vadd.f32 %v3671, %v3200
        %3705 = vset.pattern.permute.xlu0 0
        %3706 = vperm.xlu0 %3705, %v3202
        %v3707 = vpop.permute.xlu0 %3706
        %3710 = vset.pattern.permute.xlu0 0
        %3711 = vperm.xlu0 %3710, %v3203
        %v3712 = vpop.permute.xlu0 %3711
        %3715 = vset.pattern.permute.xlu0 0
        %3716 = vperm.xlu0 %3715, %v3204
        %v3717 = vpop.permute.xlu0 %3716
        %3720 = vset.pattern.permute.xlu0 0
        %3721 = vperm.xlu0 %3720, %v3205
        %v3722 = vpop.permute.xlu0 %3721
        %3725 = vset.pattern.permute.xlu0 0
        %3726 = vperm.xlu0 %3725, %v3206
        %v3727 = vpop.permute.xlu0 %3726
        %3730 = vset.pattern.permute.xlu0 0
        %3731 = vperm.xlu0 %3730, %v3207
        %v3732 = vpop.permute.xlu0 %3731
        %3735 = vset.pattern.permute.xlu0 0
        %3736 = vperm.xlu0 %3735, %v3208
        %v3737 = vpop.permute.xlu0 %3736
        %3740 = vset.pattern.permute.xlu0 0
        %3741 = vperm.xlu0 %3740, %v3209
        %v3742 = vpop.permute.xlu0 %3741
        %3745 = vset.pattern.permute.xlu0 0
        %3746 = vperm.xlu0 %3745, %v3210
        %v3747 = vpop.permute.xlu0 %3746
        %3750 = vset.pattern.permute.xlu0 0
        %3751 = vperm.xlu0 %3750, %v3211
        %v3752 = vpop.permute.xlu0 %3751
        %3755 = vset.pattern.permute.xlu0 0
        %3756 = vperm.xlu0 %3755, %v3212
        %v3757 = vpop.permute.xlu0 %3756
        %3760 = vset.pattern.permute.xlu0 0
        %3761 = vperm.xlu0 %3760, %v3213
        %v3762 = vpop.permute.xlu0 %3761
        %3765 = vset.pattern.permute.xlu0 0
        %3766 = vperm.xlu0 %3765, %v3214
        %v3767 = vpop.permute.xlu0 %3766
        %3770 = vset.pattern.permute.xlu0 0
        %3771 = vperm.xlu0 %3770, %v3215
        %v3772 = vpop.permute.xlu0 %3771
        %3775 = vset.pattern.permute.xlu0 0
        %3776 = vperm.xlu0 %3775, %v3216
        %v3777 = vpop.permute.xlu0 %3776
        %3780 = vset.pattern.permute.xlu0 0
        %3781 = vperm.xlu0 %3780, %v3217
        %v3782 = vpop.permute.xlu0 %3781
        %3785 = vset.pattern.permute.xlu0 0
        %3786 = vperm.xlu0 %3785, %v3218
        %v3787 = vpop.permute.xlu0 %3786
        %3790 = vset.pattern.permute.xlu0 0
        %3791 = vperm.xlu0 %3790, %v3219
        %v3792 = vpop.permute.xlu0 %3791
        %3795 = vset.pattern.permute.xlu0 0
        %3796 = vperm.xlu0 %3795, %v3220
        %v3797 = vpop.permute.xlu0 %3796
        %3800 = vset.pattern.permute.xlu0 0
        %3801 = vperm.xlu0 %3800, %v3221
        %v3802 = vpop.permute.xlu0 %3801
        %3805 = vset.pattern.permute.xlu0 0
        %3806 = vperm.xlu0 %3805, %v3222
        %v3807 = vpop.permute.xlu0 %3806
        %3810 = vset.pattern.permute.xlu0 0
        %3811 = vperm.xlu0 %3810, %v3223
        %v3812 = vpop.permute.xlu0 %3811
        %3815 = vset.pattern.permute.xlu0 0
        %3816 = vperm.xlu0 %3815, %v3224
        %v3817 = vpop.permute.xlu0 %3816
        %3820 = vset.pattern.permute.xlu0 0
        %3821 = vperm.xlu0 %3820, %v3225
        %v3822 = vpop.permute.xlu0 %3821
        %3825 = vset.pattern.permute.xlu0 0
        %3826 = vperm.xlu0 %3825, %v3226
        %v3827 = vpop.permute.xlu0 %3826
        %3830 = vset.pattern.permute.xlu0 0
        %3831 = vperm.xlu0 %3830, %v3227
        %v3832 = vpop.permute.xlu0 %3831
        %3835 = vset.pattern.permute.xlu0 0
        %3836 = vperm.xlu0 %3835, %v3228
        %v3837 = vpop.permute.xlu0 %3836
        %3840 = vset.pattern.permute.xlu0 0
        %3841 = vperm.xlu0 %3840, %v3229
        %v3842 = vpop.permute.xlu0 %3841
        %3845 = vset.pattern.permute.xlu0 0
        %3846 = vperm.xlu0 %3845, %v3230
        %v3847 = vpop.permute.xlu0 %3846
        %3850 = vset.pattern.permute.xlu0 0
        %3851 = vperm.xlu0 %3850, %v3231
        %v3852 = vpop.permute.xlu0 %3851
        %3855 = vset.pattern.permute.xlu0 0
        %3856 = vperm.xlu0 %3855, %v3232
        %v3857 = vpop.permute.xlu0 %3856
        %3860 = vset.pattern.permute.xlu0 0
        %3861 = vperm.xlu0 %3860, %v3233
        %v3862 = vpop.permute.xlu0 %3861
        %v3864 = vmul.f32 %v3672, %v3707
        %v3865 = vmul.f32 %v3673, %v3712
        %v3866 = vmul.f32 %v3674, %v3717
        %v3867 = vmul.f32 %v3675, %v3722
        %v3868 = vmul.f32 %v3676, %v3727
        %v3869 = vmul.f32 %v3677, %v3732
        %v3870 = vmul.f32 %v3678, %v3737
        %v3871 = vmul.f32 %v3679, %v3742
        %v3872 = vmul.f32 %v3680, %v3747
        %v3873 = vmul.f32 %v3681, %v3752
        %v3874 = vmul.f32 %v3682, %v3757
        %v3875 = vmul.f32 %v3683, %v3762
        %v3876 = vmul.f32 %v3684, %v3767
        %v3877 = vmul.f32 %v3685, %v3772
        %v3878 = vmul.f32 %v3686, %v3777
        %v3879 = vmul.f32 %v3687, %v3782
        %v3880 = vmul.f32 %v3688, %v3787
        %v3881 = vmul.f32 %v3689, %v3792
        %v3882 = vmul.f32 %v3690, %v3797
        %v3883 = vmul.f32 %v3691, %v3802
        %v3884 = vmul.f32 %v3692, %v3807
        %v3885 = vmul.f32 %v3693, %v3812
        %v3886 = vmul.f32 %v3694, %v3817
        %v3887 = vmul.f32 %v3695, %v3822
        %v3888 = vmul.f32 %v3696, %v3827
        %v3889 = vmul.f32 %v3697, %v3832
        %v3890 = vmul.f32 %v3698, %v3837
        %v3891 = vmul.f32 %v3699, %v3842
        %v3892 = vmul.f32 %v3700, %v3847
        %v3893 = vmul.f32 %v3701, %v3852
        %v3894 = vmul.f32 %v3702, %v3857
        %v3895 = vmul.f32 %v3703, %v3862
        %v3896 = vpack.c.bf16 %v3865, %v3864
        %v3897 = vpack.c.bf16 %v3867, %v3866
        %v3898 = vpack.c.bf16 %v3869, %v3868
        %v3899 = vpack.c.bf16 %v3871, %v3870
        %v3900 = vpack.c.bf16 %v3873, %v3872
        %v3901 = vpack.c.bf16 %v3875, %v3874
        %v3902 = vpack.c.bf16 %v3877, %v3876
        %v3903 = vpack.c.bf16 %v3879, %v3878
        %v3904 = vpack.c.bf16 %v3881, %v3880
        %v3905 = vpack.c.bf16 %v3883, %v3882
        %v3906 = vpack.c.bf16 %v3885, %v3884
        %v3907 = vpack.c.bf16 %v3887, %v3886
        %v3908 = vpack.c.bf16 %v3889, %v3888
        %v3909 = vpack.c.bf16 %v3891, %v3890
        %v3910 = vpack.c.bf16 %v3893, %v3892
        %v3911 = vpack.c.bf16 %v3895, %v3894
        %v3912 = vld [vmem:[%s9] sm:$0xf]
        %v3913 = vld [vmem:[%s9 + $0x4] sm:$0xf]
        %v3914 = vld [vmem:[%s9 + $0x8] sm:$0xf]
        %v3915 = vld [vmem:[%s9 + $0xc] sm:$0xf]
        %v3916 = vld [vmem:[%s9 + $0x10] sm:$0xf]
        %v3917 = vld [vmem:[%s9 + $0x14] sm:$0xf]
        %v3918 = vld [vmem:[%s9 + $0x18] sm:$0xf]
        %v3919 = vld [vmem:[%s9 + $0x1c] sm:$0xf]
        %v3920 = vld [vmem:[%s9 + $0x20] sm:$0xf]
        %v3921 = vld [vmem:[%s9 + $0x24] sm:$0xf]
        %v3922 = vld [vmem:[%s9 + $0x28] sm:$0xf]
        %v3923 = vld [vmem:[%s9 + $0x2c] sm:$0xf]
        %v3924 = vld [vmem:[%s9 + $0x30] sm:$0xf]
        %v3925 = vld [vmem:[%s9 + $0x34] sm:$0xf]
        %v3926 = vld [vmem:[%s9 + $0x38] sm:$0xf]
        %v3927 = vld [vmem:[%s9 + $0x3c] sm:$0xf]
        %v3928 = vld [vmem:[%s10] sm:$0x1]
        %v3930 = vlaneseq
        %v3931 = vshrl.u32 %v3930, 7
        %v3932 = vsub.s32 0, %v3931
        %v3933 = vrot.slane %v3928, %v3932
        %v3951 = vunpack.c.l.b16 %v3912
        %v3952 = vunpack.c.l.b16 %v3913
        %v3953 = vunpack.c.l.b16 %v3914
        %v3954 = vunpack.c.l.b16 %v3915
        %v3955 = vunpack.c.l.b16 %v3916
        %v3956 = vunpack.c.l.b16 %v3917
        %v3957 = vunpack.c.l.b16 %v3918
        %v3958 = vunpack.c.l.b16 %v3919
        %v3959 = vunpack.c.l.b16 %v3920
        %v3960 = vunpack.c.l.b16 %v3921
        %v3961 = vunpack.c.l.b16 %v3922
        %v3962 = vunpack.c.l.b16 %v3923
        %v3963 = vunpack.c.l.b16 %v3924
        %v3964 = vunpack.c.l.b16 %v3925
        %v3965 = vunpack.c.l.b16 %v3926
        %v3966 = vunpack.c.l.b16 %v3927
        %v3967 = vpack.c.b16 %v3952, %v3951
        %v3968 = vpack.c.b16 %v3954, %v3953
        %v3969 = vpack.c.b16 %v3956, %v3955
        %v3970 = vpack.c.b16 %v3958, %v3957
        %v3971 = vpack.c.b16 %v3960, %v3959
        %v3972 = vpack.c.b16 %v3962, %v3961
        %v3973 = vpack.c.b16 %v3964, %v3963
        %v3974 = vpack.c.b16 %v3966, %v3965
        %3983 = vmatprep.subr.bf16.mxu0 0
        %3984 = vmatpush1.bf16.msra.mxu0 %v3974
        %3985 = vmatprep.subr.bf16.mxu0 0
        %3986 = vmatpush1.bf16.msra.mxu0 %v3973
        %3987 = vmatprep.subr.bf16.mxu0 0
        %3988 = vmatpush1.bf16.msra.mxu0 %v3972
        %3989 = vmatprep.subr.bf16.mxu0 0
        %3990 = vmatpush1.bf16.msra.mxu0 %v3971
        %3991 = vmatprep.subr.bf16.mxu0 0
        %3992 = vmatpush1.bf16.msra.mxu0 %v3970
        %3993 = vmatprep.subr.bf16.mxu0 0
        %3994 = vmatpush1.bf16.msra.mxu0 %v3969
        %3995 = vmatprep.subr.bf16.mxu0 0
        %3996 = vmatpush1.bf16.msra.mxu0 %v3968
        %3997 = vmatprep.subr.bf16.mxu0 0
        %3998 = vmatpush1.bf16.msra.mxu0 %v3967
        %3999 = vmatprep.subr.bf16.mxu0 0
        %4000 = vmatpush2.bf16.msra.mxu0 0
        %4001 = vmatprep.subr.bf16.mxu0 0
        %4002 = vmatpush2.bf16.msra.mxu0 0
        %4003 = vmatprep.subr.bf16.mxu0 0
        %4004 = vmatpush2.bf16.msra.mxu0 0
        %4005 = vmatprep.subr.bf16.mxu0 0
        %4006 = vmatpush2.bf16.msra.mxu0 0
        %4007 = vmatprep.subr.bf16.mxu0 0
        %4008 = vmatpush2.bf16.msra.mxu0 0
        %4009 = vmatprep.subr.bf16.mxu0 0
        %4010 = vmatpush2.bf16.msra.mxu0 0
        %4011 = vmatprep.subr.bf16.mxu0 0
        %4012 = vmatpush2.bf16.msra.mxu0 0
        %4013 = vmatprep.subr.bf16.mxu0 0
        %4014 = vmatpush2.bf16.msra.mxu0 0
        %4015 = vmatprep.mubr.bf16.mxu0 0
        %4016 = vmatmul.mubr.bf16.gmra.mxu0 %v3896
        %v4017 = vpop.f32.mrf.mxu0
        %v4018 = vadd.f32 %v3933, %v4017
        %v4019 = vpop.f32.mrf.mxu0
        %v4020 = vpop.f32.mrf.mxu0
        %v4021 = vadd.f32 %v3933, %v4020
        %v4022 = vpop.f32.mrf.mxu0
        %4023 = vmatprep.mubr.bf16.mxu0 0
        %4024 = vmatmul.mubr.bf16.gmra.mxu0 %v3897
        %v4025 = vpop.f32.mrf.mxu0
        %v4026 = vadd.f32 %v3933, %v4025
        %v4027 = vpop.f32.mrf.mxu0
        %v4028 = vpop.f32.mrf.mxu0
        %v4029 = vadd.f32 %v3933, %v4028
        %v4030 = vpop.f32.mrf.mxu0
        %4031 = vmatprep.mubr.bf16.mxu0 0
        %4032 = vmatmul.mubr.bf16.gmra.mxu0 %v3898
        %v4033 = vpop.f32.mrf.mxu0
        %v4034 = vadd.f32 %v3933, %v4033
        %v4035 = vpop.f32.mrf.mxu0
        %v4036 = vpop.f32.mrf.mxu0
        %v4037 = vadd.f32 %v3933, %v4036
        %v4038 = vpop.f32.mrf.mxu0
        %4039 = vmatprep.mubr.bf16.mxu0 0
        %4040 = vmatmul.mubr.bf16.gmra.mxu0 %v3899
        %v4041 = vpop.f32.mrf.mxu0
        %v4042 = vadd.f32 %v3933, %v4041
        %v4043 = vpop.f32.mrf.mxu0
        %v4044 = vpop.f32.mrf.mxu0
        %v4045 = vadd.f32 %v3933, %v4044
        %v4046 = vpop.f32.mrf.mxu0
        %4047 = vmatprep.mubr.bf16.mxu0 0
        %4048 = vmatmul.mubr.bf16.gmra.mxu0 %v3900
        %v4049 = vpop.f32.mrf.mxu0
        %v4050 = vadd.f32 %v3933, %v4049
        %v4051 = vpop.f32.mrf.mxu0
        %v4052 = vpop.f32.mrf.mxu0
        %v4053 = vadd.f32 %v3933, %v4052
        %v4054 = vpop.f32.mrf.mxu0
        %4055 = vmatprep.mubr.bf16.mxu0 0
        %4056 = vmatmul.mubr.bf16.gmra.mxu0 %v3901
        %v4057 = vpop.f32.mrf.mxu0
        %v4058 = vadd.f32 %v3933, %v4057
        %v4059 = vpop.f32.mrf.mxu0
        %v4060 = vpop.f32.mrf.mxu0
        %v4061 = vadd.f32 %v3933, %v4060
        %v4062 = vpop.f32.mrf.mxu0
        %4063 = vmatprep.mubr.bf16.mxu0 0
        %4064 = vmatmul.mubr.bf16.gmra.mxu0 %v3902
        %v4065 = vpop.f32.mrf.mxu0
        %v4066 = vadd.f32 %v3933, %v4065
        %v4067 = vpop.f32.mrf.mxu0
        %v4068 = vpop.f32.mrf.mxu0
        %v4069 = vadd.f32 %v3933, %v4068
        %v4070 = vpop.f32.mrf.mxu0
        %4071 = vmatprep.mubr.bf16.mxu0 0
        %4072 = vmatmul.mubr.bf16.gmra.mxu0 %v3903
        %v4073 = vpop.f32.mrf.mxu0
        %v4074 = vadd.f32 %v3933, %v4073
        %v4075 = vpop.f32.mrf.mxu0
        %v4076 = vpop.f32.mrf.mxu0
        %v4077 = vadd.f32 %v3933, %v4076
        %v4078 = vpop.f32.mrf.mxu0
        %4079 = vmatprep.mubr.bf16.mxu0 0
        %4080 = vmatmul.mubr.bf16.gmra.mxu0 %v3904
        %v4081 = vpop.f32.mrf.mxu0
        %v4082 = vadd.f32 %v3933, %v4081
        %v4083 = vpop.f32.mrf.mxu0
        %v4084 = vpop.f32.mrf.mxu0
        %v4085 = vadd.f32 %v3933, %v4084
        %v4086 = vpop.f32.mrf.mxu0
        %4087 = vmatprep.mubr.bf16.mxu0 0
        %4088 = vmatmul.mubr.bf16.gmra.mxu0 %v3905
        %v4089 = vpop.f32.mrf.mxu0
        %v4090 = vadd.f32 %v3933, %v4089
        %v4091 = vpop.f32.mrf.mxu0
        %v4092 = vpop.f32.mrf.mxu0
        %v4093 = vadd.f32 %v3933, %v4092
        %v4094 = vpop.f32.mrf.mxu0
        %4095 = vmatprep.mubr.bf16.mxu0 0
        %4096 = vmatmul.mubr.bf16.gmra.mxu0 %v3906
        %v4097 = vpop.f32.mrf.mxu0
        %v4098 = vadd.f32 %v3933, %v4097
        %v4099 = vpop.f32.mrf.mxu0
        %v4100 = vpop.f32.mrf.mxu0
        %v4101 = vadd.f32 %v3933, %v4100
        %v4102 = vpop.f32.mrf.mxu0
        %4103 = vmatprep.mubr.bf16.mxu0 0
        %4104 = vmatmul.mubr.bf16.gmra.mxu0 %v3907
        %v4105 = vpop.f32.mrf.mxu0
        %v4106 = vadd.f32 %v3933, %v4105
        %v4107 = vpop.f32.mrf.mxu0
        %v4108 = vpop.f32.mrf.mxu0
        %v4109 = vadd.f32 %v3933, %v4108
        %v4110 = vpop.f32.mrf.mxu0
        %4111 = vmatprep.mubr.bf16.mxu0 0
        %4112 = vmatmul.mubr.bf16.gmra.mxu0 %v3908
        %v4113 = vpop.f32.mrf.mxu0
        %v4114 = vadd.f32 %v3933, %v4113
        %v4115 = vpop.f32.mrf.mxu0
        %v4116 = vpop.f32.mrf.mxu0
        %v4117 = vadd.f32 %v3933, %v4116
        %v4118 = vpop.f32.mrf.mxu0
        %4119 = vmatprep.mubr.bf16.mxu0 0
        %4120 = vmatmul.mubr.bf16.gmra.mxu0 %v3909
        %v4121 = vpop.f32.mrf.mxu0
        %v4122 = vadd.f32 %v3933, %v4121
        %v4123 = vpop.f32.mrf.mxu0
        %v4124 = vpop.f32.mrf.mxu0
        %v4125 = vadd.f32 %v3933, %v4124
        %v4126 = vpop.f32.mrf.mxu0
        %4127 = vmatprep.mubr.bf16.mxu0 0
        %4128 = vmatmul.mubr.bf16.gmra.mxu0 %v3910
        %v4129 = vpop.f32.mrf.mxu0
        %v4130 = vadd.f32 %v3933, %v4129
        %v4131 = vpop.f32.mrf.mxu0
        %v4132 = vpop.f32.mrf.mxu0
        %v4133 = vadd.f32 %v3933, %v4132
        %v4134 = vpop.f32.mrf.mxu0
        %4135 = vmatprep.mubr.bf16.mxu0 0
        %4136 = vmatmul.mubr.bf16.gmra.mxu0 %v3911
        %v4137 = vpop.f32.mrf.mxu0
        %v4138 = vadd.f32 %v3933, %v4137
        %v4139 = vpop.f32.mrf.mxu0
        %v4140 = vpop.f32.mrf.mxu0
        %v4141 = vadd.f32 %v3933, %v4140
        %v4142 = vpop.f32.mrf.mxu0
        %4143 = vdwg.mxu0
        %4144 = vst [vmem:[%s606] sm:$0xff] %v4018
        %4145 = vst [vmem:[%s606 + $0x8] sm:$0xff] %v4021
        %4146 = vst [vmem:[%s606 + $0x10] sm:$0xff] %v4026
        %4147 = vst [vmem:[%s606 + $0x18] sm:$0xff] %v4029
        %4148 = vst [vmem:[%s606 + $0x20] sm:$0xff] %v4034
        %4149 = vst [vmem:[%s606 + $0x28] sm:$0xff] %v4037
        %4150 = vst [vmem:[%s606 + $0x30] sm:$0xff] %v4042
        %4151 = vst [vmem:[%s606 + $0x38] sm:$0xff] %v4045
        %4152 = vst [vmem:[%s606 + $0x40] sm:$0xff] %v4050
        %4153 = vst [vmem:[%s606 + $0x48] sm:$0xff] %v4053
        %4154 = vst [vmem:[%s606 + $0x50] sm:$0xff] %v4058
        %4155 = vst [vmem:[%s606 + $0x58] sm:$0xff] %v4061
        %4156 = vst [vmem:[%s606 + $0x60] sm:$0xff] %v4066
        %4157 = vst [vmem:[%s606 + $0x68] sm:$0xff] %v4069
        %4158 = vst [vmem:[%s606 + $0x70] sm:$0xff] %v4074
        %4159 = vst [vmem:[%s606 + $0x78] sm:$0xff] %v4077
        %4160 = vst [vmem:[%s606 + $0x80] sm:$0xff] %v4082
        %4161 = vst [vmem:[%s606 + $0x88] sm:$0xff] %v4085
        %4162 = vst [vmem:[%s606 + $0x90] sm:$0xff] %v4090
        %4163 = vst [vmem:[%s606 + $0x98] sm:$0xff] %v4093
        %4164 = vst [vmem:[%s606 + $0xa0] sm:$0xff] %v4098
        %4165 = vst [vmem:[%s606 + $0xa8] sm:$0xff] %v4101
        %4166 = vst [vmem:[%s606 + $0xb0] sm:$0xff] %v4106
        %4167 = vst [vmem:[%s606 + $0xb8] sm:$0xff] %v4109
        %4168 = vst [vmem:[%s606 + $0xc0] sm:$0xff] %v4114
        %4169 = vst [vmem:[%s606 + $0xc8] sm:$0xff] %v4117
        %4170 = vst [vmem:[%s606 + $0xd0] sm:$0xff] %v4122
        %4171 = vst [vmem:[%s606 + $0xd8] sm:$0xff] %v4125
        %4172 = vst [vmem:[%s606 + $0xe0] sm:$0xff] %v4130
        %4173 = vst [vmem:[%s606 + $0xe8] sm:$0xff] %v4133
        %4174 = vst [vmem:[%s606 + $0xf0] sm:$0xff] %v4138
        %4175 = vst [vmem:[%s606 + $0xf8] sm:$0xff] %v4141
      $region84: #{fvae_decoder_forward.3} parent=63 // pred_fallthru
        _
      %p4176 = scmp.eq.s32.totalorder %s28, 3
      %s4177 = scalar_select %p4176, %s29, 0
      %s4178 = smul.u32 32, %s4177
      %p4179 = scmp.lt.s32.totalorder %s27, 1
      %s4180 = scalar_select %p4179, %s27, 1
      %p4181 = scmp.lt.s32.totalorder %s4178, 31
      %s4182 = scalar_select %p4181, %s4178, 31
      %s4183 = smul.addr %s4180, 32
      %s4184 = sadd.s32 %s4182, %s4183
      %s4185 = smul.addr %s4184, 8
      %s4186 = scalar_lea.vmem %s11, %s4185
      // Predicated region
      $region85: #{fvae_decoder_forward.3} parent=63 // pred_check
        %p4187 = pneg %p345
      $region86: #{fvae_decoder_forward.3} parent=63 // pred_check_branch
        %4189 = sbr.rel (%p4187) target = $region88
      $region87: #{fvae_decoder_forward.3} parent=63 // pred_region
        %p4190 = scmp.eq.s32.totalorder %s28, 3
        %s4191 = scalar_select %p4190, %s29, 0
        %s4192 = smul.u32 32, %s4191
      $region88: #{fvae_decoder_forward.3} parent=63 // pred_fallthru
        _
    $region64: #{fvae_decoder_forward.3} parent=5 // pred_fallthru
      _
    %p4193 = scmp.le.s32.totalorder 2, %s17
    // Predicated region
    $region89: #{fvae_decoder_forward.3} parent=5 // pred_check
      %p4194 = pneg %p4193
    $region90: #{fvae_decoder_forward.3} parent=5 // pred_check_branch
      %4196 = sbr.rel (%p4194) target = $region92
    $region91: #{fvae_decoder_forward.3} parent=5 // pred_region
      %s4197 = ssub.s32 %s17, 2
      // Predicated region
      $region93: #{fvae_decoder_forward.3} parent=91 // pred_check
        %p4198 = pneg %p351
      $region94: #{fvae_decoder_forward.3} parent=91 // pred_check_branch
        %4200 = sbr.rel (%p4198) target = $region96
      $region95: #{fvae_decoder_forward.3} parent=91 // pred_region
        %p4201 = scmp.eq.s32.totalorder %s31, 3
        %s4202 = scalar_select %p4201, %s32, 0
        %s4203 = smul.u32 32, %s4202
        %p4204 = scmp.lt.s32.totalorder %s30, 1
        %s4205 = scalar_select %p4204, %s30, 1
        %p4206 = scmp.lt.s32.totalorder %s4203, 31
        %s4207 = scalar_select %p4206, %s4203, 31
        %s4208 = smul.addr %s4205, 32
        %s4209 = sadd.s32 %s4207, %s4208
        %s4210 = smul.addr %s4209, 8
        %s4211 = scalar_lea.vmem %s11, %s4210
      $region96: #{fvae_decoder_forward.3} parent=91 // pred_fallthru
        _
    $region92: #{fvae_decoder_forward.3} parent=5 // pred_fallthru
      _
  $region6: #{fvae_decoder_forward.3} parent=0 // loop_footer
    %s21 = sadd.s32 1, %s17
  $region7: #{fvae_decoder_forward.3} parent=0 // loop_footer_branch
    %16 = sbr.rel target = $region3
  $region8: #{fvae_decoder_forward.3} parent=0 // loop_exit
    _

</llo_original>
